<compile_context>
chip_gen: v7x
topology: tpu7x:2x2x1
jax: 0.10.0
libtpu: 0.0.40
codegen_flags: <defaults>
</compile_context>

<pallas_src>
import math
from functools import partial

import jax
import jax.numpy as jnp
from jax.experimental import pallas as pl
from jax.experimental.pallas import tpu as pltpu


# ----------------------------- Pallas kernel -----------------------------

def _bilstm_text_kernel(h1, h2, T, Bp,
                        x_ref,                                   # (T*Bp, 2E) bf16: [x[t] | x[T-1-t]]
                        w_in1_ref, b_in1_ref, w_hh1_ref,         # fused bi-LSTM1
                        wih2_ref, b2_ref, whh2_ref,              # LSTM2
                        wfc1_ref, bfc1_ref, wfc2_ref, bfc2_ref,  # FC layers
                        out_ref,                                 # (Bp, 128) f32 (lane-padded)
                        pre1_ref, seq_ref, pre2_ref):            # VMEM scratch
    f32, bf16 = jnp.float32, jnp.bfloat16
    G1 = 2 * h1                      # fused (fwd|bwd) per-gate width

    # (1) bi-LSTM1 input projections: one batched MXU matmul for every time step
    #     of BOTH directions; bias folded here so the serial loop is h@W_hh + pre.
    pre1_ref[...] = (jnp.dot(x_ref[...], w_in1_ref[...],
                             preferred_element_type=f32) + b_in1_ref[...])

    # (2) fused fwd+bwd LSTM1 recurrence.  State [h_fwd | h_bwd] : (Bp, 2*h1);
    #     one (Bp,2h1)@(2h1,8h1) block-diagonal gate matmul per step advances the
    #     forward direction at time s and the backward direction at time T-1-s.
    #     Gate layout is [i|f|o|g]: sigmoid over the first 3*G1 columns only,
    #     tanh over the last G1 -> half the EUP work vs full-width sg/tg.
    #     The bwd half of h is stored time-aligned (row T-1-s) so LSTM2's input
    #     projection later is a single batched matmul.
    h = jnp.zeros((Bp, G1), f32)
    c = jnp.zeros((Bp, G1), f32)
    for s in range(T):
        gates = (jnp.dot(h.astype(bf16), w_hh1_ref[...],
                         preferred_element_type=f32)
                 + pre1_ref[s * Bp:(s + 1) * Bp, :])
        sg = jax.nn.sigmoid(gates[:, :3 * G1])     # contiguous sigmoid block
        g = jnp.tanh(gates[:, 3 * G1:])            # tanh gate only
        i = sg[:, 0 * G1:1 * G1]
        f = sg[:, 1 * G1:2 * G1]
        o = sg[:, 2 * G1:3 * G1]
        c = f * c + i * g
        h = o * jnp.tanh(c)
        hb = h.astype(bf16)                        # off the dependence chain
        seq_ref[s * Bp:(s + 1) * Bp, :h1] = hb[:, :h1]              # fwd @ t=s
        seq_ref[(T - 1 - s) * Bp:(T - s) * Bp, h1:] = hb[:, h1:]    # bwd @ t=T-1-s

    # Dropout(p=0.3): identity at inference time.
    # TODO(synk): training-mode dropout (pltpu.prng_* mask) not implemented.

    # (3) LSTM2 input projection: ONE batched matmul over the whole (time-aligned)
    #     bidirectional sequence + bias broadcast.
    pre2_ref[...] = (jnp.dot(seq_ref[...], wih2_ref[...],
                             preferred_element_type=f32) + b2_ref[...])

    # (4) LSTM2 recurrence; only the final hidden state is needed.
    h = jnp.zeros((Bp, h2), f32)
    c = jnp.zeros((Bp, h2), f32)
    for t in range(T):
        gates = (jnp.dot(h.astype(bf16), whh2_ref[...],
                         preferred_element_type=f32)
                 + pre2_ref[t * Bp:(t + 1) * Bp, :])
        sg = jax.nn.sigmoid(gates[:, :3 * h2])
        g = jnp.tanh(gates[:, 3 * h2:])
        i = sg[:, 0 * h2:1 * h2]
        f = sg[:, 1 * h2:2 * h2]
        o = sg[:, 2 * h2:3 * h2]
        c = f * c + i * g
        h = o * jnp.tanh(c)

    # (5) fc1 -> relu -> fc2 (fc2 lane-padded to 128 -> unmasked full-width store)
    feat = jnp.maximum(
        jnp.dot(h.astype(bf16), wfc1_ref[...], preferred_element_type=f32)
        + bfc1_ref[...], 0.0)
    out_ref[...] = (jnp.dot(feat.astype(bf16), wfc2_ref[...],
                            preferred_element_type=f32) + bfc2_ref[...])


# ----------------------------- JAX wrapper --------------------------------

_GATE_ORDER = (0, 1, 3, 2)   # [i, f, g, o] (PyTorch order) -> [i, f, o, g]


def _interleave_gates(wf, wb, h):
    """Per-direction [i,f,g,o] columns -> fused [i_f,i_b, f_f,f_b, o_f,o_b, g_f,g_b]."""
    parts = []
    for g in _GATE_ORDER:
        parts.append(wf[..., g * h:(g + 1) * h])
        parts.append(wb[..., g * h:(g + 1) * h])
    return jnp.concatenate(parts, axis=-1)


def _reorder_gates(w, h):
    """Single direction [i,f,g,o] columns -> [i,f,o,g]."""
    return jnp.concatenate([w[..., g * h:(g + 1) * h] for g in _GATE_ORDER], axis=-1)


def local_text_bilstm(tokens, p):
    """tokens: int32 (B, T).  Returns logits (B, num_classes)."""
    E = p["wih1f_t"].shape[0]
    H1 = p["whh1f_t"].shape[0]
    H2 = p["whh2_t"].shape[0]
    FC = p["wfc1_t"].shape[1]
    NC = p["wfc2_t"].shape[1]
    B, T = tokens.shape
    # Pad batch to a multiple of 16: fills bf16 packed sublane tiles (16 rows)
    # and f32 sublanes (8).  Larger real serving batches (up to ~128/256) fill
    # the MXU M dimension for free -- the T-step chain length is unchanged.
    Bp = max(16, ((B + 15) // 16) * 16)
    NCp = 128                               # lane-dense output width
    bf16 = jnp.bfloat16

    # ---- plain-JAX glue: embedding gather, time-major layout, batch pad, and
    #      pairing x[t] with x[T-1-t] so one matmul feeds both directions. ----
    emb = p["embedding"][tokens].astype(jnp.float32)            # (B, T, E)
    x = jnp.transpose(emb, (1, 0, 2))                           # (T, B, E)
    x = jnp.pad(x, ((0, 0), (0, Bp - B), (0, 0)))               # (T, Bp, E)
    x_pair = jnp.concatenate([x, x[::-1]], axis=-1)             # (T, Bp, 2E)
    x_pair = x_pair.reshape(T * Bp, 2 * E).astype(bf16)

    # ---- fused bi-LSTM1 weights: [i|f|o|g] gate-major interleaved columns,
    #      block-diagonal over {fwd, bwd} for input and hidden projections. ----
    zE = jnp.zeros_like(p["wih1f_t"])
    zH = jnp.zeros_like(p["whh1f_t"])
    w_in1 = jnp.concatenate([_interleave_gates(p["wih1f_t"], zE, H1),
                             _interleave_gates(zE, p["wih1b_t"], H1)],
                            axis=0).astype(bf16)                # (2E, 8H1)
    b_in1 = _interleave_gates(p["b1f"], p["b1b"], H1)           # (1, 8H1) f32
    w_hh1 = jnp.concatenate([_interleave_gates(p["whh1f_t"], zH, H1),
                             _interleave_gates(zH, p["whh1b_t"], H1)],
                            axis=0).astype(bf16)                # (2H1, 8H1)

    # ---- LSTM2 / FC weights ([i|f|o|g] order for LSTM2; fc2 lane-padded). ----
    wih2 = _reorder_gates(p["wih2_t"], H2).astype(bf16)         # (2H1, 4H2)
    b2 = _reorder_gates(p["b2"], H2)                            # (1, 4H2) f32
    whh2 = _reorder_gates(p["whh2_t"], H2).astype(bf16)         # (H2, 4H2)
    wfc1 = p["wfc1_t"].astype(bf16)
    wfc2 = jnp.pad(p["wfc2_t"], ((0, 0), (0, NCp - NC))).astype(bf16)
    bfc2 = jnp.pad(p["bfc2"], ((0, 0), (0, NCp - NC)))

    # TODO(synk): for tighter parity with the f32 PyTorch model keep w_hh1/whh2
    # (the recurrent weights) in f32; bf16 is used here to keep the serial
    # h->gates->h matmul on the fast MXU path (drift stays < ~1e-2 at T=8).
    args = (x_pair, w_in1, b_in1, w_hh1,
            wih2, b2, whh2,
            wfc1, p["bfc1"], wfc2, bfc2)

    flops = (2 * T * Bp * (2 * E * 8 * H1 + 2 * H1 * 8 * H1
                           + 2 * H1 * 4 * H2 + H2 * 4 * H2)
             + 2 * Bp * (H2 * FC + FC * NCp))
    transc = T * Bp * (10 * H1 + 5 * H2)
    bytes_acc = sum(int(a.size) * a.dtype.itemsize for a in args) + Bp * NCp * 4

    vmem = pl.BlockSpec(memory_space=pltpu.MemorySpace.VMEM)
    out = pl.pallas_call(
        partial(_bilstm_text_kernel, H1, H2, T, Bp),
        out_shape=jax.ShapeDtypeStruct((Bp, NCp), jnp.float32),
        in_specs=[vmem] * len(args),
        out_specs=vmem,
        scratch_shapes=[pltpu.VMEM((T * Bp, 8 * H1), jnp.float32),    # pre1
                        pltpu.VMEM((T * Bp, 2 * H1), jnp.bfloat16),   # time-aligned bi-LSTM1 output
                        pltpu.VMEM((T * Bp, 4 * H2), jnp.float32)],   # pre2
        compiler_params=pltpu.CompilerParams(vmem_limit_bytes=32 * 1024 * 1024),
        cost_estimate=pl.CostEstimate(flops=int(flops),
                                      transcendentals=int(transc),
                                      bytes_accessed=int(bytes_acc)),
    )(*args)
    return out[:B, :NC]


# ---------------------- deterministic parameter init ----------------------

def init_params(key, vocab, embed, h1, h2, fc, nc=6):
    ks = iter(jax.random.split(key, 24))

    def u(shape, scale):
        return jax.random.uniform(next(ks), shape, jnp.float32, -scale, scale)

    s1, s2, sf1, sf2 = (1.0 / math.sqrt(h1), 1.0 / math.sqrt(h2),
                        1.0 / math.sqrt(h2), 1.0 / math.sqrt(fc))
    return {
        "embedding": jax.random.normal(next(ks), (vocab, embed), jnp.float32),
        # LSTM1 forward direction (weights stored transposed: (in, 4H), [i|f|g|o])
        "wih1f_t": u((embed, 4 * h1), s1),
        "whh1f_t": u((h1, 4 * h1), s1),
        "b1f": u((1, 4 * h1), s1) + u((1, 4 * h1), s1),   # b_ih + b_hh
        # LSTM1 backward direction
        "wih1b_t": u((embed, 4 * h1), s1),
        "whh1b_t": u((h1, 4 * h1), s1),
        "b1b": u((1, 4 * h1), s1) + u((1, 4 * h1), s1),
        # LSTM2
        "wih2_t": u((2 * h1, 4 * h2), s2),
        "whh2_t": u((h2, 4 * h2), s2),
        "b2": u((1, 4 * h2), s2) + u((1, 4 * h2), s2),
        # FC layers
        "wfc1_t": u((h2, fc), sf1),
        "bfc1": u((1, fc), sf1),
        "wfc2_t": u((fc, nc), sf2),
        "bfc2": u((1, nc), sf2),
    }


# ----------------------------- pure-JAX reference -------------------------

def _ref_forward(tokens, p):
    emb = p["embedding"][tokens].astype(jnp.float32)
    B, T, _ = emb.shape
    H1 = p["whh1f_t"].shape[0]
    H2 = p["whh2_t"].shape[0]

    def cell(x_t, h, c, wih, whh, b, H):
        g = x_t @ wih + h @ whh + b
        i = jax.nn.sigmoid(g[:, :H]); f = jax.nn.sigmoid(g[:, H:2 * H])
        gg = jnp.tanh(g[:, 2 * H:3 * H]); o = jax.nn.sigmoid(g[:, 3 * H:])
        c = f * c + i * gg
        return o * jnp.tanh(c), c

    h = jnp.zeros((B, H1)); c = jnp.zeros((B, H1)); fwd = []
    for t in range(T):
        h, c = cell(emb[:, t], h, c, p["wih1f_t"], p["whh1f_t"], p["b1f"], H1)
        fwd.append(h)
    h = jnp.zeros((B, H1)); c = jnp.zeros((B, H1)); bwd = [None] * T
    for t in range(T - 1, -1, -1):
        h, c = cell(emb[:, t], h, c, p["wih1b_t"], p["whh1b_t"], p["b1b"], H1)
        bwd[t] = h
    h = jnp.zeros((B, H2)); c = jnp.zeros((B, H2))
    for t in range(T):
        xt = jnp.concatenate([fwd[t], bwd[t]], axis=-1)
        h, c = cell(xt, h, c, p["wih2_t"], p["whh2_t"], p["b2"], H2)
    feat = jnp.maximum(h @ p["wfc1_t"] + p["bfc1"], 0.0)
    return feat @ p["wfc2_t"] + p["bfc2"]


# --------------------------------- main ------------------------------------

if __name__ == "__main__":
    VOCAB, EMBED, H1, H2, FC, NC = 50, 32, 32, 32, 32, 6
    B, T = 2, 8

    key = jax.random.PRNGKey(0)
    pkey, tkey = jax.random.split(key)
    params = init_params(pkey, VOCAB, EMBED, H1, H2, FC, NC)
    tokens = jax.random.randint(tkey, (B, T), 0, VOCAB, dtype=jnp.int32)

    logits = jax.jit(local_text_bilstm)(tokens, params)
    logits = jax.block_until_ready(logits)
    assert logits.shape == (B, NC), logits.shape

    ref = _ref_forward(tokens, params)
    # bf16 matmul operands (f32 accumulation) -> small drift vs the f32 reference.
    assert jnp.allclose(logits, ref, atol=5e-2, rtol=5e-2), \
        (float(jnp.max(jnp.abs(logits - ref))), logits, ref)

    print("KERNEL_OK")
</pallas_src>

<mosaic_0001>
module attributes {stable_mosaic.version = 11 : i64} {
  func.func @_bilstm_text_kernel(%arg0: memref<128x64xbf16, #tpu.memory_space<vmem>>, %arg1: memref<64x256xbf16, #tpu.memory_space<vmem>>, %arg2: memref<1x256xf32, #tpu.memory_space<vmem>>, %arg3: memref<64x256xbf16, #tpu.memory_space<vmem>>, %arg4: memref<64x128xbf16, #tpu.memory_space<vmem>>, %arg5: memref<1x128xf32, #tpu.memory_space<vmem>>, %arg6: memref<32x128xbf16, #tpu.memory_space<vmem>>, %arg7: memref<32x32xbf16, #tpu.memory_space<vmem>>, %arg8: memref<1x32xf32, #tpu.memory_space<vmem>>, %arg9: memref<32x128xbf16, #tpu.memory_space<vmem>>, %arg10: memref<1x128xf32, #tpu.memory_space<vmem>>, %arg11: memref<16x128xf32, #tpu.memory_space<vmem>>, %arg12: memref<128x256xf32, #tpu.memory_space<vmem>>, %arg13: memref<128x64xbf16, #tpu.memory_space<vmem>>, %arg14: memref<128x128xf32, #tpu.memory_space<vmem>>) attributes {dimension_semantics = [], scalar_prefetch = 0 : i64, scratch_operands = 3 : i64, tpu.core_type = #tpu.core_type<tc>} {
    %c0 = arith.constant 0 : index
    %c0_0 = arith.constant 0 : index
    %0 = vector.load %arg0[%c0, %c0_0] : memref<128x64xbf16, #tpu.memory_space<vmem>>, vector<128x64xbf16>
    %c0_1 = arith.constant 0 : index
    %c0_2 = arith.constant 0 : index
    %1 = vector.load %arg1[%c0_1, %c0_2] : memref<64x256xbf16, #tpu.memory_space<vmem>>, vector<64x256xbf16>
    %cst = arith.constant dense<0.000000e+00> : vector<128x256xf32>
    %2 = tpu.matmul %0, %1, %cst {dimension_numbers = #tpu.dot_dimension_numbers<[1], [0], [0], [1], [0, 0, 1, 1], [], []>} : vector<128x64xbf16>, vector<64x256xbf16>, vector<128x256xf32> -> vector<128x256xf32>
    %c0_3 = arith.constant 0 : index
    %c0_4 = arith.constant 0 : index
    %3 = vector.load %arg2[%c0_3, %c0_4] : memref<1x256xf32, #tpu.memory_space<vmem>>, vector<1x256xf32>
    %4 = vector.broadcast %3 : vector<1x256xf32> to vector<128x256xf32>
    %5 = arith.addf %2, %4 : vector<128x256xf32>
    %c0_5 = arith.constant 0 : index
    %c0_6 = arith.constant 0 : index
    %6 = vector.load %arg12[%c0_5, %c0_6] : memref<128x256xf32, #tpu.memory_space<vmem>>, vector<128x256xf32>
    tpu.vector_store %arg12[%c0_5, %c0_6], %5 {strides = array<i32>} : memref<128x256xf32, #tpu.memory_space<vmem>>, vector<128x256xf32>,
    %cst_7 = arith.constant 0.000000e+00 : f32
    %7 = vector.broadcast %cst_7 : f32 to vector<16x64xf32>
    %cst_8 = arith.constant 0.000000e+00 : f32
    %8 = vector.broadcast %cst_8 : f32 to vector<16x64xf32>
    %9 = arith.truncf %7 : vector<16x64xf32> to vector<16x64xbf16>
    %c0_9 = arith.constant 0 : index
    %c0_10 = arith.constant 0 : index
    %10 = vector.load %arg3[%c0_9, %c0_10] : memref<64x256xbf16, #tpu.memory_space<vmem>>, vector<64x256xbf16>
    %cst_11 = arith.constant dense<0.000000e+00> : vector<16x256xf32>
    %11 = tpu.matmul %9, %10, %cst_11 {dimension_numbers = #tpu.dot_dimension_numbers<[1], [0], [0], [1], [0, 0, 1, 1], [], []>} : vector<16x64xbf16>, vector<64x256xbf16>, vector<16x256xf32> -> vector<16x256xf32>
    %c0_12 = arith.constant 0 : index
    %c0_13 = arith.constant 0 : index
    %12 = vector.load %arg12[%c0_12, %c0_13] : memref<128x256xf32, #tpu.memory_space<vmem>>, vector<16x256xf32>
    %13 = arith.addf %11, %12 : vector<16x256xf32>
    %14 = vector.extract_strided_slice %13 {offsets = [0, 0], sizes = [16, 192], strides = [1, 1]} : vector<16x256xf32> to vector<16x192xf32>
    %15 = arith.negf %14 : vector<16x192xf32>
    %16 = math.exp %15 : vector<16x192xf32>
    %cst_14 = arith.constant 1.000000e+00 : f32
    %17 = vector.broadcast %cst_14 : f32 to vector<16x192xf32>
    %18 = arith.addf %17, %16 : vector<16x192xf32>
    %19 = arith.divf %17, %18 : vector<16x192xf32>
    %20 = vector.extract_strided_slice %13 {offsets = [0, 192], sizes = [16, 64], strides = [1, 1]} : vector<16x256xf32> to vector<16x64xf32>
    %21 = math.tanh %20 : vector<16x64xf32>
    %22 = vector.extract_strided_slice %19 {offsets = [0, 0], sizes = [16, 64], strides = [1, 1]} : vector<16x192xf32> to vector<16x64xf32>
    %23 = vector.extract_strided_slice %19 {offsets = [0, 64], sizes = [16, 64], strides = [1, 1]} : vector<16x192xf32> to vector<16x64xf32>
    %24 = vector.extract_strided_slice %19 {offsets = [0, 128], sizes = [16, 64], strides = [1, 1]} : vector<16x192xf32> to vector<16x64xf32>
    %25 = arith.mulf %23, %8 : vector<16x64xf32>
    %26 = arith.mulf %22, %21 : vector<16x64xf32>
    %27 = arith.addf %25, %26 : vector<16x64xf32>
    %28 = math.tanh %27 : vector<16x64xf32>
    %29 = arith.mulf %24, %28 : vector<16x64xf32>
    %30 = arith.truncf %29 : vector<16x64xf32> to vector<16x64xbf16>
    %31 = vector.extract_strided_slice %30 {offsets = [0, 0], sizes = [16, 32], strides = [1, 1]} : vector<16x64xbf16> to vector<16x32xbf16>
    %c0_15 = arith.constant 0 : index
    %c0_16 = arith.constant 0 : index
    %32 = vector.load %arg13[%c0_15, %c0_16] : memref<128x64xbf16, #tpu.memory_space<vmem>>, vector<16x32xbf16>
    tpu.vector_store %arg13[%c0_15, %c0_16], %31 {strides = array<i32>} : memref<128x64xbf16, #tpu.memory_space<vmem>>, vector<16x32xbf16>,
    %33 = vector.extract_strided_slice %30 {offsets = [0, 32], sizes = [16, 32], strides = [1, 1]} : vector<16x64xbf16> to vector<16x32xbf16>
    %c112 = arith.constant 112 : index
    %c32 = arith.constant 32 : index
    %34 = vector.load %arg13[%c112, %c32] : memref<128x64xbf16, #tpu.memory_space<vmem>>, vector<16x32xbf16>
    tpu.vector_store %arg13[%c112, %c32], %33 {strides = array<i32>} : memref<128x64xbf16, #tpu.memory_space<vmem>>, vector<16x32xbf16>,
    %35 = arith.truncf %29 : vector<16x64xf32> to vector<16x64xbf16>
    %c0_17 = arith.constant 0 : index
    %c0_18 = arith.constant 0 : index
    %36 = vector.load %arg3[%c0_17, %c0_18] : memref<64x256xbf16, #tpu.memory_space<vmem>>, vector<64x256xbf16>
    %cst_19 = arith.constant dense<0.000000e+00> : vector<16x256xf32>
    %37 = tpu.matmul %35, %36, %cst_19 {dimension_numbers = #tpu.dot_dimension_numbers<[1], [0], [0], [1], [0, 0, 1, 1], [], []>} : vector<16x64xbf16>, vector<64x256xbf16>, vector<16x256xf32> -> vector<16x256xf32>
    %c16 = arith.constant 16 : index
    %c0_20 = arith.constant 0 : index
    %38 = vector.load %arg12[%c16, %c0_20] : memref<128x256xf32, #tpu.memory_space<vmem>>, vector<16x256xf32>
    %39 = arith.addf %37, %38 : vector<16x256xf32>
    %40 = vector.extract_strided_slice %39 {offsets = [0, 0], sizes = [16, 192], strides = [1, 1]} : vector<16x256xf32> to vector<16x192xf32>
    %41 = arith.negf %40 : vector<16x192xf32>
    %42 = math.exp %41 : vector<16x192xf32>
    %cst_21 = arith.constant 1.000000e+00 : f32
    %43 = vector.broadcast %cst_21 : f32 to vector<16x192xf32>
    %44 = arith.addf %43, %42 : vector<16x192xf32>
    %45 = arith.divf %43, %44 : vector<16x192xf32>
    %46 = vector.extract_strided_slice %39 {offsets = [0, 192], sizes = [16, 64], strides = [1, 1]} : vector<16x256xf32> to vector<16x64xf32>
    %47 = math.tanh %46 : vector<16x64xf32>
    %48 = vector.extract_strided_slice %45 {offsets = [0, 0], sizes = [16, 64], strides = [1, 1]} : vector<16x192xf32> to vector<16x64xf32>
    %49 = vector.extract_strided_slice %45 {offsets = [0, 64], sizes = [16, 64], strides = [1, 1]} : vector<16x192xf32> to vector<16x64xf32>
    %50 = vector.extract_strided_slice %45 {offsets = [0, 128], sizes = [16, 64], strides = [1, 1]} : vector<16x192xf32> to vector<16x64xf32>
    %51 = arith.mulf %49, %27 : vector<16x64xf32>
    %52 = arith.mulf %48, %47 : vector<16x64xf32>
    %53 = arith.addf %51, %52 : vector<16x64xf32>
    %54 = math.tanh %53 : vector<16x64xf32>
    %55 = arith.mulf %50, %54 : vector<16x64xf32>
    %56 = arith.truncf %55 : vector<16x64xf32> to vector<16x64xbf16>
    %57 = vector.extract_strided_slice %56 {offsets = [0, 0], sizes = [16, 32], strides = [1, 1]} : vector<16x64xbf16> to vector<16x32xbf16>
    %c16_22 = arith.constant 16 : index
    %c0_23 = arith.constant 0 : index
    %58 = vector.load %arg13[%c16_22, %c0_23] : memref<128x64xbf16, #tpu.memory_space<vmem>>, vector<16x32xbf16>
    tpu.vector_store %arg13[%c16_22, %c0_23], %57 {strides = array<i32>} : memref<128x64xbf16, #tpu.memory_space<vmem>>, vector<16x32xbf16>,
    %59 = vector.extract_strided_slice %56 {offsets = [0, 32], sizes = [16, 32], strides = [1, 1]} : vector<16x64xbf16> to vector<16x32xbf16>
    %c96 = arith.constant 96 : index
    %c32_24 = arith.constant 32 : index
    %60 = vector.load %arg13[%c96, %c32_24] : memref<128x64xbf16, #tpu.memory_space<vmem>>, vector<16x32xbf16>
    tpu.vector_store %arg13[%c96, %c32_24], %59 {strides = array<i32>} : memref<128x64xbf16, #tpu.memory_space<vmem>>, vector<16x32xbf16>,
    %61 = arith.truncf %55 : vector<16x64xf32> to vector<16x64xbf16>
    %c0_25 = arith.constant 0 : index
    %c0_26 = arith.constant 0 : index
    %62 = vector.load %arg3[%c0_25, %c0_26] : memref<64x256xbf16, #tpu.memory_space<vmem>>, vector<64x256xbf16>
    %cst_27 = arith.constant dense<0.000000e+00> : vector<16x256xf32>
    %63 = tpu.matmul %61, %62, %cst_27 {dimension_numbers = #tpu.dot_dimension_numbers<[1], [0], [0], [1], [0, 0, 1, 1], [], []>} : vector<16x64xbf16>, vector<64x256xbf16>, vector<16x256xf32> -> vector<16x256xf32>
    %c32_28 = arith.constant 32 : index
    %c0_29 = arith.constant 0 : index
    %64 = vector.load %arg12[%c32_28, %c0_29] : memref<128x256xf32, #tpu.memory_space<vmem>>, vector<16x256xf32>
    %65 = arith.addf %63, %64 : vector<16x256xf32>
    %66 = vector.extract_strided_slice %65 {offsets = [0, 0], sizes = [16, 192], strides = [1, 1]} : vector<16x256xf32> to vector<16x192xf32>
    %67 = arith.negf %66 : vector<16x192xf32>
    %68 = math.exp %67 : vector<16x192xf32>
    %cst_30 = arith.constant 1.000000e+00 : f32
    %69 = vector.broadcast %cst_30 : f32 to vector<16x192xf32>
    %70 = arith.addf %69, %68 : vector<16x192xf32>
    %71 = arith.divf %69, %70 : vector<16x192xf32>
    %72 = vector.extract_strided_slice %65 {offsets = [0, 192], sizes = [16, 64], strides = [1, 1]} : vector<16x256xf32> to vector<16x64xf32>
    %73 = math.tanh %72 : vector<16x64xf32>
    %74 = vector.extract_strided_slice %71 {offsets = [0, 0], sizes = [16, 64], strides = [1, 1]} : vector<16x192xf32> to vector<16x64xf32>
    %75 = vector.extract_strided_slice %71 {offsets = [0, 64], sizes = [16, 64], strides = [1, 1]} : vector<16x192xf32> to vector<16x64xf32>
    %76 = vector.extract_strided_slice %71 {offsets = [0, 128], sizes = [16, 64], strides = [1, 1]} : vector<16x192xf32> to vector<16x64xf32>
    %77 = arith.mulf %75, %53 : vector<16x64xf32>
    %78 = arith.mulf %74, %73 : vector<16x64xf32>
    %79 = arith.addf %77, %78 : vector<16x64xf32>
    %80 = math.tanh %79 : vector<16x64xf32>
    %81 = arith.mulf %76, %80 : vector<16x64xf32>
    %82 = arith.truncf %81 : vector<16x64xf32> to vector<16x64xbf16>
    %83 = vector.extract_strided_slice %82 {offsets = [0, 0], sizes = [16, 32], strides = [1, 1]} : vector<16x64xbf16> to vector<16x32xbf16>
    %c32_31 = arith.constant 32 : index
    %c0_32 = arith.constant 0 : index
    %84 = vector.load %arg13[%c32_31, %c0_32] : memref<128x64xbf16, #tpu.memory_space<vmem>>, vector<16x32xbf16>
    tpu.vector_store %arg13[%c32_31, %c0_32], %83 {strides = array<i32>} : memref<128x64xbf16, #tpu.memory_space<vmem>>, vector<16x32xbf16>,
    %85 = vector.extract_strided_slice %82 {offsets = [0, 32], sizes = [16, 32], strides = [1, 1]} : vector<16x64xbf16> to vector<16x32xbf16>
    %c80 = arith.constant 80 : index
    %c32_33 = arith.constant 32 : index
    %86 = vector.load %arg13[%c80, %c32_33] : memref<128x64xbf16, #tpu.memory_space<vmem>>, vector<16x32xbf16>
    tpu.vector_store %arg13[%c80, %c32_33], %85 {strides = array<i32>} : memref<128x64xbf16, #tpu.memory_space<vmem>>, vector<16x32xbf16>,
    %87 = arith.truncf %81 : vector<16x64xf32> to vector<16x64xbf16>
    %c0_34 = arith.constant 0 : index
    %c0_35 = arith.constant 0 : index
    %88 = vector.load %arg3[%c0_34, %c0_35] : memref<64x256xbf16, #tpu.memory_space<vmem>>, vector<64x256xbf16>
    %cst_36 = arith.constant dense<0.000000e+00> : vector<16x256xf32>
    %89 = tpu.matmul %87, %88, %cst_36 {dimension_numbers = #tpu.dot_dimension_numbers<[1], [0], [0], [1], [0, 0, 1, 1], [], []>} : vector<16x64xbf16>, vector<64x256xbf16>, vector<16x256xf32> -> vector<16x256xf32>
    %c48 = arith.constant 48 : index
    %c0_37 = arith.constant 0 : index
    %90 = vector.load %arg12[%c48, %c0_37] : memref<128x256xf32, #tpu.memory_space<vmem>>, vector<16x256xf32>
    %91 = arith.addf %89, %90 : vector<16x256xf32>
    %92 = vector.extract_strided_slice %91 {offsets = [0, 0], sizes = [16, 192], strides = [1, 1]} : vector<16x256xf32> to vector<16x192xf32>
    %93 = arith.negf %92 : vector<16x192xf32>
    %94 = math.exp %93 : vector<16x192xf32>
    %cst_38 = arith.constant 1.000000e+00 : f32
    %95 = vector.broadcast %cst_38 : f32 to vector<16x192xf32>
    %96 = arith.addf %95, %94 : vector<16x192xf32>
    %97 = arith.divf %95, %96 : vector<16x192xf32>
    %98 = vector.extract_strided_slice %91 {offsets = [0, 192], sizes = [16, 64], strides = [1, 1]} : vector<16x256xf32> to vector<16x64xf32>
    %99 = math.tanh %98 : vector<16x64xf32>
    %100 = vector.extract_strided_slice %97 {offsets = [0, 0], sizes = [16, 64], strides = [1, 1]} : vector<16x192xf32> to vector<16x64xf32>
    %101 = vector.extract_strided_slice %97 {offsets = [0, 64], sizes = [16, 64], strides = [1, 1]} : vector<16x192xf32> to vector<16x64xf32>
    %102 = vector.extract_strided_slice %97 {offsets = [0, 128], sizes = [16, 64], strides = [1, 1]} : vector<16x192xf32> to vector<16x64xf32>
    %103 = arith.mulf %101, %79 : vector<16x64xf32>
    %104 = arith.mulf %100, %99 : vector<16x64xf32>
    %105 = arith.addf %103, %104 : vector<16x64xf32>
    %106 = math.tanh %105 : vector<16x64xf32>
    %107 = arith.mulf %102, %106 : vector<16x64xf32>
    %108 = arith.truncf %107 : vector<16x64xf32> to vector<16x64xbf16>
    %109 = vector.extract_strided_slice %108 {offsets = [0, 0], sizes = [16, 32], strides = [1, 1]} : vector<16x64xbf16> to vector<16x32xbf16>
    %c48_39 = arith.constant 48 : index
    %c0_40 = arith.constant 0 : index
    %110 = vector.load %arg13[%c48_39, %c0_40] : memref<128x64xbf16, #tpu.memory_space<vmem>>, vector<16x32xbf16>
    tpu.vector_store %arg13[%c48_39, %c0_40], %109 {strides = array<i32>} : memref<128x64xbf16, #tpu.memory_space<vmem>>, vector<16x32xbf16>,
    %111 = vector.extract_strided_slice %108 {offsets = [0, 32], sizes = [16, 32], strides = [1, 1]} : vector<16x64xbf16> to vector<16x32xbf16>
    %c64 = arith.constant 64 : index
    %c32_41 = arith.constant 32 : index
    %112 = vector.load %arg13[%c64, %c32_41] : memref<128x64xbf16, #tpu.memory_space<vmem>>, vector<16x32xbf16>
    tpu.vector_store %arg13[%c64, %c32_41], %111 {strides = array<i32>} : memref<128x64xbf16, #tpu.memory_space<vmem>>, vector<16x32xbf16>,
    %113 = arith.truncf %107 : vector<16x64xf32> to vector<16x64xbf16>
    %c0_42 = arith.constant 0 : index
    %c0_43 = arith.constant 0 : index
    %114 = vector.load %arg3[%c0_42, %c0_43] : memref<64x256xbf16, #tpu.memory_space<vmem>>, vector<64x256xbf16>
    %cst_44 = arith.constant dense<0.000000e+00> : vector<16x256xf32>
    %115 = tpu.matmul %113, %114, %cst_44 {dimension_numbers = #tpu.dot_dimension_numbers<[1], [0], [0], [1], [0, 0, 1, 1], [], []>} : vector<16x64xbf16>, vector<64x256xbf16>, vector<16x256xf32> -> vector<16x256xf32>
    %c64_45 = arith.constant 64 : index
    %c0_46 = arith.constant 0 : index
    %116 = vector.load %arg12[%c64_45, %c0_46] : memref<128x256xf32, #tpu.memory_space<vmem>>, vector<16x256xf32>
    %117 = arith.addf %115, %116 : vector<16x256xf32>
    %118 = vector.extract_strided_slice %117 {offsets = [0, 0], sizes = [16, 192], strides = [1, 1]} : vector<16x256xf32> to vector<16x192xf32>
    %119 = arith.negf %118 : vector<16x192xf32>
    %120 = math.exp %119 : vector<16x192xf32>
    %cst_47 = arith.constant 1.000000e+00 : f32
    %121 = vector.broadcast %cst_47 : f32 to vector<16x192xf32>
    %122 = arith.addf %121, %120 : vector<16x192xf32>
    %123 = arith.divf %121, %122 : vector<16x192xf32>
    %124 = vector.extract_strided_slice %117 {offsets = [0, 192], sizes = [16, 64], strides = [1, 1]} : vector<16x256xf32> to vector<16x64xf32>
    %125 = math.tanh %124 : vector<16x64xf32>
    %126 = vector.extract_strided_slice %123 {offsets = [0, 0], sizes = [16, 64], strides = [1, 1]} : vector<16x192xf32> to vector<16x64xf32>
    %127 = vector.extract_strided_slice %123 {offsets = [0, 64], sizes = [16, 64], strides = [1, 1]} : vector<16x192xf32> to vector<16x64xf32>
    %128 = vector.extract_strided_slice %123 {offsets = [0, 128], sizes = [16, 64], strides = [1, 1]} : vector<16x192xf32> to vector<16x64xf32>
    %129 = arith.mulf %127, %105 : vector<16x64xf32>
    %130 = arith.mulf %126, %125 : vector<16x64xf32>
    %131 = arith.addf %129, %130 : vector<16x64xf32>
    %132 = math.tanh %131 : vector<16x64xf32>
    %133 = arith.mulf %128, %132 : vector<16x64xf32>
    %134 = arith.truncf %133 : vector<16x64xf32> to vector<16x64xbf16>
    %135 = vector.extract_strided_slice %134 {offsets = [0, 0], sizes = [16, 32], strides = [1, 1]} : vector<16x64xbf16> to vector<16x32xbf16>
    %c64_48 = arith.constant 64 : index
    %c0_49 = arith.constant 0 : index
    %136 = vector.load %arg13[%c64_48, %c0_49] : memref<128x64xbf16, #tpu.memory_space<vmem>>, vector<16x32xbf16>
    tpu.vector_store %arg13[%c64_48, %c0_49], %135 {strides = array<i32>} : memref<128x64xbf16, #tpu.memory_space<vmem>>, vector<16x32xbf16>,
    %137 = vector.extract_strided_slice %134 {offsets = [0, 32], sizes = [16, 32], strides = [1, 1]} : vector<16x64xbf16> to vector<16x32xbf16>
    %c48_50 = arith.constant 48 : index
    %c32_51 = arith.constant 32 : index
    %138 = vector.load %arg13[%c48_50, %c32_51] : memref<128x64xbf16, #tpu.memory_space<vmem>>, vector<16x32xbf16>
    tpu.vector_store %arg13[%c48_50, %c32_51], %137 {strides = array<i32>} : memref<128x64xbf16, #tpu.memory_space<vmem>>, vector<16x32xbf16>,
    %139 = arith.truncf %133 : vector<16x64xf32> to vector<16x64xbf16>
    %c0_52 = arith.constant 0 : index
    %c0_53 = arith.constant 0 : index
    %140 = vector.load %arg3[%c0_52, %c0_53] : memref<64x256xbf16, #tpu.memory_space<vmem>>, vector<64x256xbf16>
    %cst_54 = arith.constant dense<0.000000e+00> : vector<16x256xf32>
    %141 = tpu.matmul %139, %140, %cst_54 {dimension_numbers = #tpu.dot_dimension_numbers<[1], [0], [0], [1], [0, 0, 1, 1], [], []>} : vector<16x64xbf16>, vector<64x256xbf16>, vector<16x256xf32> -> vector<16x256xf32>
    %c80_55 = arith.constant 80 : index
    %c0_56 = arith.constant 0 : index
    %142 = vector.load %arg12[%c80_55, %c0_56] : memref<128x256xf32, #tpu.memory_space<vmem>>, vector<16x256xf32>
    %143 = arith.addf %141, %142 : vector<16x256xf32>
    %144 = vector.extract_strided_slice %143 {offsets = [0, 0], sizes = [16, 192], strides = [1, 1]} : vector<16x256xf32> to vector<16x192xf32>
    %145 = arith.negf %144 : vector<16x192xf32>
    %146 = math.exp %145 : vector<16x192xf32>
    %cst_57 = arith.constant 1.000000e+00 : f32
    %147 = vector.broadcast %cst_57 : f32 to vector<16x192xf32>
    %148 = arith.addf %147, %146 : vector<16x192xf32>
    %149 = arith.divf %147, %148 : vector<16x192xf32>
    %150 = vector.extract_strided_slice %143 {offsets = [0, 192], sizes = [16, 64], strides = [1, 1]} : vector<16x256xf32> to vector<16x64xf32>
    %151 = math.tanh %150 : vector<16x64xf32>
    %152 = vector.extract_strided_slice %149 {offsets = [0, 0], sizes = [16, 64], strides = [1, 1]} : vector<16x192xf32> to vector<16x64xf32>
    %153 = vector.extract_strided_slice %149 {offsets = [0, 64], sizes = [16, 64], strides = [1, 1]} : vector<16x192xf32> to vector<16x64xf32>
    %154 = vector.extract_strided_slice %149 {offsets = [0, 128], sizes = [16, 64], strides = [1, 1]} : vector<16x192xf32> to vector<16x64xf32>
    %155 = arith.mulf %153, %131 : vector<16x64xf32>
    %156 = arith.mulf %152, %151 : vector<16x64xf32>
    %157 = arith.addf %155, %156 : vector<16x64xf32>
    %158 = math.tanh %157 : vector<16x64xf32>
    %159 = arith.mulf %154, %158 : vector<16x64xf32>
    %160 = arith.truncf %159 : vector<16x64xf32> to vector<16x64xbf16>
    %161 = vector.extract_strided_slice %160 {offsets = [0, 0], sizes = [16, 32], strides = [1, 1]} : vector<16x64xbf16> to vector<16x32xbf16>
    %c80_58 = arith.constant 80 : index
    %c0_59 = arith.constant 0 : index
    %162 = vector.load %arg13[%c80_58, %c0_59] : memref<128x64xbf16, #tpu.memory_space<vmem>>, vector<16x32xbf16>
    tpu.vector_store %arg13[%c80_58, %c0_59], %161 {strides = array<i32>} : memref<128x64xbf16, #tpu.memory_space<vmem>>, vector<16x32xbf16>,
    %163 = vector.extract_strided_slice %160 {offsets = [0, 32], sizes = [16, 32], strides = [1, 1]} : vector<16x64xbf16> to vector<16x32xbf16>
    %c32_60 = arith.constant 32 : index
    %c32_61 = arith.constant 32 : index
    %164 = vector.load %arg13[%c32_60, %c32_61] : memref<128x64xbf16, #tpu.memory_space<vmem>>, vector<16x32xbf16>
    tpu.vector_store %arg13[%c32_60, %c32_61], %163 {strides = array<i32>} : memref<128x64xbf16, #tpu.memory_space<vmem>>, vector<16x32xbf16>,
    %165 = arith.truncf %159 : vector<16x64xf32> to vector<16x64xbf16>
    %c0_62 = arith.constant 0 : index
    %c0_63 = arith.constant 0 : index
    %166 = vector.load %arg3[%c0_62, %c0_63] : memref<64x256xbf16, #tpu.memory_space<vmem>>, vector<64x256xbf16>
    %cst_64 = arith.constant dense<0.000000e+00> : vector<16x256xf32>
    %167 = tpu.matmul %165, %166, %cst_64 {dimension_numbers = #tpu.dot_dimension_numbers<[1], [0], [0], [1], [0, 0, 1, 1], [], []>} : vector<16x64xbf16>, vector<64x256xbf16>, vector<16x256xf32> -> vector<16x256xf32>
    %c96_65 = arith.constant 96 : index
    %c0_66 = arith.constant 0 : index
    %168 = vector.load %arg12[%c96_65, %c0_66] : memref<128x256xf32, #tpu.memory_space<vmem>>, vector<16x256xf32>
    %169 = arith.addf %167, %168 : vector<16x256xf32>
    %170 = vector.extract_strided_slice %169 {offsets = [0, 0], sizes = [16, 192], strides = [1, 1]} : vector<16x256xf32> to vector<16x192xf32>
    %171 = arith.negf %170 : vector<16x192xf32>
    %172 = math.exp %171 : vector<16x192xf32>
    %cst_67 = arith.constant 1.000000e+00 : f32
    %173 = vector.broadcast %cst_67 : f32 to vector<16x192xf32>
    %174 = arith.addf %173, %172 : vector<16x192xf32>
    %175 = arith.divf %173, %174 : vector<16x192xf32>
    %176 = vector.extract_strided_slice %169 {offsets = [0, 192], sizes = [16, 64], strides = [1, 1]} : vector<16x256xf32> to vector<16x64xf32>
    %177 = math.tanh %176 : vector<16x64xf32>
    %178 = vector.extract_strided_slice %175 {offsets = [0, 0], sizes = [16, 64], strides = [1, 1]} : vector<16x192xf32> to vector<16x64xf32>
    %179 = vector.extract_strided_slice %175 {offsets = [0, 64], sizes = [16, 64], strides = [1, 1]} : vector<16x192xf32> to vector<16x64xf32>
    %180 = vector.extract_strided_slice %175 {offsets = [0, 128], sizes = [16, 64], strides = [1, 1]} : vector<16x192xf32> to vector<16x64xf32>
    %181 = arith.mulf %179, %157 : vector<16x64xf32>
    %182 = arith.mulf %178, %177 : vector<16x64xf32>
    %183 = arith.addf %181, %182 : vector<16x64xf32>
    %184 = math.tanh %183 : vector<16x64xf32>
    %185 = arith.mulf %180, %184 : vector<16x64xf32>
    %186 = arith.truncf %185 : vector<16x64xf32> to vector<16x64xbf16>
    %187 = vector.extract_strided_slice %186 {offsets = [0, 0], sizes = [16, 32], strides = [1, 1]} : vector<16x64xbf16> to vector<16x32xbf16>
    %c96_68 = arith.constant 96 : index
    %c0_69 = arith.constant 0 : index
    %188 = vector.load %arg13[%c96_68, %c0_69] : memref<128x64xbf16, #tpu.memory_space<vmem>>, vector<16x32xbf16>
    tpu.vector_store %arg13[%c96_68, %c0_69], %187 {strides = array<i32>} : memref<128x64xbf16, #tpu.memory_space<vmem>>, vector<16x32xbf16>,
    %189 = vector.extract_strided_slice %186 {offsets = [0, 32], sizes = [16, 32], strides = [1, 1]} : vector<16x64xbf16> to vector<16x32xbf16>
    %c16_70 = arith.constant 16 : index
    %c32_71 = arith.constant 32 : index
    %190 = vector.load %arg13[%c16_70, %c32_71] : memref<128x64xbf16, #tpu.memory_space<vmem>>, vector<16x32xbf16>
    tpu.vector_store %arg13[%c16_70, %c32_71], %189 {strides = array<i32>} : memref<128x64xbf16, #tpu.memory_space<vmem>>, vector<16x32xbf16>,
    %191 = arith.truncf %185 : vector<16x64xf32> to vector<16x64xbf16>
    %c0_72 = arith.constant 0 : index
    %c0_73 = arith.constant 0 : index
    %192 = vector.load %arg3[%c0_72, %c0_73] : memref<64x256xbf16, #tpu.memory_space<vmem>>, vector<64x256xbf16>
    %cst_74 = arith.constant dense<0.000000e+00> : vector<16x256xf32>
    %193 = tpu.matmul %191, %192, %cst_74 {dimension_numbers = #tpu.dot_dimension_numbers<[1], [0], [0], [1], [0, 0, 1, 1], [], []>} : vector<16x64xbf16>, vector<64x256xbf16>, vector<16x256xf32> -> vector<16x256xf32>
    %c112_75 = arith.constant 112 : index
    %c0_76 = arith.constant 0 : index
    %194 = vector.load %arg12[%c112_75, %c0_76] : memref<128x256xf32, #tpu.memory_space<vmem>>, vector<16x256xf32>
    %195 = arith.addf %193, %194 : vector<16x256xf32>
    %196 = vector.extract_strided_slice %195 {offsets = [0, 0], sizes = [16, 192], strides = [1, 1]} : vector<16x256xf32> to vector<16x192xf32>
    %197 = arith.negf %196 : vector<16x192xf32>
    %198 = math.exp %197 : vector<16x192xf32>
    %cst_77 = arith.constant 1.000000e+00 : f32
    %199 = vector.broadcast %cst_77 : f32 to vector<16x192xf32>
    %200 = arith.addf %199, %198 : vector<16x192xf32>
    %201 = arith.divf %199, %200 : vector<16x192xf32>
    %202 = vector.extract_strided_slice %195 {offsets = [0, 192], sizes = [16, 64], strides = [1, 1]} : vector<16x256xf32> to vector<16x64xf32>
    %203 = math.tanh %202 : vector<16x64xf32>
    %204 = vector.extract_strided_slice %201 {offsets = [0, 0], sizes = [16, 64], strides = [1, 1]} : vector<16x192xf32> to vector<16x64xf32>
    %205 = vector.extract_strided_slice %201 {offsets = [0, 64], sizes = [16, 64], strides = [1, 1]} : vector<16x192xf32> to vector<16x64xf32>
    %206 = vector.extract_strided_slice %201 {offsets = [0, 128], sizes = [16, 64], strides = [1, 1]} : vector<16x192xf32> to vector<16x64xf32>
    %207 = arith.mulf %205, %183 : vector<16x64xf32>
    %208 = arith.mulf %204, %203 : vector<16x64xf32>
    %209 = arith.addf %207, %208 : vector<16x64xf32>
    %210 = math.tanh %209 : vector<16x64xf32>
    %211 = arith.mulf %206, %210 : vector<16x64xf32>
    %212 = arith.truncf %211 : vector<16x64xf32> to vector<16x64xbf16>
    %213 = vector.extract_strided_slice %212 {offsets = [0, 0], sizes = [16, 32], strides = [1, 1]} : vector<16x64xbf16> to vector<16x32xbf16>
    %c112_78 = arith.constant 112 : index
    %c0_79 = arith.constant 0 : index
    %214 = vector.load %arg13[%c112_78, %c0_79] : memref<128x64xbf16, #tpu.memory_space<vmem>>, vector<16x32xbf16>
    tpu.vector_store %arg13[%c112_78, %c0_79], %213 {strides = array<i32>} : memref<128x64xbf16, #tpu.memory_space<vmem>>, vector<16x32xbf16>,
    %215 = vector.extract_strided_slice %212 {offsets = [0, 32], sizes = [16, 32], strides = [1, 1]} : vector<16x64xbf16> to vector<16x32xbf16>
    %c0_80 = arith.constant 0 : index
    %c32_81 = arith.constant 32 : index
    %216 = vector.load %arg13[%c0_80, %c32_81] : memref<128x64xbf16, #tpu.memory_space<vmem>>, vector<16x32xbf16>
    tpu.vector_store %arg13[%c0_80, %c32_81], %215 {strides = array<i32>} : memref<128x64xbf16, #tpu.memory_space<vmem>>, vector<16x32xbf16>,
    %c0_82 = arith.constant 0 : index
    %c0_83 = arith.constant 0 : index
    %217 = vector.load %arg13[%c0_82, %c0_83] : memref<128x64xbf16, #tpu.memory_space<vmem>>, vector<128x64xbf16>
    %c0_84 = arith.constant 0 : index
    %c0_85 = arith.constant 0 : index
    %218 = vector.load %arg4[%c0_84, %c0_85] : memref<64x128xbf16, #tpu.memory_space<vmem>>, vector<64x128xbf16>
    %cst_86 = arith.constant dense<0.000000e+00> : vector<128x128xf32>
    %219 = tpu.matmul %217, %218, %cst_86 {dimension_numbers = #tpu.dot_dimension_numbers<[1], [0], [0], [1], [0, 0, 1, 1], [], []>} : vector<128x64xbf16>, vector<64x128xbf16>, vector<128x128xf32> -> vector<128x128xf32>
    %c0_87 = arith.constant 0 : index
    %c0_88 = arith.constant 0 : index
    %220 = vector.load %arg5[%c0_87, %c0_88] : memref<1x128xf32, #tpu.memory_space<vmem>>, vector<1x128xf32>
    %221 = vector.broadcast %220 : vector<1x128xf32> to vector<128x128xf32>
    %222 = arith.addf %219, %221 : vector<128x128xf32>
    %c0_89 = arith.constant 0 : index
    %c0_90 = arith.constant 0 : index
    %223 = vector.load %arg14[%c0_89, %c0_90] : memref<128x128xf32, #tpu.memory_space<vmem>>, vector<128x128xf32>
    tpu.vector_store %arg14[%c0_89, %c0_90], %222 {strides = array<i32>} : memref<128x128xf32, #tpu.memory_space<vmem>>, vector<128x128xf32>,
    %cst_91 = arith.constant 0.000000e+00 : f32
    %224 = vector.broadcast %cst_91 : f32 to vector<16x32xf32>
    %cst_92 = arith.constant 0.000000e+00 : f32
    %225 = vector.broadcast %cst_92 : f32 to vector<16x32xf32>
    %226 = arith.truncf %224 : vector<16x32xf32> to vector<16x32xbf16>
    %c0_93 = arith.constant 0 : index
    %c0_94 = arith.constant 0 : index
    %227 = vector.load %arg6[%c0_93, %c0_94] : memref<32x128xbf16, #tpu.memory_space<vmem>>, vector<32x128xbf16>
    %cst_95 = arith.constant dense<0.000000e+00> : vector<16x128xf32>
    %228 = tpu.matmul %226, %227, %cst_95 {dimension_numbers = #tpu.dot_dimension_numbers<[1], [0], [0], [1], [0, 0, 1, 1], [], []>} : vector<16x32xbf16>, vector<32x128xbf16>, vector<16x128xf32> -> vector<16x128xf32>
    %c0_96 = arith.constant 0 : index
    %c0_97 = arith.constant 0 : index
    %229 = vector.load %arg14[%c0_96, %c0_97] : memref<128x128xf32, #tpu.memory_space<vmem>>, vector<16x128xf32>
    %230 = arith.addf %228, %229 : vector<16x128xf32>
    %231 = vector.extract_strided_slice %230 {offsets = [0, 0], sizes = [16, 96], strides = [1, 1]} : vector<16x128xf32> to vector<16x96xf32>
    %232 = arith.negf %231 : vector<16x96xf32>
    %233 = math.exp %232 : vector<16x96xf32>
    %cst_98 = arith.constant 1.000000e+00 : f32
    %234 = vector.broadcast %cst_98 : f32 to vector<16x96xf32>
    %235 = arith.addf %234, %233 : vector<16x96xf32>
    %236 = arith.divf %234, %235 : vector<16x96xf32>
    %237 = vector.extract_strided_slice %230 {offsets = [0, 96], sizes = [16, 32], strides = [1, 1]} : vector<16x128xf32> to vector<16x32xf32>
    %238 = math.tanh %237 : vector<16x32xf32>
    %239 = vector.extract_strided_slice %236 {offsets = [0, 0], sizes = [16, 32], strides = [1, 1]} : vector<16x96xf32> to vector<16x32xf32>
    %240 = vector.extract_strided_slice %236 {offsets = [0, 32], sizes = [16, 32], strides = [1, 1]} : vector<16x96xf32> to vector<16x32xf32>
    %241 = vector.extract_strided_slice %236 {offsets = [0, 64], sizes = [16, 32], strides = [1, 1]} : vector<16x96xf32> to vector<16x32xf32>
    %242 = arith.mulf %240, %225 : vector<16x32xf32>
    %243 = arith.mulf %239, %238 : vector<16x32xf32>
    %244 = arith.addf %242, %243 : vector<16x32xf32>
    %245 = math.tanh %244 : vector<16x32xf32>
    %246 = arith.mulf %241, %245 : vector<16x32xf32>
    %247 = arith.truncf %246 : vector<16x32xf32> to vector<16x32xbf16>
    %c0_99 = arith.constant 0 : index
    %c0_100 = arith.constant 0 : index
    %248 = vector.load %arg6[%c0_99, %c0_100] : memref<32x128xbf16, #tpu.memory_space<vmem>>, vector<32x128xbf16>
    %cst_101 = arith.constant dense<0.000000e+00> : vector<16x128xf32>
    %249 = tpu.matmul %247, %248, %cst_101 {dimension_numbers = #tpu.dot_dimension_numbers<[1], [0], [0], [1], [0, 0, 1, 1], [], []>} : vector<16x32xbf16>, vector<32x128xbf16>, vector<16x128xf32> -> vector<16x128xf32>
    %c16_102 = arith.constant 16 : index
    %c0_103 = arith.constant 0 : index
    %250 = vector.load %arg14[%c16_102, %c0_103] : memref<128x128xf32, #tpu.memory_space<vmem>>, vector<16x128xf32>
    %251 = arith.addf %249, %250 : vector<16x128xf32>
    %252 = vector.extract_strided_slice %251 {offsets = [0, 0], sizes = [16, 96], strides = [1, 1]} : vector<16x128xf32> to vector<16x96xf32>
    %253 = arith.negf %252 : vector<16x96xf32>
    %254 = math.exp %253 : vector<16x96xf32>
    %cst_104 = arith.constant 1.000000e+00 : f32
    %255 = vector.broadcast %cst_104 : f32 to vector<16x96xf32>
    %256 = arith.addf %255, %254 : vector<16x96xf32>
    %257 = arith.divf %255, %256 : vector<16x96xf32>
    %258 = vector.extract_strided_slice %251 {offsets = [0, 96], sizes = [16, 32], strides = [1, 1]} : vector<16x128xf32> to vector<16x32xf32>
    %259 = math.tanh %258 : vector<16x32xf32>
    %260 = vector.extract_strided_slice %257 {offsets = [0, 0], sizes = [16, 32], strides = [1, 1]} : vector<16x96xf32> to vector<16x32xf32>
    %261 = vector.extract_strided_slice %257 {offsets = [0, 32], sizes = [16, 32], strides = [1, 1]} : vector<16x96xf32> to vector<16x32xf32>
    %262 = vector.extract_strided_slice %257 {offsets = [0, 64], sizes = [16, 32], strides = [1, 1]} : vector<16x96xf32> to vector<16x32xf32>
    %263 = arith.mulf %261, %244 : vector<16x32xf32>
    %264 = arith.mulf %260, %259 : vector<16x32xf32>
    %265 = arith.addf %263, %264 : vector<16x32xf32>
    %266 = math.tanh %265 : vector<16x32xf32>
    %267 = arith.mulf %262, %266 : vector<16x32xf32>
    %268 = arith.truncf %267 : vector<16x32xf32> to vector<16x32xbf16>
    %c0_105 = arith.constant 0 : index
    %c0_106 = arith.constant 0 : index
    %269 = vector.load %arg6[%c0_105, %c0_106] : memref<32x128xbf16, #tpu.memory_space<vmem>>, vector<32x128xbf16>
    %cst_107 = arith.constant dense<0.000000e+00> : vector<16x128xf32>
    %270 = tpu.matmul %268, %269, %cst_107 {dimension_numbers = #tpu.dot_dimension_numbers<[1], [0], [0], [1], [0, 0, 1, 1], [], []>} : vector<16x32xbf16>, vector<32x128xbf16>, vector<16x128xf32> -> vector<16x128xf32>
    %c32_108 = arith.constant 32 : index
    %c0_109 = arith.constant 0 : index
    %271 = vector.load %arg14[%c32_108, %c0_109] : memref<128x128xf32, #tpu.memory_space<vmem>>, vector<16x128xf32>
    %272 = arith.addf %270, %271 : vector<16x128xf32>
    %273 = vector.extract_strided_slice %272 {offsets = [0, 0], sizes = [16, 96], strides = [1, 1]} : vector<16x128xf32> to vector<16x96xf32>
    %274 = arith.negf %273 : vector<16x96xf32>
    %275 = math.exp %274 : vector<16x96xf32>
    %cst_110 = arith.constant 1.000000e+00 : f32
    %276 = vector.broadcast %cst_110 : f32 to vector<16x96xf32>
    %277 = arith.addf %276, %275 : vector<16x96xf32>
    %278 = arith.divf %276, %277 : vector<16x96xf32>
    %279 = vector.extract_strided_slice %272 {offsets = [0, 96], sizes = [16, 32], strides = [1, 1]} : vector<16x128xf32> to vector<16x32xf32>
    %280 = math.tanh %279 : vector<16x32xf32>
    %281 = vector.extract_strided_slice %278 {offsets = [0, 0], sizes = [16, 32], strides = [1, 1]} : vector<16x96xf32> to vector<16x32xf32>
    %282 = vector.extract_strided_slice %278 {offsets = [0, 32], sizes = [16, 32], strides = [1, 1]} : vector<16x96xf32> to vector<16x32xf32>
    %283 = vector.extract_strided_slice %278 {offsets = [0, 64], sizes = [16, 32], strides = [1, 1]} : vector<16x96xf32> to vector<16x32xf32>
    %284 = arith.mulf %282, %265 : vector<16x32xf32>
    %285 = arith.mulf %281, %280 : vector<16x32xf32>
    %286 = arith.addf %284, %285 : vector<16x32xf32>
    %287 = math.tanh %286 : vector<16x32xf32>
    %288 = arith.mulf %283, %287 : vector<16x32xf32>
    %289 = arith.truncf %288 : vector<16x32xf32> to vector<16x32xbf16>
    %c0_111 = arith.constant 0 : index
    %c0_112 = arith.constant 0 : index
    %290 = vector.load %arg6[%c0_111, %c0_112] : memref<32x128xbf16, #tpu.memory_space<vmem>>, vector<32x128xbf16>
    %cst_113 = arith.constant dense<0.000000e+00> : vector<16x128xf32>
    %291 = tpu.matmul %289, %290, %cst_113 {dimension_numbers = #tpu.dot_dimension_numbers<[1], [0], [0], [1], [0, 0, 1, 1], [], []>} : vector<16x32xbf16>, vector<32x128xbf16>, vector<16x128xf32> -> vector<16x128xf32>
    %c48_114 = arith.constant 48 : index
    %c0_115 = arith.constant 0 : index
    %292 = vector.load %arg14[%c48_114, %c0_115] : memref<128x128xf32, #tpu.memory_space<vmem>>, vector<16x128xf32>
    %293 = arith.addf %291, %292 : vector<16x128xf32>
    %294 = vector.extract_strided_slice %293 {offsets = [0, 0], sizes = [16, 96], strides = [1, 1]} : vector<16x128xf32> to vector<16x96xf32>
    %295 = arith.negf %294 : vector<16x96xf32>
    %296 = math.exp %295 : vector<16x96xf32>
    %cst_116 = arith.constant 1.000000e+00 : f32
    %297 = vector.broadcast %cst_116 : f32 to vector<16x96xf32>
    %298 = arith.addf %297, %296 : vector<16x96xf32>
    %299 = arith.divf %297, %298 : vector<16x96xf32>
    %300 = vector.extract_strided_slice %293 {offsets = [0, 96], sizes = [16, 32], strides = [1, 1]} : vector<16x128xf32> to vector<16x32xf32>
    %301 = math.tanh %300 : vector<16x32xf32>
    %302 = vector.extract_strided_slice %299 {offsets = [0, 0], sizes = [16, 32], strides = [1, 1]} : vector<16x96xf32> to vector<16x32xf32>
    %303 = vector.extract_strided_slice %299 {offsets = [0, 32], sizes = [16, 32], strides = [1, 1]} : vector<16x96xf32> to vector<16x32xf32>
    %304 = vector.extract_strided_slice %299 {offsets = [0, 64], sizes = [16, 32], strides = [1, 1]} : vector<16x96xf32> to vector<16x32xf32>
    %305 = arith.mulf %303, %286 : vector<16x32xf32>
    %306 = arith.mulf %302, %301 : vector<16x32xf32>
    %307 = arith.addf %305, %306 : vector<16x32xf32>
    %308 = math.tanh %307 : vector<16x32xf32>
    %309 = arith.mulf %304, %308 : vector<16x32xf32>
    %310 = arith.truncf %309 : vector<16x32xf32> to vector<16x32xbf16>
    %c0_117 = arith.constant 0 : index
    %c0_118 = arith.constant 0 : index
    %311 = vector.load %arg6[%c0_117, %c0_118] : memref<32x128xbf16, #tpu.memory_space<vmem>>, vector<32x128xbf16>
    %cst_119 = arith.constant dense<0.000000e+00> : vector<16x128xf32>
    %312 = tpu.matmul %310, %311, %cst_119 {dimension_numbers = #tpu.dot_dimension_numbers<[1], [0], [0], [1], [0, 0, 1, 1], [], []>} : vector<16x32xbf16>, vector<32x128xbf16>, vector<16x128xf32> -> vector<16x128xf32>
    %c64_120 = arith.constant 64 : index
    %c0_121 = arith.constant 0 : index
    %313 = vector.load %arg14[%c64_120, %c0_121] : memref<128x128xf32, #tpu.memory_space<vmem>>, vector<16x128xf32>
    %314 = arith.addf %312, %313 : vector<16x128xf32>
    %315 = vector.extract_strided_slice %314 {offsets = [0, 0], sizes = [16, 96], strides = [1, 1]} : vector<16x128xf32> to vector<16x96xf32>
    %316 = arith.negf %315 : vector<16x96xf32>
    %317 = math.exp %316 : vector<16x96xf32>
    %cst_122 = arith.constant 1.000000e+00 : f32
    %318 = vector.broadcast %cst_122 : f32 to vector<16x96xf32>
    %319 = arith.addf %318, %317 : vector<16x96xf32>
    %320 = arith.divf %318, %319 : vector<16x96xf32>
    %321 = vector.extract_strided_slice %314 {offsets = [0, 96], sizes = [16, 32], strides = [1, 1]} : vector<16x128xf32> to vector<16x32xf32>
    %322 = math.tanh %321 : vector<16x32xf32>
    %323 = vector.extract_strided_slice %320 {offsets = [0, 0], sizes = [16, 32], strides = [1, 1]} : vector<16x96xf32> to vector<16x32xf32>
    %324 = vector.extract_strided_slice %320 {offsets = [0, 32], sizes = [16, 32], strides = [1, 1]} : vector<16x96xf32> to vector<16x32xf32>
    %325 = vector.extract_strided_slice %320 {offsets = [0, 64], sizes = [16, 32], strides = [1, 1]} : vector<16x96xf32> to vector<16x32xf32>
    %326 = arith.mulf %324, %307 : vector<16x32xf32>
    %327 = arith.mulf %323, %322 : vector<16x32xf32>
    %328 = arith.addf %326, %327 : vector<16x32xf32>
    %329 = math.tanh %328 : vector<16x32xf32>
    %330 = arith.mulf %325, %329 : vector<16x32xf32>
    %331 = arith.truncf %330 : vector<16x32xf32> to vector<16x32xbf16>
    %c0_123 = arith.constant 0 : index
    %c0_124 = arith.constant 0 : index
    %332 = vector.load %arg6[%c0_123, %c0_124] : memref<32x128xbf16, #tpu.memory_space<vmem>>, vector<32x128xbf16>
    %cst_125 = arith.constant dense<0.000000e+00> : vector<16x128xf32>
    %333 = tpu.matmul %331, %332, %cst_125 {dimension_numbers = #tpu.dot_dimension_numbers<[1], [0], [0], [1], [0, 0, 1, 1], [], []>} : vector<16x32xbf16>, vector<32x128xbf16>, vector<16x128xf32> -> vector<16x128xf32>
    %c80_126 = arith.constant 80 : index
    %c0_127 = arith.constant 0 : index
    %334 = vector.load %arg14[%c80_126, %c0_127] : memref<128x128xf32, #tpu.memory_space<vmem>>, vector<16x128xf32>
    %335 = arith.addf %333, %334 : vector<16x128xf32>
    %336 = vector.extract_strided_slice %335 {offsets = [0, 0], sizes = [16, 96], strides = [1, 1]} : vector<16x128xf32> to vector<16x96xf32>
    %337 = arith.negf %336 : vector<16x96xf32>
    %338 = math.exp %337 : vector<16x96xf32>
    %cst_128 = arith.constant 1.000000e+00 : f32
    %339 = vector.broadcast %cst_128 : f32 to vector<16x96xf32>
    %340 = arith.addf %339, %338 : vector<16x96xf32>
    %341 = arith.divf %339, %340 : vector<16x96xf32>
    %342 = vector.extract_strided_slice %335 {offsets = [0, 96], sizes = [16, 32], strides = [1, 1]} : vector<16x128xf32> to vector<16x32xf32>
    %343 = math.tanh %342 : vector<16x32xf32>
    %344 = vector.extract_strided_slice %341 {offsets = [0, 0], sizes = [16, 32], strides = [1, 1]} : vector<16x96xf32> to vector<16x32xf32>
    %345 = vector.extract_strided_slice %341 {offsets = [0, 32], sizes = [16, 32], strides = [1, 1]} : vector<16x96xf32> to vector<16x32xf32>
    %346 = vector.extract_strided_slice %341 {offsets = [0, 64], sizes = [16, 32], strides = [1, 1]} : vector<16x96xf32> to vector<16x32xf32>
    %347 = arith.mulf %345, %328 : vector<16x32xf32>
    %348 = arith.mulf %344, %343 : vector<16x32xf32>
    %349 = arith.addf %347, %348 : vector<16x32xf32>
    %350 = math.tanh %349 : vector<16x32xf32>
    %351 = arith.mulf %346, %350 : vector<16x32xf32>
    %352 = arith.truncf %351 : vector<16x32xf32> to vector<16x32xbf16>
    %c0_129 = arith.constant 0 : index
    %c0_130 = arith.constant 0 : index
    %353 = vector.load %arg6[%c0_129, %c0_130] : memref<32x128xbf16, #tpu.memory_space<vmem>>, vector<32x128xbf16>
    %cst_131 = arith.constant dense<0.000000e+00> : vector<16x128xf32>
    %354 = tpu.matmul %352, %353, %cst_131 {dimension_numbers = #tpu.dot_dimension_numbers<[1], [0], [0], [1], [0, 0, 1, 1], [], []>} : vector<16x32xbf16>, vector<32x128xbf16>, vector<16x128xf32> -> vector<16x128xf32>
    %c96_132 = arith.constant 96 : index
    %c0_133 = arith.constant 0 : index
    %355 = vector.load %arg14[%c96_132, %c0_133] : memref<128x128xf32, #tpu.memory_space<vmem>>, vector<16x128xf32>
    %356 = arith.addf %354, %355 : vector<16x128xf32>
    %357 = vector.extract_strided_slice %356 {offsets = [0, 0], sizes = [16, 96], strides = [1, 1]} : vector<16x128xf32> to vector<16x96xf32>
    %358 = arith.negf %357 : vector<16x96xf32>
    %359 = math.exp %358 : vector<16x96xf32>
    %cst_134 = arith.constant 1.000000e+00 : f32
    %360 = vector.broadcast %cst_134 : f32 to vector<16x96xf32>
    %361 = arith.addf %360, %359 : vector<16x96xf32>
    %362 = arith.divf %360, %361 : vector<16x96xf32>
    %363 = vector.extract_strided_slice %356 {offsets = [0, 96], sizes = [16, 32], strides = [1, 1]} : vector<16x128xf32> to vector<16x32xf32>
    %364 = math.tanh %363 : vector<16x32xf32>
    %365 = vector.extract_strided_slice %362 {offsets = [0, 0], sizes = [16, 32], strides = [1, 1]} : vector<16x96xf32> to vector<16x32xf32>
    %366 = vector.extract_strided_slice %362 {offsets = [0, 32], sizes = [16, 32], strides = [1, 1]} : vector<16x96xf32> to vector<16x32xf32>
    %367 = vector.extract_strided_slice %362 {offsets = [0, 64], sizes = [16, 32], strides = [1, 1]} : vector<16x96xf32> to vector<16x32xf32>
    %368 = arith.mulf %366, %349 : vector<16x32xf32>
    %369 = arith.mulf %365, %364 : vector<16x32xf32>
    %370 = arith.addf %368, %369 : vector<16x32xf32>
    %371 = math.tanh %370 : vector<16x32xf32>
    %372 = arith.mulf %367, %371 : vector<16x32xf32>
    %373 = arith.truncf %372 : vector<16x32xf32> to vector<16x32xbf16>
    %c0_135 = arith.constant 0 : index
    %c0_136 = arith.constant 0 : index
    %374 = vector.load %arg6[%c0_135, %c0_136] : memref<32x128xbf16, #tpu.memory_space<vmem>>, vector<32x128xbf16>
    %cst_137 = arith.constant dense<0.000000e+00> : vector<16x128xf32>
    %375 = tpu.matmul %373, %374, %cst_137 {dimension_numbers = #tpu.dot_dimension_numbers<[1], [0], [0], [1], [0, 0, 1, 1], [], []>} : vector<16x32xbf16>, vector<32x128xbf16>, vector<16x128xf32> -> vector<16x128xf32>
    %c112_138 = arith.constant 112 : index
    %c0_139 = arith.constant 0 : index
    %376 = vector.load %arg14[%c112_138, %c0_139] : memref<128x128xf32, #tpu.memory_space<vmem>>, vector<16x128xf32>
    %377 = arith.addf %375, %376 : vector<16x128xf32>
    %378 = vector.extract_strided_slice %377 {offsets = [0, 0], sizes = [16, 96], strides = [1, 1]} : vector<16x128xf32> to vector<16x96xf32>
    %379 = arith.negf %378 : vector<16x96xf32>
    %380 = math.exp %379 : vector<16x96xf32>
    %cst_140 = arith.constant 1.000000e+00 : f32
    %381 = vector.broadcast %cst_140 : f32 to vector<16x96xf32>
    %382 = arith.addf %381, %380 : vector<16x96xf32>
    %383 = arith.divf %381, %382 : vector<16x96xf32>
    %384 = vector.extract_strided_slice %377 {offsets = [0, 96], sizes = [16, 32], strides = [1, 1]} : vector<16x128xf32> to vector<16x32xf32>
    %385 = math.tanh %384 : vector<16x32xf32>
    %386 = vector.extract_strided_slice %383 {offsets = [0, 0], sizes = [16, 32], strides = [1, 1]} : vector<16x96xf32> to vector<16x32xf32>
    %387 = vector.extract_strided_slice %383 {offsets = [0, 32], sizes = [16, 32], strides = [1, 1]} : vector<16x96xf32> to vector<16x32xf32>
    %388 = vector.extract_strided_slice %383 {offsets = [0, 64], sizes = [16, 32], strides = [1, 1]} : vector<16x96xf32> to vector<16x32xf32>
    %389 = arith.mulf %387, %370 : vector<16x32xf32>
    %390 = arith.mulf %386, %385 : vector<16x32xf32>
    %391 = arith.addf %389, %390 : vector<16x32xf32>
    %392 = math.tanh %391 : vector<16x32xf32>
    %393 = arith.mulf %388, %392 : vector<16x32xf32>
    %394 = arith.truncf %393 : vector<16x32xf32> to vector<16x32xbf16>
    %c0_141 = arith.constant 0 : index
    %c0_142 = arith.constant 0 : index
    %395 = vector.load %arg7[%c0_141, %c0_142] : memref<32x32xbf16, #tpu.memory_space<vmem>>, vector<32x32xbf16>
    %cst_143 = arith.constant dense<0.000000e+00> : vector<16x32xf32>
    %396 = tpu.matmul %394, %395, %cst_143 {dimension_numbers = #tpu.dot_dimension_numbers<[1], [0], [0], [1], [0, 0, 1, 1], [], []>} : vector<16x32xbf16>, vector<32x32xbf16>, vector<16x32xf32> -> vector<16x32xf32>
    %c0_144 = arith.constant 0 : index
    %c0_145 = arith.constant 0 : index
    %397 = vector.load %arg8[%c0_144, %c0_145] : memref<1x32xf32, #tpu.memory_space<vmem>>, vector<1x32xf32>
    %398 = vector.broadcast %397 : vector<1x32xf32> to vector<16x32xf32>
    %399 = arith.addf %396, %398 : vector<16x32xf32>
    %cst_146 = arith.constant 0.000000e+00 : f32
    %400 = vector.broadcast %cst_146 : f32 to vector<16x32xf32>
    %401 = arith.maximumf %399, %400 : vector<16x32xf32>
    %402 = arith.truncf %401 : vector<16x32xf32> to vector<16x32xbf16>
    %c0_147 = arith.constant 0 : index
    %c0_148 = arith.constant 0 : index
    %403 = vector.load %arg9[%c0_147, %c0_148] : memref<32x128xbf16, #tpu.memory_space<vmem>>, vector<32x128xbf16>
    %cst_149 = arith.constant dense<0.000000e+00> : vector<16x128xf32>
    %404 = tpu.matmul %402, %403, %cst_149 {dimension_numbers = #tpu.dot_dimension_numbers<[1], [0], [0], [1], [0, 0, 1, 1], [], []>} : vector<16x32xbf16>, vector<32x128xbf16>, vector<16x128xf32> -> vector<16x128xf32>
    %c0_150 = arith.constant 0 : index
    %c0_151 = arith.constant 0 : index
    %405 = vector.load %arg10[%c0_150, %c0_151] : memref<1x128xf32, #tpu.memory_space<vmem>>, vector<1x128xf32>
    %406 = vector.broadcast %405 : vector<1x128xf32> to vector<16x128xf32>
    %407 = arith.addf %404, %406 : vector<16x128xf32>
    %c0_152 = arith.constant 0 : index
    %c0_153 = arith.constant 0 : index
    %408 = vector.load %arg11[%c0_152, %c0_153] : memref<16x128xf32, #tpu.memory_space<vmem>>, vector<16x128xf32>
    tpu.vector_store %arg11[%c0_152, %c0_153], %407 {strides = array<i32>} : memref<16x128xf32, #tpu.memory_space<vmem>>, vector<16x128xf32>,
    return
  }
}

</mosaic_0001>

<llo_original>
// kernel: local_text_bilstm.1
$region0: #{local_text_bilstm.1}
  #allocation0 [shape = 'u32[]', space=smem, size = 0x4, offset = 0x4, fixed_abs, tag = 'smem constant byte address 0x4 - core index']
  #allocation1 [shape = 'u32[144,128]{1,0:T(1,128)}', space=vmem, size = 0x12000, scoped, tag = 'internal scratch']
  #allocation2 [shape = 'f32[128,256]{1,0:T(8,128)}', space=vmem, size = 0x20000, scoped, tag = 'scratch operand']
  #allocation3 [shape = 'bf16[128,64]{1,0:T(16,128)(2,1)}', space=vmem, size = 0x8000, scoped, tag = 'scratch operand']
  #allocation4 [shape = 'f32[128,128]{1,0:T(8,128)}', space=vmem, size = 0x10000, scoped, tag = 'scratch operand']
  %s0 = inlined_call_operand.vmem [shape: bf16[128,64], index: 0, kind: input, shape index: {}]
  %s1 = inlined_call_operand.vmem [shape: bf16[64,256], index: 1, kind: input, shape index: {}]
  %s2 = inlined_call_operand.vmem [shape: f32[1,256], index: 2, kind: input, shape index: {}]
  %s3 = inlined_call_operand.vmem [shape: bf16[64,256], index: 3, kind: input, shape index: {}]
  %s4 = inlined_call_operand.vmem [shape: bf16[64,128], index: 4, kind: input, shape index: {}]
  %s5 = inlined_call_operand.vmem [shape: f32[1,128], index: 5, kind: input, shape index: {}]
  %s6 = inlined_call_operand.vmem [shape: bf16[32,128], index: 6, kind: input, shape index: {}]
  %s7 = inlined_call_operand.vmem [shape: bf16[32,32], index: 7, kind: input, shape index: {}]
  %s8 = inlined_call_operand.vmem [shape: f32[1,32], index: 8, kind: input, shape index: {}]
  %s9 = inlined_call_operand.vmem [shape: bf16[32,128], index: 9, kind: input, shape index: {}]
  %s10 = inlined_call_operand.vmem [shape: f32[1,128], index: 10, kind: input, shape index: {}]
  %s11 = inlined_call_operand.vmem [shape: f32[16,128], index: 11, kind: output, shape index: {}]
  %s12 = sld [smem:[#allocation0]]
  $region54: #{local_text_bilstm.1} parent=0
    _
  %s14 = ssub.s32 1, %s12
  %s15 = scalar_select 0, %s14, %s12
  // Predicated region
  $region2: #{local_text_bilstm.1} parent=0 // pred_check
    _
  $region3: #{local_text_bilstm.1} parent=0 // pred_check_branch
    %17 = sbr.rel (0) target = $region5
  $region4: #{local_text_bilstm.1} parent=0 // pred_region
    _
  $region5: #{local_text_bilstm.1} parent=0 // pred_fallthru
    _
  // Predicated region
  $region6: #{local_text_bilstm.1} parent=0 // pred_check
    _
  $region7: #{local_text_bilstm.1} parent=0 // pred_check_branch
    %19 = sbr.rel (0) target = $region9
  $region8: #{local_text_bilstm.1} parent=0 // pred_region
    _
  $region9: #{local_text_bilstm.1} parent=0 // pred_fallthru
    _
  // Predicated region
  $region10: #{local_text_bilstm.1} parent=0 // pred_check
    _
  $region11: #{local_text_bilstm.1} parent=0 // pred_check_branch
    %21 = sbr.rel (0) target = $region13
  $region12: #{local_text_bilstm.1} parent=0 // pred_region
    _
  $region13: #{local_text_bilstm.1} parent=0 // pred_fallthru
    _
  // Predicated region
  $region14: #{local_text_bilstm.1} parent=0 // pred_check
    _
  $region15: #{local_text_bilstm.1} parent=0 // pred_check_branch
    %23 = sbr.rel (0) target = $region17
  $region16: #{local_text_bilstm.1} parent=0 // pred_region
    _
  $region17: #{local_text_bilstm.1} parent=0 // pred_fallthru
    _
  // Predicated region
  $region18: #{local_text_bilstm.1} parent=0 // pred_check
    _
  $region19: #{local_text_bilstm.1} parent=0 // pred_check_branch
    %25 = sbr.rel (0) target = $region21
  $region20: #{local_text_bilstm.1} parent=0 // pred_region
    _
  $region21: #{local_text_bilstm.1} parent=0 // pred_fallthru
    _
  // Predicated region
  $region22: #{local_text_bilstm.1} parent=0 // pred_check
    _
  $region23: #{local_text_bilstm.1} parent=0 // pred_check_branch
    %27 = sbr.rel (0) target = $region25
  $region24: #{local_text_bilstm.1} parent=0 // pred_region
    _
  $region25: #{local_text_bilstm.1} parent=0 // pred_fallthru
    _
  // Predicated region
  $region26: #{local_text_bilstm.1} parent=0 // pred_check
    _
  $region27: #{local_text_bilstm.1} parent=0 // pred_check_branch
    %29 = sbr.rel (0) target = $region29
  $region28: #{local_text_bilstm.1} parent=0 // pred_region
    _
  $region29: #{local_text_bilstm.1} parent=0 // pred_fallthru
    _
  // Predicated region
  $region30: #{local_text_bilstm.1} parent=0 // pred_check
    _
  $region31: #{local_text_bilstm.1} parent=0 // pred_check_branch
    %31 = sbr.rel (0) target = $region33
  $region32: #{local_text_bilstm.1} parent=0 // pred_region
    _
  $region33: #{local_text_bilstm.1} parent=0 // pred_fallthru
    _
  // Predicated region
  $region34: #{local_text_bilstm.1} parent=0 // pred_check
    _
  $region35: #{local_text_bilstm.1} parent=0 // pred_check_branch
    %33 = sbr.rel (0) target = $region37
  $region36: #{local_text_bilstm.1} parent=0 // pred_region
    _
  $region37: #{local_text_bilstm.1} parent=0 // pred_fallthru
    _
  // Predicated region
  $region38: #{local_text_bilstm.1} parent=0 // pred_check
    _
  $region39: #{local_text_bilstm.1} parent=0 // pred_check_branch
    %35 = sbr.rel (0) target = $region41
  $region40: #{local_text_bilstm.1} parent=0 // pred_region
    _
  $region41: #{local_text_bilstm.1} parent=0 // pred_fallthru
    _
  // Predicated region
  $region42: #{local_text_bilstm.1} parent=0 // pred_check
    _
  $region43: #{local_text_bilstm.1} parent=0 // pred_check_branch
    %37 = sbr.rel (0) target = $region45
  $region44: #{local_text_bilstm.1} parent=0 // pred_region
    _
  $region45: #{local_text_bilstm.1} parent=0 // pred_fallthru
    _
  %v39 = vld [vmem:[%s0] sm:$0xf]
  %v40 = vld [vmem:[%s0 + $0x4] sm:$0xf]
  %v41 = vld [vmem:[%s0 + $0x8] sm:$0xf]
  %v42 = vld [vmem:[%s0 + $0xc] sm:$0xf]
  %v43 = vld [vmem:[%s0 + $0x10] sm:$0xf]
  %v44 = vld [vmem:[%s0 + $0x14] sm:$0xf]
  %v45 = vld [vmem:[%s0 + $0x18] sm:$0xf]
  %v46 = vld [vmem:[%s0 + $0x1c] sm:$0xf]
  %v47 = vld [vmem:[%s0 + $0x20] sm:$0xf]
  %v48 = vld [vmem:[%s0 + $0x24] sm:$0xf]
  %v49 = vld [vmem:[%s0 + $0x28] sm:$0xf]
  %v50 = vld [vmem:[%s0 + $0x2c] sm:$0xf]
  %v51 = vld [vmem:[%s0 + $0x30] sm:$0xf]
  %v52 = vld [vmem:[%s0 + $0x34] sm:$0xf]
  %v53 = vld [vmem:[%s0 + $0x38] sm:$0xf]
  %v54 = vld [vmem:[%s0 + $0x3c] sm:$0xf]
  %v55 = vld [vmem:[%s1] sm:$0xff]
  %v56 = vld [vmem:[%s1 + $0x8] sm:$0xff]
  %v57 = vld [vmem:[%s1 + $0x10] sm:$0xff]
  %v58 = vld [vmem:[%s1 + $0x18] sm:$0xff]
  %v59 = vld [vmem:[%s1 + $0x20] sm:$0xff]
  %v60 = vld [vmem:[%s1 + $0x28] sm:$0xff]
  %v61 = vld [vmem:[%s1 + $0x30] sm:$0xff]
  %v62 = vld [vmem:[%s1 + $0x38] sm:$0xff]
  %v63 = vld [vmem:[%s2] sm:$0x3]
  %v65 = vlaneseq
  %v66 = vshrl.u32 %v65, 7
  %v67 = vsub.s32 0, %v66
  %v68 = vrot.slane %v63, %v67
  %v69 = vlaneseq
  %v70 = vshrl.u32 %v69, 7
  %v71 = vsub.s32 1, %v70
  %v72 = vrot.slane %v63, %v71
  %v91 = vunpack.c.l.b16 %v39
  %v92 = vunpack.c.l.b16 %v40
  %v93 = vunpack.c.l.b16 %v41
  %v94 = vunpack.c.l.b16 %v42
  %v95 = vunpack.c.l.b16 %v43
  %v96 = vunpack.c.l.b16 %v44
  %v97 = vunpack.c.l.b16 %v45
  %v98 = vunpack.c.l.b16 %v46
  %v99 = vunpack.c.l.b16 %v47
  %v100 = vunpack.c.l.b16 %v48
  %v101 = vunpack.c.l.b16 %v49
  %v102 = vunpack.c.l.b16 %v50
  %v103 = vunpack.c.l.b16 %v51
  %v104 = vunpack.c.l.b16 %v52
  %v105 = vunpack.c.l.b16 %v53
  %v106 = vunpack.c.l.b16 %v54
  %v107 = vpack.c.b16 %v92, %v91
  %v108 = vpack.c.b16 %v94, %v93
  %v109 = vpack.c.b16 %v96, %v95
  %v110 = vpack.c.b16 %v98, %v97
  %v111 = vpack.c.b16 %v100, %v99
  %v112 = vpack.c.b16 %v102, %v101
  %v113 = vpack.c.b16 %v104, %v103
  %v114 = vpack.c.b16 %v106, %v105
  %v123 = vunpack.c.l.b16 %v55
  %v124 = vunpack.c.h.b16 %v55
  %v125 = vunpack.c.l.b16 %v56
  %v126 = vunpack.c.h.b16 %v56
  %v127 = vunpack.c.l.b16 %v57
  %v128 = vunpack.c.h.b16 %v57
  %v129 = vunpack.c.l.b16 %v58
  %v130 = vunpack.c.h.b16 %v58
  %v131 = vunpack.c.l.b16 %v59
  %v132 = vunpack.c.h.b16 %v59
  %v133 = vunpack.c.l.b16 %v60
  %v134 = vunpack.c.h.b16 %v60
  %v135 = vunpack.c.l.b16 %v61
  %v136 = vunpack.c.h.b16 %v61
  %v137 = vunpack.c.l.b16 %v62
  %v138 = vunpack.c.h.b16 %v62
  %v139 = vpack.c.b16 %v125, %v123
  %v140 = vpack.c.b16 %v126, %v124
  %v141 = vpack.c.b16 %v129, %v127
  %v142 = vpack.c.b16 %v130, %v128
  %v143 = vpack.c.b16 %v133, %v131
  %v144 = vpack.c.b16 %v134, %v132
  %v145 = vpack.c.b16 %v137, %v135
  %v146 = vpack.c.b16 %v138, %v136
  %vm155 = vcmask 523264
  %v157 = vsel %vm155, %v107, 0
  %v160 = vsel %vm155, %v108, 0
  %v163 = vsel %vm155, %v109, 0
  %v166 = vsel %vm155, %v110, 0
  %v169 = vsel %vm155, %v111, 0
  %v172 = vsel %vm155, %v112, 0
  %v175 = vsel %vm155, %v113, 0
  %v178 = vsel %vm155, %v114, 0
  %180 = vmatprep.subr.bf16.mxu0 %v140
  %181 = vmatpush1.bf16.msra.mxu0 %v139
  %182 = vmatprep.subr.bf16.mxu0 %v142
  %183 = vmatpush1.bf16.msra.mxu0 %v141
  %184 = vmatprep.subr.bf16.mxu0 %v144
  %185 = vmatpush1.bf16.msra.mxu0 %v143
  %186 = vmatprep.subr.bf16.mxu0 %v146
  %187 = vmatpush1.bf16.msra.mxu0 %v145
  %188 = vmatprep.subr.bf16.mxu0 0
  %189 = vmatpush1.bf16.msra.mxu0 0
  %190 = vmatprep.subr.bf16.mxu0 0
  %191 = vmatpush1.bf16.msra.mxu0 0
  %192 = vmatprep.subr.bf16.mxu0 0
  %193 = vmatpush1.bf16.msra.mxu0 0
  %194 = vmatprep.subr.bf16.mxu0 0
  %195 = vmatpush1.bf16.msra.mxu0 0
  %196 = vmatprep.subr.bf16.mxu0 0
  %197 = vmatpush1.bf16.msra.mxu0 0
  %198 = vmatprep.subr.bf16.mxu0 0
  %199 = vmatpush1.bf16.msra.mxu0 0
  %200 = vmatprep.subr.bf16.mxu0 0
  %201 = vmatpush1.bf16.msra.mxu0 0
  %202 = vmatprep.subr.bf16.mxu0 0
  %203 = vmatpush1.bf16.msra.mxu0 0
  %204 = vmatprep.subr.bf16.mxu0 0
  %205 = vmatpush1.bf16.msra.mxu0 0
  %206 = vmatprep.subr.bf16.mxu0 0
  %207 = vmatpush1.bf16.msra.mxu0 0
  %208 = vmatprep.subr.bf16.mxu0 0
  %209 = vmatpush1.bf16.msra.mxu0 0
  %210 = vmatprep.subr.bf16.mxu0 0
  %211 = vmatpush1.bf16.msra.mxu0 0
  %212 = vmatprep.mubr.bf16.mxu0 0
  %213 = vmatmul.mubr.bf16.gmra.mrb[0].mxu0 %v157
  %v214 = vpop.f32.mrb[0].mxu0
  %v215 = vadd.f32 %v68, %v214
  %v216 = vpop.f32.mrb[0].mxu0
  %v217 = vadd.f32 %v72, %v216
  %v218 = vpop.f32.mrb[0].mxu0
  %v219 = vadd.f32 %v68, %v218
  %v220 = vpop.f32.mrb[0].mxu0
  %v221 = vadd.f32 %v72, %v220
  %222 = vmatprep.mubr.bf16.mxu0 0
  %223 = vmatmul.mubr.bf16.gmra.mrb[0].mxu0 %v160
  %v224 = vpop.f32.mrb[0].mxu0
  %v225 = vadd.f32 %v68, %v224
  %v226 = vpop.f32.mrb[0].mxu0
  %v227 = vadd.f32 %v72, %v226
  %v228 = vpop.f32.mrb[0].mxu0
  %v229 = vadd.f32 %v68, %v228
  %v230 = vpop.f32.mrb[0].mxu0
  %v231 = vadd.f32 %v72, %v230
  %232 = vmatprep.mubr.bf16.mxu0 0
  %233 = vmatmul.mubr.bf16.gmra.mrb[0].mxu0 %v163
  %v234 = vpop.f32.mrb[0].mxu0
  %v235 = vadd.f32 %v68, %v234
  %v236 = vpop.f32.mrb[0].mxu0
  %v237 = vadd.f32 %v72, %v236
  %v238 = vpop.f32.mrb[0].mxu0
  %v239 = vadd.f32 %v68, %v238
  %v240 = vpop.f32.mrb[0].mxu0
  %v241 = vadd.f32 %v72, %v240
  %242 = vmatprep.mubr.bf16.mxu0 0
  %243 = vmatmul.mubr.bf16.gmra.mrb[0].mxu0 %v166
  %v244 = vpop.f32.mrb[0].mxu0
  %v245 = vadd.f32 %v68, %v244
  %v246 = vpop.f32.mrb[0].mxu0
  %v247 = vadd.f32 %v72, %v246
  %v248 = vpop.f32.mrb[0].mxu0
  %v249 = vadd.f32 %v68, %v248
  %v250 = vpop.f32.mrb[0].mxu0
  %v251 = vadd.f32 %v72, %v250
  %252 = vmatprep.mubr.bf16.mxu0 0
  %253 = vmatmul.mubr.bf16.gmra.mrb[0].mxu0 %v169
  %v254 = vpop.f32.mrb[0].mxu0
  %v255 = vadd.f32 %v68, %v254
  %v256 = vpop.f32.mrb[0].mxu0
  %v257 = vadd.f32 %v72, %v256
  %v258 = vpop.f32.mrb[0].mxu0
  %v259 = vadd.f32 %v68, %v258
  %v260 = vpop.f32.mrb[0].mxu0
  %v261 = vadd.f32 %v72, %v260
  %262 = vmatprep.mubr.bf16.mxu0 0
  %263 = vmatmul.mubr.bf16.gmra.mrb[0].mxu0 %v172
  %v264 = vpop.f32.mrb[0].mxu0
  %v265 = vadd.f32 %v68, %v264
  %v266 = vpop.f32.mrb[0].mxu0
  %v267 = vadd.f32 %v72, %v266
  %v268 = vpop.f32.mrb[0].mxu0
  %v269 = vadd.f32 %v68, %v268
  %v270 = vpop.f32.mrb[0].mxu0
  %v271 = vadd.f32 %v72, %v270
  %272 = vmatprep.mubr.bf16.mxu0 0
  %273 = vmatmul.mubr.bf16.gmra.mrb[0].mxu0 %v175
  %v274 = vpop.f32.mrb[0].mxu0
  %v275 = vadd.f32 %v68, %v274
  %v276 = vpop.f32.mrb[0].mxu0
  %v277 = vadd.f32 %v72, %v276
  %v278 = vpop.f32.mrb[0].mxu0
  %v279 = vadd.f32 %v68, %v278
  %v280 = vpop.f32.mrb[0].mxu0
  %v281 = vadd.f32 %v72, %v280
  %282 = vmatprep.mubr.bf16.mxu0 0
  %283 = vmatmul.mubr.bf16.gmra.mrb[0].mxu0 %v178
  %v284 = vpop.f32.mrb[0].mxu0
  %v285 = vadd.f32 %v68, %v284
  %v286 = vpop.f32.mrb[0].mxu0
  %v287 = vadd.f32 %v72, %v286
  %v288 = vpop.f32.mrb[0].mxu0
  %v289 = vadd.f32 %v68, %v288
  %v290 = vpop.f32.mrb[0].mxu0
  %v291 = vadd.f32 %v72, %v290
  %292 = vdwg.mxu0
  %293 = vst [vmem:[#allocation2] sm:$0xff] %v215
  %294 = vst [vmem:[#allocation2 + $0x8] sm:$0xff] %v217
  %295 = vst [vmem:[#allocation2 + $0x10] sm:$0xff] %v219
  %296 = vst [vmem:[#allocation2 + $0x18] sm:$0xff] %v221
  %297 = vst [vmem:[#allocation2 + $0x20] sm:$0xff] %v225
  %298 = vst [vmem:[#allocation2 + $0x28] sm:$0xff] %v227
  %299 = vst [vmem:[#allocation2 + $0x30] sm:$0xff] %v229
  %300 = vst [vmem:[#allocation2 + $0x38] sm:$0xff] %v231
  %301 = vst [vmem:[#allocation2 + $0x40] sm:$0xff] %v235
  %302 = vst [vmem:[#allocation2 + $0x48] sm:$0xff] %v237
  %303 = vst [vmem:[#allocation2 + $0x50] sm:$0xff] %v239
  %304 = vst [vmem:[#allocation2 + $0x58] sm:$0xff] %v241
  %305 = vst [vmem:[#allocation2 + $0x60] sm:$0xff] %v245
  %306 = vst [vmem:[#allocation2 + $0x68] sm:$0xff] %v247
  %307 = vst [vmem:[#allocation2 + $0x70] sm:$0xff] %v249
  %308 = vst [vmem:[#allocation2 + $0x78] sm:$0xff] %v251
  %309 = vst [vmem:[#allocation2 + $0x80] sm:$0xff] %v255
  %310 = vst [vmem:[#allocation2 + $0x88] sm:$0xff] %v257
  %311 = vst [vmem:[#allocation2 + $0x90] sm:$0xff] %v259
  %312 = vst [vmem:[#allocation2 + $0x98] sm:$0xff] %v261
  %313 = vst [vmem:[#allocation2 + $0xa0] sm:$0xff] %v265
  %314 = vst [vmem:[#allocation2 + $0xa8] sm:$0xff] %v267
  %315 = vst [vmem:[#allocation2 + $0xb0] sm:$0xff] %v269
  %316 = vst [vmem:[#allocation2 + $0xb8] sm:$0xff] %v271
  %317 = vst [vmem:[#allocation2 + $0xc0] sm:$0xff] %v275
  %318 = vst [vmem:[#allocation2 + $0xc8] sm:$0xff] %v277
  %319 = vst [vmem:[#allocation2 + $0xd0] sm:$0xff] %v279
  %320 = vst [vmem:[#allocation2 + $0xd8] sm:$0xff] %v281
  %321 = vst [vmem:[#allocation2 + $0xe0] sm:$0xff] %v285
  %322 = vst [vmem:[#allocation2 + $0xe8] sm:$0xff] %v287
  %323 = vst [vmem:[#allocation2 + $0xf0] sm:$0xff] %v289
  %324 = vst [vmem:[#allocation2 + $0xf8] sm:$0xff] %v291
  %v325 = vld [vmem:[%s3] sm:$0xff]
  %v326 = vld [vmem:[%s3 + $0x8] sm:$0xff]
  %v327 = vld [vmem:[%s3 + $0x10] sm:$0xff]
  %v328 = vld [vmem:[%s3 + $0x18] sm:$0xff]
  %v329 = vld [vmem:[%s3 + $0x20] sm:$0xff]
  %v330 = vld [vmem:[%s3 + $0x28] sm:$0xff]
  %v331 = vld [vmem:[%s3 + $0x30] sm:$0xff]
  %v332 = vld [vmem:[%s3 + $0x38] sm:$0xff]
  %v333 = vld [vmem:[#allocation2] sm:$0xff]
  %v334 = vld [vmem:[#allocation2 + $0x8] sm:$0xff]
  %v335 = vld [vmem:[#allocation2 + $0x10] sm:$0xff]
  %v336 = vld [vmem:[#allocation2 + $0x18] sm:$0xff]
  %v345 = vunpack.c.l.b16 %v325
  %v346 = vunpack.c.h.b16 %v325
  %v347 = vunpack.c.l.b16 %v326
  %v348 = vunpack.c.h.b16 %v326
  %v349 = vunpack.c.l.b16 %v327
  %v350 = vunpack.c.h.b16 %v327
  %v351 = vunpack.c.l.b16 %v328
  %v352 = vunpack.c.h.b16 %v328
  %v353 = vunpack.c.l.b16 %v329
  %v354 = vunpack.c.h.b16 %v329
  %v355 = vunpack.c.l.b16 %v330
  %v356 = vunpack.c.h.b16 %v330
  %v357 = vunpack.c.l.b16 %v331
  %v358 = vunpack.c.h.b16 %v331
  %v359 = vunpack.c.l.b16 %v332
  %v360 = vunpack.c.h.b16 %v332
  %v361 = vpack.c.b16 %v347, %v345
  %v362 = vpack.c.b16 %v348, %v346
  %v363 = vpack.c.b16 %v351, %v349
  %v364 = vpack.c.b16 %v352, %v350
  %v365 = vpack.c.b16 %v355, %v353
  %v366 = vpack.c.b16 %v356, %v354
  %v367 = vpack.c.b16 %v359, %v357
  %v368 = vpack.c.b16 %v360, %v358
  %v378 = vsel %vm155, 0, 0
  %380 = vmatprep.subr.bf16.mxu0 %v362
  %381 = vmatpush1.bf16.msra.mxu0 %v361
  %382 = vmatprep.subr.bf16.mxu0 %v364
  %383 = vmatpush1.bf16.msra.mxu0 %v363
  %384 = vmatprep.subr.bf16.mxu0 %v366
  %385 = vmatpush1.bf16.msra.mxu0 %v365
  %386 = vmatprep.subr.bf16.mxu0 %v368
  %387 = vmatpush1.bf16.msra.mxu0 %v367
  %388 = vmatprep.subr.bf16.mxu0 0
  %389 = vmatpush1.bf16.msra.mxu0 0
  %390 = vmatprep.subr.bf16.mxu0 0
  %391 = vmatpush1.bf16.msra.mxu0 0
  %392 = vmatprep.subr.bf16.mxu0 0
  %393 = vmatpush1.bf16.msra.mxu0 0
  %394 = vmatprep.subr.bf16.mxu0 0
  %395 = vmatpush1.bf16.msra.mxu0 0
  %396 = vmatprep.subr.bf16.mxu0 0
  %397 = vmatpush1.bf16.msra.mxu0 0
  %398 = vmatprep.subr.bf16.mxu0 0
  %399 = vmatpush1.bf16.msra.mxu0 0
  %400 = vmatprep.subr.bf16.mxu0 0
  %401 = vmatpush1.bf16.msra.mxu0 0
  %402 = vmatprep.subr.bf16.mxu0 0
  %403 = vmatpush1.bf16.msra.mxu0 0
  %404 = vmatprep.subr.bf16.mxu0 0
  %405 = vmatpush1.bf16.msra.mxu0 0
  %406 = vmatprep.subr.bf16.mxu0 0
  %407 = vmatpush1.bf16.msra.mxu0 0
  %408 = vmatprep.subr.bf16.mxu0 0
  %409 = vmatpush1.bf16.msra.mxu0 0
  %410 = vmatprep.subr.bf16.mxu0 0
  %411 = vmatpush1.bf16.msra.mxu0 0
  %412 = vmatprep.mubr.bf16.mxu0 0
  %413 = vmatmul.mubr.bf16.gmra.mrb[0].mxu0 %v378
  %v414 = vpop.f32.mrb[0].mxu0
  %v415 = vadd.f32 %v333, %v414
  %v416 = vpop.f32.mrb[0].mxu0
  %v417 = vadd.f32 %v334, %v416
  %v418 = vpop.f32.mrb[0].mxu0
  %v419 = vadd.f32 %v335, %v418
  %v420 = vpop.f32.mrb[0].mxu0
  %v421 = vadd.f32 %v336, %v420
  %422 = vdwg.mxu0
  %v423 = vxor.u32 %v415, 2147483648
  %v424 = vxor.u32 %v417, 2147483648
  %v425 = vxor.u32 %v419, 2147483648
  %v426 = vxor.u32 %v421, 2147483648
  %v427 = vmul.f32 %v423, 1.442695
  %v428 = vpow.pop %v427
  %v429 = vmul.f32 %v424, 1.442695
  %v430 = vpow.pop %v429
  %v431 = vmul.f32 %v425, 1.442695
  %v432 = vpow.pop %v431
  %v433 = vmul.f32 %v426, 1.442695
  %v434 = vpow.pop %v433
  %v435 = vadd.f32 %v428, 1.0
  %v436 = vadd.f32 %v430, 1.0
  %v437 = vadd.f32 %v432, 1.0
  %v438 = vadd.f32 %v434, 1.0
  %v439 = vrcp.pop %v435
  %v440 = vmul.f32 1.0, %v439
  %v441 = vrcp.pop %v436
  %v442 = vmul.f32 1.0, %v441
  %v443 = vrcp.pop %v437
  %v444 = vmul.f32 1.0, %v443
  %v445 = vrcp.pop %v438
  %v446 = vmul.f32 1.0, %v445
  %v447 = vtanh.pop %v417
  %v448 = vtanh.pop %v421
  %v449 = vmul.f32 %v440, 0.0
  %v450 = vmul.f32 %v444, 0.0
  %453 = vrot.lane.b32.xlu0 %v447, 64
  %v454 = vpop.permute.xlu0 %453
  %455 = vrot.lane.b32.xlu0 %v448, 64
  %v456 = vpop.permute.xlu0 %455
  %v459 = vmul.f32 %v440, %v454
  %v460 = vmul.f32 %v444, %v456
  %463 = vrot.lane.b32.xlu0 %v459, 64
  %v464 = vpop.permute.xlu0 %463
  %465 = vrot.lane.b32.xlu0 %v460, 64
  %v466 = vpop.permute.xlu0 %465
  %v469 = vadd.f32 %v449, %v464
  %v470 = vadd.f32 %v450, %v466
  %v471 = vtanh.pop %v469
  %v472 = vtanh.pop %v470
  %475 = vrot.lane.b32.xlu0 %v471, 64
  %v476 = vpop.permute.xlu0 %475
  %477 = vrot.lane.b32.xlu0 %v472, 64
  %v478 = vpop.permute.xlu0 %477
  %v481 = vmul.f32 %v442, %v476
  %v482 = vmul.f32 %v446, %v478
  %v483 = vpack.c.bf16 %v482, %v481
  %vm484 = vcmask 261120
  %485 = vst.msk [vmem:[#allocation3] sm:$0xff] %vm484, %v483
  %vm486 = vcmask 523520
  %487 = vst.msk [vmem:[#allocation3 + $0x38] sm:$0xff] %vm486, %v483
  %v488 = vld [vmem:[%s3] sm:$0xff]
  %v489 = vld [vmem:[%s3 + $0x8] sm:$0xff]
  %v490 = vld [vmem:[%s3 + $0x10] sm:$0xff]
  %v491 = vld [vmem:[%s3 + $0x18] sm:$0xff]
  %v492 = vld [vmem:[%s3 + $0x20] sm:$0xff]
  %v493 = vld [vmem:[%s3 + $0x28] sm:$0xff]
  %v494 = vld [vmem:[%s3 + $0x30] sm:$0xff]
  %v495 = vld [vmem:[%s3 + $0x38] sm:$0xff]
  %v496 = vld [vmem:[#allocation2 + $0x20] sm:$0xff]
  %v497 = vld [vmem:[#allocation2 + $0x28] sm:$0xff]
  %v498 = vld [vmem:[#allocation2 + $0x30] sm:$0xff]
  %v499 = vld [vmem:[#allocation2 + $0x38] sm:$0xff]
  %v508 = vunpack.c.l.b16 %v488
  %v509 = vunpack.c.h.b16 %v488
  %v510 = vunpack.c.l.b16 %v489
  %v511 = vunpack.c.h.b16 %v489
  %v512 = vunpack.c.l.b16 %v490
  %v513 = vunpack.c.h.b16 %v490
  %v514 = vunpack.c.l.b16 %v491
  %v515 = vunpack.c.h.b16 %v491
  %v516 = vunpack.c.l.b16 %v492
  %v517 = vunpack.c.h.b16 %v492
  %v518 = vunpack.c.l.b16 %v493
  %v519 = vunpack.c.h.b16 %v493
  %v520 = vunpack.c.l.b16 %v494
  %v521 = vunpack.c.h.b16 %v494
  %v522 = vunpack.c.l.b16 %v495
  %v523 = vunpack.c.h.b16 %v495
  %v524 = vpack.c.b16 %v510, %v508
  %v525 = vpack.c.b16 %v511, %v509
  %v526 = vpack.c.b16 %v514, %v512
  %v527 = vpack.c.b16 %v515, %v513
  %v528 = vpack.c.b16 %v518, %v516
  %v529 = vpack.c.b16 %v519, %v517
  %v530 = vpack.c.b16 %v522, %v520
  %v531 = vpack.c.b16 %v523, %v521
  %v541 = vsel %vm155, %v483, 0
  %543 = vmatprep.subr.bf16.mxu0 %v525
  %544 = vmatpush1.bf16.msra.mxu0 %v524
  %545 = vmatprep.subr.bf16.mxu0 %v527
  %546 = vmatpush1.bf16.msra.mxu0 %v526
  %547 = vmatprep.subr.bf16.mxu0 %v529
  %548 = vmatpush1.bf16.msra.mxu0 %v528
  %549 = vmatprep.subr.bf16.mxu0 %v531
  %550 = vmatpush1.bf16.msra.mxu0 %v530
  %551 = vmatprep.subr.bf16.mxu0 0
  %552 = vmatpush1.bf16.msra.mxu0 0
  %553 = vmatprep.subr.bf16.mxu0 0
  %554 = vmatpush1.bf16.msra.mxu0 0
  %555 = vmatprep.subr.bf16.mxu0 0
  %556 = vmatpush1.bf16.msra.mxu0 0
  %557 = vmatprep.subr.bf16.mxu0 0
  %558 = vmatpush1.bf16.msra.mxu0 0
  %559 = vmatprep.subr.bf16.mxu0 0
  %560 = vmatpush1.bf16.msra.mxu0 0
  %561 = vmatprep.subr.bf16.mxu0 0
  %562 = vmatpush1.bf16.msra.mxu0 0
  %563 = vmatprep.subr.bf16.mxu0 0
  %564 = vmatpush1.bf16.msra.mxu0 0
  %565 = vmatprep.subr.bf16.mxu0 0
  %566 = vmatpush1.bf16.msra.mxu0 0
  %567 = vmatprep.subr.bf16.mxu0 0
  %568 = vmatpush1.bf16.msra.mxu0 0
  %569 = vmatprep.subr.bf16.mxu0 0
  %570 = vmatpush1.bf16.msra.mxu0 0
  %571 = vmatprep.subr.bf16.mxu0 0
  %572 = vmatpush1.bf16.msra.mxu0 0
  %573 = vmatprep.subr.bf16.mxu0 0
  %574 = vmatpush1.bf16.msra.mxu0 0
  %575 = vmatprep.mubr.bf16.mxu0 0
  %576 = vmatmul.mubr.bf16.gmra.mrb[0].mxu0 %v541
  %v577 = vpop.f32.mrb[0].mxu0
  %v578 = vadd.f32 %v496, %v577
  %v579 = vpop.f32.mrb[0].mxu0
  %v580 = vadd.f32 %v497, %v579
  %v581 = vpop.f32.mrb[0].mxu0
  %v582 = vadd.f32 %v498, %v581
  %v583 = vpop.f32.mrb[0].mxu0
  %v584 = vadd.f32 %v499, %v583
  %585 = vdwg.mxu0
  %v586 = vxor.u32 %v578, 2147483648
  %v587 = vxor.u32 %v580, 2147483648
  %v588 = vxor.u32 %v582, 2147483648
  %v589 = vxor.u32 %v584, 2147483648
  %v590 = vmul.f32 %v586, 1.442695
  %v591 = vpow.pop %v590
  %v592 = vmul.f32 %v587, 1.442695
  %v593 = vpow.pop %v592
  %v594 = vmul.f32 %v588, 1.442695
  %v595 = vpow.pop %v594
  %v596 = vmul.f32 %v589, 1.442695
  %v597 = vpow.pop %v596
  %v598 = vadd.f32 %v591, 1.0
  %v599 = vadd.f32 %v593, 1.0
  %v600 = vadd.f32 %v595, 1.0
  %v601 = vadd.f32 %v597, 1.0
  %v602 = vrcp.pop %v598
  %v603 = vmul.f32 1.0, %v602
  %v604 = vrcp.pop %v599
  %v605 = vmul.f32 1.0, %v604
  %v606 = vrcp.pop %v600
  %v607 = vmul.f32 1.0, %v606
  %v608 = vrcp.pop %v601
  %v609 = vmul.f32 1.0, %v608
  %v610 = vtanh.pop %v580
  %v611 = vtanh.pop %v584
  %v612 = vmul.f32 %v603, %v469
  %v613 = vmul.f32 %v607, %v470
  %616 = vrot.lane.b32.xlu0 %v610, 64
  %v617 = vpop.permute.xlu0 %616
  %618 = vrot.lane.b32.xlu0 %v611, 64
  %v619 = vpop.permute.xlu0 %618
  %v622 = vmul.f32 %v603, %v617
  %v623 = vmul.f32 %v607, %v619
  %626 = vrot.lane.b32.xlu0 %v622, 64
  %v627 = vpop.permute.xlu0 %626
  %628 = vrot.lane.b32.xlu0 %v623, 64
  %v629 = vpop.permute.xlu0 %628
  %v632 = vadd.f32 %v612, %v627
  %v633 = vadd.f32 %v613, %v629
  %v634 = vtanh.pop %v632
  %v635 = vtanh.pop %v633
  %638 = vrot.lane.b32.xlu0 %v634, 64
  %v639 = vpop.permute.xlu0 %638
  %640 = vrot.lane.b32.xlu0 %v635, 64
  %v641 = vpop.permute.xlu0 %640
  %v644 = vmul.f32 %v605, %v639
  %v645 = vmul.f32 %v609, %v641
  %v646 = vpack.c.bf16 %v645, %v644
  %647 = vst.msk [vmem:[#allocation3 + $0x8] sm:$0xff] %vm484, %v646
  %648 = vst.msk [vmem:[#allocation3 + $0x30] sm:$0xff] %vm486, %v646
  %v649 = vld [vmem:[%s3] sm:$0xff]
  %v650 = vld [vmem:[%s3 + $0x8] sm:$0xff]
  %v651 = vld [vmem:[%s3 + $0x10] sm:$0xff]
  %v652 = vld [vmem:[%s3 + $0x18] sm:$0xff]
  %v653 = vld [vmem:[%s3 + $0x20] sm:$0xff]
  %v654 = vld [vmem:[%s3 + $0x28] sm:$0xff]
  %v655 = vld [vmem:[%s3 + $0x30] sm:$0xff]
  %v656 = vld [vmem:[%s3 + $0x38] sm:$0xff]
  %v657 = vld [vmem:[#allocation2 + $0x40] sm:$0xff]
  %v658 = vld [vmem:[#allocation2 + $0x48] sm:$0xff]
  %v659 = vld [vmem:[#allocation2 + $0x50] sm:$0xff]
  %v660 = vld [vmem:[#allocation2 + $0x58] sm:$0xff]
  %v669 = vunpack.c.l.b16 %v649
  %v670 = vunpack.c.h.b16 %v649
  %v671 = vunpack.c.l.b16 %v650
  %v672 = vunpack.c.h.b16 %v650
  %v673 = vunpack.c.l.b16 %v651
  %v674 = vunpack.c.h.b16 %v651
  %v675 = vunpack.c.l.b16 %v652
  %v676 = vunpack.c.h.b16 %v652
  %v677 = vunpack.c.l.b16 %v653
  %v678 = vunpack.c.h.b16 %v653
  %v679 = vunpack.c.l.b16 %v654
  %v680 = vunpack.c.h.b16 %v654
  %v681 = vunpack.c.l.b16 %v655
  %v682 = vunpack.c.h.b16 %v655
  %v683 = vunpack.c.l.b16 %v656
  %v684 = vunpack.c.h.b16 %v656
  %v685 = vpack.c.b16 %v671, %v669
  %v686 = vpack.c.b16 %v672, %v670
  %v687 = vpack.c.b16 %v675, %v673
  %v688 = vpack.c.b16 %v676, %v674
  %v689 = vpack.c.b16 %v679, %v677
  %v690 = vpack.c.b16 %v680, %v678
  %v691 = vpack.c.b16 %v683, %v681
  %v692 = vpack.c.b16 %v684, %v682
  %v702 = vsel %vm155, %v646, 0
  %704 = vmatprep.subr.bf16.mxu0 %v686
  %705 = vmatpush1.bf16.msra.mxu0 %v685
  %706 = vmatprep.subr.bf16.mxu0 %v688
  %707 = vmatpush1.bf16.msra.mxu0 %v687
  %708 = vmatprep.subr.bf16.mxu0 %v690
  %709 = vmatpush1.bf16.msra.mxu0 %v689
  %710 = vmatprep.subr.bf16.mxu0 %v692
  %711 = vmatpush1.bf16.msra.mxu0 %v691
  %712 = vmatprep.subr.bf16.mxu0 0
  %713 = vmatpush1.bf16.msra.mxu0 0
  %714 = vmatprep.subr.bf16.mxu0 0
  %715 = vmatpush1.bf16.msra.mxu0 0
  %716 = vmatprep.subr.bf16.mxu0 0
  %717 = vmatpush1.bf16.msra.mxu0 0
  %718 = vmatprep.subr.bf16.mxu0 0
  %719 = vmatpush1.bf16.msra.mxu0 0
  %720 = vmatprep.subr.bf16.mxu0 0
  %721 = vmatpush1.bf16.msra.mxu0 0
  %722 = vmatprep.subr.bf16.mxu0 0
  %723 = vmatpush1.bf16.msra.mxu0 0
  %724 = vmatprep.subr.bf16.mxu0 0
  %725 = vmatpush1.bf16.msra.mxu0 0
  %726 = vmatprep.subr.bf16.mxu0 0
  %727 = vmatpush1.bf16.msra.mxu0 0
  %728 = vmatprep.subr.bf16.mxu0 0
  %729 = vmatpush1.bf16.msra.mxu0 0
  %730 = vmatprep.subr.bf16.mxu0 0
  %731 = vmatpush1.bf16.msra.mxu0 0
  %732 = vmatprep.subr.bf16.mxu0 0
  %733 = vmatpush1.bf16.msra.mxu0 0
  %734 = vmatprep.subr.bf16.mxu0 0
  %735 = vmatpush1.bf16.msra.mxu0 0
  %736 = vmatprep.mubr.bf16.mxu0 0
  %737 = vmatmul.mubr.bf16.gmra.mrb[0].mxu0 %v702
  %v738 = vpop.f32.mrb[0].mxu0
  %v739 = vadd.f32 %v657, %v738
  %v740 = vpop.f32.mrb[0].mxu0
  %v741 = vadd.f32 %v658, %v740
  %v742 = vpop.f32.mrb[0].mxu0
  %v743 = vadd.f32 %v659, %v742
  %v744 = vpop.f32.mrb[0].mxu0
  %v745 = vadd.f32 %v660, %v744
  %746 = vdwg.mxu0
  %v747 = vxor.u32 %v739, 2147483648
  %v748 = vxor.u32 %v741, 2147483648
  %v749 = vxor.u32 %v743, 2147483648
  %v750 = vxor.u32 %v745, 2147483648
  %v751 = vmul.f32 %v747, 1.442695
  %v752 = vpow.pop %v751
  %v753 = vmul.f32 %v748, 1.442695
  %v754 = vpow.pop %v753
  %v755 = vmul.f32 %v749, 1.442695
  %v756 = vpow.pop %v755
  %v757 = vmul.f32 %v750, 1.442695
  %v758 = vpow.pop %v757
  %v759 = vadd.f32 %v752, 1.0
  %v760 = vadd.f32 %v754, 1.0
  %v761 = vadd.f32 %v756, 1.0
  %v762 = vadd.f32 %v758, 1.0
  %v763 = vrcp.pop %v759
  %v764 = vmul.f32 1.0, %v763
  %v765 = vrcp.pop %v760
  %v766 = vmul.f32 1.0, %v765
  %v767 = vrcp.pop %v761
  %v768 = vmul.f32 1.0, %v767
  %v769 = vrcp.pop %v762
  %v770 = vmul.f32 1.0, %v769
  %v771 = vtanh.pop %v741
  %v772 = vtanh.pop %v745
  %v773 = vmul.f32 %v764, %v632
  %v774 = vmul.f32 %v768, %v633
  %777 = vrot.lane.b32.xlu0 %v771, 64
  %v778 = vpop.permute.xlu0 %777
  %779 = vrot.lane.b32.xlu0 %v772, 64
  %v780 = vpop.permute.xlu0 %779
  %v783 = vmul.f32 %v764, %v778
  %v784 = vmul.f32 %v768, %v780
  %787 = vrot.lane.b32.xlu0 %v783, 64
  %v788 = vpop.permute.xlu0 %787
  %789 = vrot.lane.b32.xlu0 %v784, 64
  %v790 = vpop.permute.xlu0 %789
  %v793 = vadd.f32 %v773, %v788
  %v794 = vadd.f32 %v774, %v790
  %v795 = vtanh.pop %v793
  %v796 = vtanh.pop %v794
  %799 = vrot.lane.b32.xlu0 %v795, 64
  %v800 = vpop.permute.xlu0 %799
  %801 = vrot.lane.b32.xlu0 %v796, 64
  %v802 = vpop.permute.xlu0 %801
  %v805 = vmul.f32 %v766, %v800
  %v806 = vmul.f32 %v770, %v802
  %v807 = vpack.c.bf16 %v806, %v805
  %808 = vst.msk [vmem:[#allocation3 + $0x10] sm:$0xff] %vm484, %v807
  %809 = vst.msk [vmem:[#allocation3 + $0x28] sm:$0xff] %vm486, %v807
  %v810 = vld [vmem:[%s3] sm:$0xff]
  %v811 = vld [vmem:[%s3 + $0x8] sm:$0xff]
  %v812 = vld [vmem:[%s3 + $0x10] sm:$0xff]
  %v813 = vld [vmem:[%s3 + $0x18] sm:$0xff]
  %v814 = vld [vmem:[%s3 + $0x20] sm:$0xff]
  %v815 = vld [vmem:[%s3 + $0x28] sm:$0xff]
  %v816 = vld [vmem:[%s3 + $0x30] sm:$0xff]
  %v817 = vld [vmem:[%s3 + $0x38] sm:$0xff]
  %v818 = vld [vmem:[#allocation2 + $0x60] sm:$0xff]
  %v819 = vld [vmem:[#allocation2 + $0x68] sm:$0xff]
  %v820 = vld [vmem:[#allocation2 + $0x70] sm:$0xff]
  %v821 = vld [vmem:[#allocation2 + $0x78] sm:$0xff]
  %v830 = vunpack.c.l.b16 %v810
  %v831 = vunpack.c.h.b16 %v810
  %v832 = vunpack.c.l.b16 %v811
  %v833 = vunpack.c.h.b16 %v811
  %v834 = vunpack.c.l.b16 %v812
  %v835 = vunpack.c.h.b16 %v812
  %v836 = vunpack.c.l.b16 %v813
  %v837 = vunpack.c.h.b16 %v813
  %v838 = vunpack.c.l.b16 %v814
  %v839 = vunpack.c.h.b16 %v814
  %v840 = vunpack.c.l.b16 %v815
  %v841 = vunpack.c.h.b16 %v815
  %v842 = vunpack.c.l.b16 %v816
  %v843 = vunpack.c.h.b16 %v816
  %v844 = vunpack.c.l.b16 %v817
  %v845 = vunpack.c.h.b16 %v817
  %v846 = vpack.c.b16 %v832, %v830
  %v847 = vpack.c.b16 %v833, %v831
  %v848 = vpack.c.b16 %v836, %v834
  %v849 = vpack.c.b16 %v837, %v835
  %v850 = vpack.c.b16 %v840, %v838
  %v851 = vpack.c.b16 %v841, %v839
  %v852 = vpack.c.b16 %v844, %v842
  %v853 = vpack.c.b16 %v845, %v843
  %v863 = vsel %vm155, %v807, 0
  %865 = vmatprep.subr.bf16.mxu0 %v847
  %866 = vmatpush1.bf16.msra.mxu0 %v846
  %867 = vmatprep.subr.bf16.mxu0 %v849
  %868 = vmatpush1.bf16.msra.mxu0 %v848
  %869 = vmatprep.subr.bf16.mxu0 %v851
  %870 = vmatpush1.bf16.msra.mxu0 %v850
  %871 = vmatprep.subr.bf16.mxu0 %v853
  %872 = vmatpush1.bf16.msra.mxu0 %v852
  %873 = vmatprep.subr.bf16.mxu0 0
  %874 = vmatpush1.bf16.msra.mxu0 0
  %875 = vmatprep.subr.bf16.mxu0 0
  %876 = vmatpush1.bf16.msra.mxu0 0
  %877 = vmatprep.subr.bf16.mxu0 0
  %878 = vmatpush1.bf16.msra.mxu0 0
  %879 = vmatprep.subr.bf16.mxu0 0
  %880 = vmatpush1.bf16.msra.mxu0 0
  %881 = vmatprep.subr.bf16.mxu0 0
  %882 = vmatpush1.bf16.msra.mxu0 0
  %883 = vmatprep.subr.bf16.mxu0 0
  %884 = vmatpush1.bf16.msra.mxu0 0
  %885 = vmatprep.subr.bf16.mxu0 0
  %886 = vmatpush1.bf16.msra.mxu0 0
  %887 = vmatprep.subr.bf16.mxu0 0
  %888 = vmatpush1.bf16.msra.mxu0 0
  %889 = vmatprep.subr.bf16.mxu0 0
  %890 = vmatpush1.bf16.msra.mxu0 0
  %891 = vmatprep.subr.bf16.mxu0 0
  %892 = vmatpush1.bf16.msra.mxu0 0
  %893 = vmatprep.subr.bf16.mxu0 0
  %894 = vmatpush1.bf16.msra.mxu0 0
  %895 = vmatprep.subr.bf16.mxu0 0
  %896 = vmatpush1.bf16.msra.mxu0 0
  %897 = vmatprep.mubr.bf16.mxu0 0
  %898 = vmatmul.mubr.bf16.gmra.mrb[0].mxu0 %v863
  %v899 = vpop.f32.mrb[0].mxu0
  %v900 = vadd.f32 %v818, %v899
  %v901 = vpop.f32.mrb[0].mxu0
  %v902 = vadd.f32 %v819, %v901
  %v903 = vpop.f32.mrb[0].mxu0
  %v904 = vadd.f32 %v820, %v903
  %v905 = vpop.f32.mrb[0].mxu0
  %v906 = vadd.f32 %v821, %v905
  %907 = vdwg.mxu0
  %v908 = vxor.u32 %v900, 2147483648
  %v909 = vxor.u32 %v902, 2147483648
  %v910 = vxor.u32 %v904, 2147483648
  %v911 = vxor.u32 %v906, 2147483648
  %v912 = vmul.f32 %v908, 1.442695
  %v913 = vpow.pop %v912
  %v914 = vmul.f32 %v909, 1.442695
  %v915 = vpow.pop %v914
  %v916 = vmul.f32 %v910, 1.442695
  %v917 = vpow.pop %v916
  %v918 = vmul.f32 %v911, 1.442695
  %v919 = vpow.pop %v918
  %v920 = vadd.f32 %v913, 1.0
  %v921 = vadd.f32 %v915, 1.0
  %v922 = vadd.f32 %v917, 1.0
  %v923 = vadd.f32 %v919, 1.0
  %v924 = vrcp.pop %v920
  %v925 = vmul.f32 1.0, %v924
  %v926 = vrcp.pop %v921
  %v927 = vmul.f32 1.0, %v926
  %v928 = vrcp.pop %v922
  %v929 = vmul.f32 1.0, %v928
  %v930 = vrcp.pop %v923
  %v931 = vmul.f32 1.0, %v930
  %v932 = vtanh.pop %v902
  %v933 = vtanh.pop %v906
  %v934 = vmul.f32 %v925, %v793
  %v935 = vmul.f32 %v929, %v794
  %938 = vrot.lane.b32.xlu0 %v932, 64
  %v939 = vpop.permute.xlu0 %938
  %940 = vrot.lane.b32.xlu0 %v933, 64
  %v941 = vpop.permute.xlu0 %940
  %v944 = vmul.f32 %v925, %v939
  %v945 = vmul.f32 %v929, %v941
  %948 = vrot.lane.b32.xlu0 %v944, 64
  %v949 = vpop.permute.xlu0 %948
  %950 = vrot.lane.b32.xlu0 %v945, 64
  %v951 = vpop.permute.xlu0 %950
  %v954 = vadd.f32 %v934, %v949
  %v955 = vadd.f32 %v935, %v951
  %v956 = vtanh.pop %v954
  %v957 = vtanh.pop %v955
  %960 = vrot.lane.b32.xlu0 %v956, 64
  %v961 = vpop.permute.xlu0 %960
  %962 = vrot.lane.b32.xlu0 %v957, 64
  %v963 = vpop.permute.xlu0 %962
  %v966 = vmul.f32 %v927, %v961
  %v967 = vmul.f32 %v931, %v963
  %v968 = vpack.c.bf16 %v967, %v966
  %969 = vst.msk [vmem:[#allocation3 + $0x18] sm:$0xff] %vm484, %v968
  %970 = vst.msk [vmem:[#allocation3 + $0x20] sm:$0xff] %vm486, %v968
  %v971 = vld [vmem:[%s3] sm:$0xff]
  %v972 = vld [vmem:[%s3 + $0x8] sm:$0xff]
  %v973 = vld [vmem:[%s3 + $0x10] sm:$0xff]
  %v974 = vld [vmem:[%s3 + $0x18] sm:$0xff]
  %v975 = vld [vmem:[%s3 + $0x20] sm:$0xff]
  %v976 = vld [vmem:[%s3 + $0x28] sm:$0xff]
  %v977 = vld [vmem:[%s3 + $0x30] sm:$0xff]
  %v978 = vld [vmem:[%s3 + $0x38] sm:$0xff]
  %v979 = vld [vmem:[#allocation2 + $0x80] sm:$0xff]
  %v980 = vld [vmem:[#allocation2 + $0x88] sm:$0xff]
  %v981 = vld [vmem:[#allocation2 + $0x90] sm:$0xff]
  %v982 = vld [vmem:[#allocation2 + $0x98] sm:$0xff]
  %v991 = vunpack.c.l.b16 %v971
  %v992 = vunpack.c.h.b16 %v971
  %v993 = vunpack.c.l.b16 %v972
  %v994 = vunpack.c.h.b16 %v972
  %v995 = vunpack.c.l.b16 %v973
  %v996 = vunpack.c.h.b16 %v973
  %v997 = vunpack.c.l.b16 %v974
  %v998 = vunpack.c.h.b16 %v974
  %v999 = vunpack.c.l.b16 %v975
  %v1000 = vunpack.c.h.b16 %v975
  %v1001 = vunpack.c.l.b16 %v976
  %v1002 = vunpack.c.h.b16 %v976
  %v1003 = vunpack.c.l.b16 %v977
  %v1004 = vunpack.c.h.b16 %v977
  %v1005 = vunpack.c.l.b16 %v978
  %v1006 = vunpack.c.h.b16 %v978
  %v1007 = vpack.c.b16 %v993, %v991
  %v1008 = vpack.c.b16 %v994, %v992
  %v1009 = vpack.c.b16 %v997, %v995
  %v1010 = vpack.c.b16 %v998, %v996
  %v1011 = vpack.c.b16 %v1001, %v999
  %v1012 = vpack.c.b16 %v1002, %v1000
  %v1013 = vpack.c.b16 %v1005, %v1003
  %v1014 = vpack.c.b16 %v1006, %v1004
  %v1024 = vsel %vm155, %v968, 0
  %1026 = vmatprep.subr.bf16.mxu0 %v1008
  %1027 = vmatpush1.bf16.msra.mxu0 %v1007
  %1028 = vmatprep.subr.bf16.mxu0 %v1010
  %1029 = vmatpush1.bf16.msra.mxu0 %v1009
  %1030 = vmatprep.subr.bf16.mxu0 %v1012
  %1031 = vmatpush1.bf16.msra.mxu0 %v1011
  %1032 = vmatprep.subr.bf16.mxu0 %v1014
  %1033 = vmatpush1.bf16.msra.mxu0 %v1013
  %1034 = vmatprep.subr.bf16.mxu0 0
  %1035 = vmatpush1.bf16.msra.mxu0 0
  %1036 = vmatprep.subr.bf16.mxu0 0
  %1037 = vmatpush1.bf16.msra.mxu0 0
  %1038 = vmatprep.subr.bf16.mxu0 0
  %1039 = vmatpush1.bf16.msra.mxu0 0
  %1040 = vmatprep.subr.bf16.mxu0 0
  %1041 = vmatpush1.bf16.msra.mxu0 0
  %1042 = vmatprep.subr.bf16.mxu0 0
  %1043 = vmatpush1.bf16.msra.mxu0 0
  %1044 = vmatprep.subr.bf16.mxu0 0
  %1045 = vmatpush1.bf16.msra.mxu0 0
  %1046 = vmatprep.subr.bf16.mxu0 0
  %1047 = vmatpush1.bf16.msra.mxu0 0
  %1048 = vmatprep.subr.bf16.mxu0 0
  %1049 = vmatpush1.bf16.msra.mxu0 0
  %1050 = vmatprep.subr.bf16.mxu0 0
  %1051 = vmatpush1.bf16.msra.mxu0 0
  %1052 = vmatprep.subr.bf16.mxu0 0
  %1053 = vmatpush1.bf16.msra.mxu0 0
  %1054 = vmatprep.subr.bf16.mxu0 0
  %1055 = vmatpush1.bf16.msra.mxu0 0
  %1056 = vmatprep.subr.bf16.mxu0 0
  %1057 = vmatpush1.bf16.msra.mxu0 0
  %1058 = vmatprep.mubr.bf16.mxu0 0
  %1059 = vmatmul.mubr.bf16.gmra.mrb[0].mxu0 %v1024
  %v1060 = vpop.f32.mrb[0].mxu0
  %v1061 = vadd.f32 %v979, %v1060
  %v1062 = vpop.f32.mrb[0].mxu0
  %v1063 = vadd.f32 %v980, %v1062
  %v1064 = vpop.f32.mrb[0].mxu0
  %v1065 = vadd.f32 %v981, %v1064
  %v1066 = vpop.f32.mrb[0].mxu0
  %v1067 = vadd.f32 %v982, %v1066
  %1068 = vdwg.mxu0
  %v1069 = vxor.u32 %v1061, 2147483648
  %v1070 = vxor.u32 %v1063, 2147483648
  %v1071 = vxor.u32 %v1065, 2147483648
  %v1072 = vxor.u32 %v1067, 2147483648
  %v1073 = vmul.f32 %v1069, 1.442695
  %v1074 = vpow.pop %v1073
  %v1075 = vmul.f32 %v1070, 1.442695
  %v1076 = vpow.pop %v1075
  %v1077 = vmul.f32 %v1071, 1.442695
  %v1078 = vpow.pop %v1077
  %v1079 = vmul.f32 %v1072, 1.442695
  %v1080 = vpow.pop %v1079
  %v1081 = vadd.f32 %v1074, 1.0
  %v1082 = vadd.f32 %v1076, 1.0
  %v1083 = vadd.f32 %v1078, 1.0
  %v1084 = vadd.f32 %v1080, 1.0
  %v1085 = vrcp.pop %v1081
  %v1086 = vmul.f32 1.0, %v1085
  %v1087 = vrcp.pop %v1082
  %v1088 = vmul.f32 1.0, %v1087
  %v1089 = vrcp.pop %v1083
  %v1090 = vmul.f32 1.0, %v1089
  %v1091 = vrcp.pop %v1084
  %v1092 = vmul.f32 1.0, %v1091
  %v1093 = vtanh.pop %v1063
  %v1094 = vtanh.pop %v1067
  %v1095 = vmul.f32 %v1086, %v954
  %v1096 = vmul.f32 %v1090, %v955
  %1099 = vrot.lane.b32.xlu0 %v1093, 64
  %v1100 = vpop.permute.xlu0 %1099
  %1101 = vrot.lane.b32.xlu0 %v1094, 64
  %v1102 = vpop.permute.xlu0 %1101
  %v1105 = vmul.f32 %v1086, %v1100
  %v1106 = vmul.f32 %v1090, %v1102
  %1109 = vrot.lane.b32.xlu0 %v1105, 64
  %v1110 = vpop.permute.xlu0 %1109
  %1111 = vrot.lane.b32.xlu0 %v1106, 64
  %v1112 = vpop.permute.xlu0 %1111
  %v1115 = vadd.f32 %v1095, %v1110
  %v1116 = vadd.f32 %v1096, %v1112
  %v1117 = vtanh.pop %v1115
  %v1118 = vtanh.pop %v1116
  %1121 = vrot.lane.b32.xlu0 %v1117, 64
  %v1122 = vpop.permute.xlu0 %1121
  %1123 = vrot.lane.b32.xlu0 %v1118, 64
  %v1124 = vpop.permute.xlu0 %1123
  %v1127 = vmul.f32 %v1088, %v1122
  %v1128 = vmul.f32 %v1092, %v1124
  %v1129 = vpack.c.bf16 %v1128, %v1127
  %1130 = vst.msk [vmem:[#allocation3 + $0x20] sm:$0xff] %vm484, %v1129
  %1131 = vst.msk [vmem:[#allocation3 + $0x18] sm:$0xff] %vm486, %v1129
  %v1132 = vld [vmem:[%s3] sm:$0xff]
  %v1133 = vld [vmem:[%s3 + $0x8] sm:$0xff]
  %v1134 = vld [vmem:[%s3 + $0x10] sm:$0xff]
  %v1135 = vld [vmem:[%s3 + $0x18] sm:$0xff]
  %v1136 = vld [vmem:[%s3 + $0x20] sm:$0xff]
  %v1137 = vld [vmem:[%s3 + $0x28] sm:$0xff]
  %v1138 = vld [vmem:[%s3 + $0x30] sm:$0xff]
  %v1139 = vld [vmem:[%s3 + $0x38] sm:$0xff]
  %v1140 = vld [vmem:[#allocation2 + $0xa0] sm:$0xff]
  %v1141 = vld [vmem:[#allocation2 + $0xa8] sm:$0xff]
  %v1142 = vld [vmem:[#allocation2 + $0xb0] sm:$0xff]
  %v1143 = vld [vmem:[#allocation2 + $0xb8] sm:$0xff]
  %v1152 = vunpack.c.l.b16 %v1132
  %v1153 = vunpack.c.h.b16 %v1132
  %v1154 = vunpack.c.l.b16 %v1133
  %v1155 = vunpack.c.h.b16 %v1133
  %v1156 = vunpack.c.l.b16 %v1134
  %v1157 = vunpack.c.h.b16 %v1134
  %v1158 = vunpack.c.l.b16 %v1135
  %v1159 = vunpack.c.h.b16 %v1135
  %v1160 = vunpack.c.l.b16 %v1136
  %v1161 = vunpack.c.h.b16 %v1136
  %v1162 = vunpack.c.l.b16 %v1137
  %v1163 = vunpack.c.h.b16 %v1137
  %v1164 = vunpack.c.l.b16 %v1138
  %v1165 = vunpack.c.h.b16 %v1138
  %v1166 = vunpack.c.l.b16 %v1139
  %v1167 = vunpack.c.h.b16 %v1139
  %v1168 = vpack.c.b16 %v1154, %v1152
  %v1169 = vpack.c.b16 %v1155, %v1153
  %v1170 = vpack.c.b16 %v1158, %v1156
  %v1171 = vpack.c.b16 %v1159, %v1157
  %v1172 = vpack.c.b16 %v1162, %v1160
  %v1173 = vpack.c.b16 %v1163, %v1161
  %v1174 = vpack.c.b16 %v1166, %v1164
  %v1175 = vpack.c.b16 %v1167, %v1165
  %v1185 = vsel %vm155, %v1129, 0
  %1187 = vmatprep.subr.bf16.mxu0 %v1169
  %1188 = vmatpush1.bf16.msra.mxu0 %v1168
  %1189 = vmatprep.subr.bf16.mxu0 %v1171
  %1190 = vmatpush1.bf16.msra.mxu0 %v1170
  %1191 = vmatprep.subr.bf16.mxu0 %v1173
  %1192 = vmatpush1.bf16.msra.mxu0 %v1172
  %1193 = vmatprep.subr.bf16.mxu0 %v1175
  %1194 = vmatpush1.bf16.msra.mxu0 %v1174
  %1195 = vmatprep.subr.bf16.mxu0 0
  %1196 = vmatpush1.bf16.msra.mxu0 0
  %1197 = vmatprep.subr.bf16.mxu0 0
  %1198 = vmatpush1.bf16.msra.mxu0 0
  %1199 = vmatprep.subr.bf16.mxu0 0
  %1200 = vmatpush1.bf16.msra.mxu0 0
  %1201 = vmatprep.subr.bf16.mxu0 0
  %1202 = vmatpush1.bf16.msra.mxu0 0
  %1203 = vmatprep.subr.bf16.mxu0 0
  %1204 = vmatpush1.bf16.msra.mxu0 0
  %1205 = vmatprep.subr.bf16.mxu0 0
  %1206 = vmatpush1.bf16.msra.mxu0 0
  %1207 = vmatprep.subr.bf16.mxu0 0
  %1208 = vmatpush1.bf16.msra.mxu0 0
  %1209 = vmatprep.subr.bf16.mxu0 0
  %1210 = vmatpush1.bf16.msra.mxu0 0
  %1211 = vmatprep.subr.bf16.mxu0 0
  %1212 = vmatpush1.bf16.msra.mxu0 0
  %1213 = vmatprep.subr.bf16.mxu0 0
  %1214 = vmatpush1.bf16.msra.mxu0 0
  %1215 = vmatprep.subr.bf16.mxu0 0
  %1216 = vmatpush1.bf16.msra.mxu0 0
  %1217 = vmatprep.subr.bf16.mxu0 0
  %1218 = vmatpush1.bf16.msra.mxu0 0
  %1219 = vmatprep.mubr.bf16.mxu0 0
  %1220 = vmatmul.mubr.bf16.gmra.mrb[0].mxu0 %v1185
  %v1221 = vpop.f32.mrb[0].mxu0
  %v1222 = vadd.f32 %v1140, %v1221
  %v1223 = vpop.f32.mrb[0].mxu0
  %v1224 = vadd.f32 %v1141, %v1223
  %v1225 = vpop.f32.mrb[0].mxu0
  %v1226 = vadd.f32 %v1142, %v1225
  %v1227 = vpop.f32.mrb[0].mxu0
  %v1228 = vadd.f32 %v1143, %v1227
  %1229 = vdwg.mxu0
  %v1230 = vxor.u32 %v1222, 2147483648
  %v1231 = vxor.u32 %v1224, 2147483648
  %v1232 = vxor.u32 %v1226, 2147483648
  %v1233 = vxor.u32 %v1228, 2147483648
  %v1234 = vmul.f32 %v1230, 1.442695
  %v1235 = vpow.pop %v1234
  %v1236 = vmul.f32 %v1231, 1.442695
  %v1237 = vpow.pop %v1236
  %v1238 = vmul.f32 %v1232, 1.442695
  %v1239 = vpow.pop %v1238
  %v1240 = vmul.f32 %v1233, 1.442695
  %v1241 = vpow.pop %v1240
  %v1242 = vadd.f32 %v1235, 1.0
  %v1243 = vadd.f32 %v1237, 1.0
  %v1244 = vadd.f32 %v1239, 1.0
  %v1245 = vadd.f32 %v1241, 1.0
  %v1246 = vrcp.pop %v1242
  %v1247 = vmul.f32 1.0, %v1246
  %v1248 = vrcp.pop %v1243
  %v1249 = vmul.f32 1.0, %v1248
  %v1250 = vrcp.pop %v1244
  %v1251 = vmul.f32 1.0, %v1250
  %v1252 = vrcp.pop %v1245
  %v1253 = vmul.f32 1.0, %v1252
  %v1254 = vtanh.pop %v1224
  %v1255 = vtanh.pop %v1228
  %v1256 = vmul.f32 %v1247, %v1115
  %v1257 = vmul.f32 %v1251, %v1116
  %1260 = vrot.lane.b32.xlu0 %v1254, 64
  %v1261 = vpop.permute.xlu0 %1260
  %1262 = vrot.lane.b32.xlu0 %v1255, 64
  %v1263 = vpop.permute.xlu0 %1262
  %v1266 = vmul.f32 %v1247, %v1261
  %v1267 = vmul.f32 %v1251, %v1263
  %1270 = vrot.lane.b32.xlu0 %v1266, 64
  %v1271 = vpop.permute.xlu0 %1270
  %1272 = vrot.lane.b32.xlu0 %v1267, 64
  %v1273 = vpop.permute.xlu0 %1272
  %v1276 = vadd.f32 %v1256, %v1271
  %v1277 = vadd.f32 %v1257, %v1273
  %v1278 = vtanh.pop %v1276
  %v1279 = vtanh.pop %v1277
  %1282 = vrot.lane.b32.xlu0 %v1278, 64
  %v1283 = vpop.permute.xlu0 %1282
  %1284 = vrot.lane.b32.xlu0 %v1279, 64
  %v1285 = vpop.permute.xlu0 %1284
  %v1288 = vmul.f32 %v1249, %v1283
  %v1289 = vmul.f32 %v1253, %v1285
  %v1290 = vpack.c.bf16 %v1289, %v1288
  %1291 = vst.msk [vmem:[#allocation3 + $0x28] sm:$0xff] %vm484, %v1290
  %1292 = vst.msk [vmem:[#allocation3 + $0x10] sm:$0xff] %vm486, %v1290
  %v1293 = vld [vmem:[%s3] sm:$0xff]
  %v1294 = vld [vmem:[%s3 + $0x8] sm:$0xff]
  %v1295 = vld [vmem:[%s3 + $0x10] sm:$0xff]
  %v1296 = vld [vmem:[%s3 + $0x18] sm:$0xff]
  %v1297 = vld [vmem:[%s3 + $0x20] sm:$0xff]
  %v1298 = vld [vmem:[%s3 + $0x28] sm:$0xff]
  %v1299 = vld [vmem:[%s3 + $0x30] sm:$0xff]
  %v1300 = vld [vmem:[%s3 + $0x38] sm:$0xff]
  %v1301 = vld [vmem:[#allocation2 + $0xc0] sm:$0xff]
  %v1302 = vld [vmem:[#allocation2 + $0xc8] sm:$0xff]
  %v1303 = vld [vmem:[#allocation2 + $0xd0] sm:$0xff]
  %v1304 = vld [vmem:[#allocation2 + $0xd8] sm:$0xff]
  %v1313 = vunpack.c.l.b16 %v1293
  %v1314 = vunpack.c.h.b16 %v1293
  %v1315 = vunpack.c.l.b16 %v1294
  %v1316 = vunpack.c.h.b16 %v1294
  %v1317 = vunpack.c.l.b16 %v1295
  %v1318 = vunpack.c.h.b16 %v1295
  %v1319 = vunpack.c.l.b16 %v1296
  %v1320 = vunpack.c.h.b16 %v1296
  %v1321 = vunpack.c.l.b16 %v1297
  %v1322 = vunpack.c.h.b16 %v1297
  %v1323 = vunpack.c.l.b16 %v1298
  %v1324 = vunpack.c.h.b16 %v1298
  %v1325 = vunpack.c.l.b16 %v1299
  %v1326 = vunpack.c.h.b16 %v1299
  %v1327 = vunpack.c.l.b16 %v1300
  %v1328 = vunpack.c.h.b16 %v1300
  %v1329 = vpack.c.b16 %v1315, %v1313
  %v1330 = vpack.c.b16 %v1316, %v1314
  %v1331 = vpack.c.b16 %v1319, %v1317
  %v1332 = vpack.c.b16 %v1320, %v1318
  %v1333 = vpack.c.b16 %v1323, %v1321
  %v1334 = vpack.c.b16 %v1324, %v1322
  %v1335 = vpack.c.b16 %v1327, %v1325
  %v1336 = vpack.c.b16 %v1328, %v1326
  %v1346 = vsel %vm155, %v1290, 0
  %1348 = vmatprep.subr.bf16.mxu0 %v1330
  %1349 = vmatpush1.bf16.msra.mxu0 %v1329
  %1350 = vmatprep.subr.bf16.mxu0 %v1332
  %1351 = vmatpush1.bf16.msra.mxu0 %v1331
  %1352 = vmatprep.subr.bf16.mxu0 %v1334
  %1353 = vmatpush1.bf16.msra.mxu0 %v1333
  %1354 = vmatprep.subr.bf16.mxu0 %v1336
  %1355 = vmatpush1.bf16.msra.mxu0 %v1335
  %1356 = vmatprep.subr.bf16.mxu0 0
  %1357 = vmatpush1.bf16.msra.mxu0 0
  %1358 = vmatprep.subr.bf16.mxu0 0
  %1359 = vmatpush1.bf16.msra.mxu0 0
  %1360 = vmatprep.subr.bf16.mxu0 0
  %1361 = vmatpush1.bf16.msra.mxu0 0
  %1362 = vmatprep.subr.bf16.mxu0 0
  %1363 = vmatpush1.bf16.msra.mxu0 0
  %1364 = vmatprep.subr.bf16.mxu0 0
  %1365 = vmatpush1.bf16.msra.mxu0 0
  %1366 = vmatprep.subr.bf16.mxu0 0
  %1367 = vmatpush1.bf16.msra.mxu0 0
  %1368 = vmatprep.subr.bf16.mxu0 0
  %1369 = vmatpush1.bf16.msra.mxu0 0
  %1370 = vmatprep.subr.bf16.mxu0 0
  %1371 = vmatpush1.bf16.msra.mxu0 0
  %1372 = vmatprep.subr.bf16.mxu0 0
  %1373 = vmatpush1.bf16.msra.mxu0 0
  %1374 = vmatprep.subr.bf16.mxu0 0
  %1375 = vmatpush1.bf16.msra.mxu0 0
  %1376 = vmatprep.subr.bf16.mxu0 0
  %1377 = vmatpush1.bf16.msra.mxu0 0
  %1378 = vmatprep.subr.bf16.mxu0 0
  %1379 = vmatpush1.bf16.msra.mxu0 0
  %1380 = vmatprep.mubr.bf16.mxu0 0
  %1381 = vmatmul.mubr.bf16.gmra.mrb[0].mxu0 %v1346
  %v1382 = vpop.f32.mrb[0].mxu0
  %v1383 = vadd.f32 %v1301, %v1382
  %v1384 = vpop.f32.mrb[0].mxu0
  %v1385 = vadd.f32 %v1302, %v1384
  %v1386 = vpop.f32.mrb[0].mxu0
  %v1387 = vadd.f32 %v1303, %v1386
  %v1388 = vpop.f32.mrb[0].mxu0
  %v1389 = vadd.f32 %v1304, %v1388
  %1390 = vdwg.mxu0
  %v1391 = vxor.u32 %v1383, 2147483648
  %v1392 = vxor.u32 %v1385, 2147483648
  %v1393 = vxor.u32 %v1387, 2147483648
  %v1394 = vxor.u32 %v1389, 2147483648
  %v1395 = vmul.f32 %v1391, 1.442695
  %v1396 = vpow.pop %v1395
  %v1397 = vmul.f32 %v1392, 1.442695
  %v1398 = vpow.pop %v1397
  %v1399 = vmul.f32 %v1393, 1.442695
  %v1400 = vpow.pop %v1399
  %v1401 = vmul.f32 %v1394, 1.442695
  %v1402 = vpow.pop %v1401
  %v1403 = vadd.f32 %v1396, 1.0
  %v1404 = vadd.f32 %v1398, 1.0
  %v1405 = vadd.f32 %v1400, 1.0
  %v1406 = vadd.f32 %v1402, 1.0
  %v1407 = vrcp.pop %v1403
  %v1408 = vmul.f32 1.0, %v1407
  %v1409 = vrcp.pop %v1404
  %v1410 = vmul.f32 1.0, %v1409
  %v1411 = vrcp.pop %v1405
  %v1412 = vmul.f32 1.0, %v1411
  %v1413 = vrcp.pop %v1406
  %v1414 = vmul.f32 1.0, %v1413
  %v1415 = vtanh.pop %v1385
  %v1416 = vtanh.pop %v1389
  %v1417 = vmul.f32 %v1408, %v1276
  %v1418 = vmul.f32 %v1412, %v1277
  %1421 = vrot.lane.b32.xlu0 %v1415, 64
  %v1422 = vpop.permute.xlu0 %1421
  %1423 = vrot.lane.b32.xlu0 %v1416, 64
  %v1424 = vpop.permute.xlu0 %1423
  %v1427 = vmul.f32 %v1408, %v1422
  %v1428 = vmul.f32 %v1412, %v1424
  %1431 = vrot.lane.b32.xlu0 %v1427, 64
  %v1432 = vpop.permute.xlu0 %1431
  %1433 = vrot.lane.b32.xlu0 %v1428, 64
  %v1434 = vpop.permute.xlu0 %1433
  %v1437 = vadd.f32 %v1417, %v1432
  %v1438 = vadd.f32 %v1418, %v1434
  %v1439 = vtanh.pop %v1437
  %v1440 = vtanh.pop %v1438
  %1443 = vrot.lane.b32.xlu0 %v1439, 64
  %v1444 = vpop.permute.xlu0 %1443
  %1445 = vrot.lane.b32.xlu0 %v1440, 64
  %v1446 = vpop.permute.xlu0 %1445
  %v1449 = vmul.f32 %v1410, %v1444
  %v1450 = vmul.f32 %v1414, %v1446
  %v1451 = vpack.c.bf16 %v1450, %v1449
  %1452 = vst.msk [vmem:[#allocation3 + $0x30] sm:$0xff] %vm484, %v1451
  %1453 = vst.msk [vmem:[#allocation3 + $0x8] sm:$0xff] %vm486, %v1451
  %v1454 = vld [vmem:[%s3] sm:$0xff]
  %v1455 = vld [vmem:[%s3 + $0x8] sm:$0xff]
  %v1456 = vld [vmem:[%s3 + $0x10] sm:$0xff]
  %v1457 = vld [vmem:[%s3 + $0x18] sm:$0xff]
  %v1458 = vld [vmem:[%s3 + $0x20] sm:$0xff]
  %v1459 = vld [vmem:[%s3 + $0x28] sm:$0xff]
  %v1460 = vld [vmem:[%s3 + $0x30] sm:$0xff]
  %v1461 = vld [vmem:[%s3 + $0x38] sm:$0xff]
  %v1462 = vld [vmem:[#allocation2 + $0xe0] sm:$0xff]
  %v1463 = vld [vmem:[#allocation2 + $0xe8] sm:$0xff]
  %v1464 = vld [vmem:[#allocation2 + $0xf0] sm:$0xff]
  %v1465 = vld [vmem:[#allocation2 + $0xf8] sm:$0xff]
  %v1474 = vunpack.c.l.b16 %v1454
  %v1475 = vunpack.c.h.b16 %v1454
  %v1476 = vunpack.c.l.b16 %v1455
  %v1477 = vunpack.c.h.b16 %v1455
  %v1478 = vunpack.c.l.b16 %v1456
  %v1479 = vunpack.c.h.b16 %v1456
  %v1480 = vunpack.c.l.b16 %v1457
  %v1481 = vunpack.c.h.b16 %v1457
  %v1482 = vunpack.c.l.b16 %v1458
  %v1483 = vunpack.c.h.b16 %v1458
  %v1484 = vunpack.c.l.b16 %v1459
  %v1485 = vunpack.c.h.b16 %v1459
  %v1486 = vunpack.c.l.b16 %v1460
  %v1487 = vunpack.c.h.b16 %v1460
  %v1488 = vunpack.c.l.b16 %v1461
  %v1489 = vunpack.c.h.b16 %v1461
  %v1490 = vpack.c.b16 %v1476, %v1474
  %v1491 = vpack.c.b16 %v1477, %v1475
  %v1492 = vpack.c.b16 %v1480, %v1478
  %v1493 = vpack.c.b16 %v1481, %v1479
  %v1494 = vpack.c.b16 %v1484, %v1482
  %v1495 = vpack.c.b16 %v1485, %v1483
  %v1496 = vpack.c.b16 %v1488, %v1486
  %v1497 = vpack.c.b16 %v1489, %v1487
  %v1507 = vsel %vm155, %v1451, 0
  %1509 = vmatprep.subr.bf16.mxu0 %v1491
  %1510 = vmatpush1.bf16.msra.mxu0 %v1490
  %1511 = vmatprep.subr.bf16.mxu0 %v1493
  %1512 = vmatpush1.bf16.msra.mxu0 %v1492
  %1513 = vmatprep.subr.bf16.mxu0 %v1495
  %1514 = vmatpush1.bf16.msra.mxu0 %v1494
  %1515 = vmatprep.subr.bf16.mxu0 %v1497
  %1516 = vmatpush1.bf16.msra.mxu0 %v1496
  %1517 = vmatprep.subr.bf16.mxu0 0
  %1518 = vmatpush1.bf16.msra.mxu0 0
  %1519 = vmatprep.subr.bf16.mxu0 0
  %1520 = vmatpush1.bf16.msra.mxu0 0
  %1521 = vmatprep.subr.bf16.mxu0 0
  %1522 = vmatpush1.bf16.msra.mxu0 0
  %1523 = vmatprep.subr.bf16.mxu0 0
  %1524 = vmatpush1.bf16.msra.mxu0 0
  %1525 = vmatprep.subr.bf16.mxu0 0
  %1526 = vmatpush1.bf16.msra.mxu0 0
  %1527 = vmatprep.subr.bf16.mxu0 0
  %1528 = vmatpush1.bf16.msra.mxu0 0
  %1529 = vmatprep.subr.bf16.mxu0 0
  %1530 = vmatpush1.bf16.msra.mxu0 0
  %1531 = vmatprep.subr.bf16.mxu0 0
  %1532 = vmatpush1.bf16.msra.mxu0 0
  %1533 = vmatprep.subr.bf16.mxu0 0
  %1534 = vmatpush1.bf16.msra.mxu0 0
  %1535 = vmatprep.subr.bf16.mxu0 0
  %1536 = vmatpush1.bf16.msra.mxu0 0
  %1537 = vmatprep.subr.bf16.mxu0 0
  %1538 = vmatpush1.bf16.msra.mxu0 0
  %1539 = vmatprep.subr.bf16.mxu0 0
  %1540 = vmatpush1.bf16.msra.mxu0 0
  %1541 = vmatprep.mubr.bf16.mxu0 0
  %1542 = vmatmul.mubr.bf16.gmra.mrb[0].mxu0 %v1507
  %v1543 = vpop.f32.mrb[0].mxu0
  %v1544 = vadd.f32 %v1462, %v1543
  %v1545 = vpop.f32.mrb[0].mxu0
  %v1546 = vadd.f32 %v1463, %v1545
  %v1547 = vpop.f32.mrb[0].mxu0
  %v1548 = vadd.f32 %v1464, %v1547
  %v1549 = vpop.f32.mrb[0].mxu0
  %v1550 = vadd.f32 %v1465, %v1549
  %1551 = vdwg.mxu0
  %v1552 = vxor.u32 %v1544, 2147483648
  %v1553 = vxor.u32 %v1546, 2147483648
  %v1554 = vxor.u32 %v1548, 2147483648
  %v1555 = vxor.u32 %v1550, 2147483648
  %v1556 = vmul.f32 %v1552, 1.442695
  %v1557 = vpow.pop %v1556
  %v1558 = vmul.f32 %v1553, 1.442695
  %v1559 = vpow.pop %v1558
  %v1560 = vmul.f32 %v1554, 1.442695
  %v1561 = vpow.pop %v1560
  %v1562 = vmul.f32 %v1555, 1.442695
  %v1563 = vpow.pop %v1562
  %v1564 = vadd.f32 %v1557, 1.0
  %v1565 = vadd.f32 %v1559, 1.0
  %v1566 = vadd.f32 %v1561, 1.0
  %v1567 = vadd.f32 %v1563, 1.0
  %v1568 = vrcp.pop %v1564
  %v1569 = vmul.f32 1.0, %v1568
  %v1570 = vrcp.pop %v1565
  %v1571 = vmul.f32 1.0, %v1570
  %v1572 = vrcp.pop %v1566
  %v1573 = vmul.f32 1.0, %v1572
  %v1574 = vrcp.pop %v1567
  %v1575 = vmul.f32 1.0, %v1574
  %v1576 = vtanh.pop %v1546
  %v1577 = vtanh.pop %v1550
  %v1578 = vmul.f32 %v1569, %v1437
  %v1579 = vmul.f32 %v1573, %v1438
  %1582 = vrot.lane.b32.xlu0 %v1576, 64
  %v1583 = vpop.permute.xlu0 %1582
  %1584 = vrot.lane.b32.xlu0 %v1577, 64
  %v1585 = vpop.permute.xlu0 %1584
  %v1588 = vmul.f32 %v1569, %v1583
  %v1589 = vmul.f32 %v1573, %v1585
  %1592 = vrot.lane.b32.xlu0 %v1588, 64
  %v1593 = vpop.permute.xlu0 %1592
  %1594 = vrot.lane.b32.xlu0 %v1589, 64
  %v1595 = vpop.permute.xlu0 %1594
  %v1598 = vadd.f32 %v1578, %v1593
  %v1599 = vadd.f32 %v1579, %v1595
  %v1600 = vtanh.pop %v1598
  %v1601 = vtanh.pop %v1599
  %1604 = vrot.lane.b32.xlu0 %v1600, 64
  %v1605 = vpop.permute.xlu0 %1604
  %1606 = vrot.lane.b32.xlu0 %v1601, 64
  %v1607 = vpop.permute.xlu0 %1606
  %v1610 = vmul.f32 %v1571, %v1605
  %v1611 = vmul.f32 %v1575, %v1607
  %v1612 = vpack.c.bf16 %v1611, %v1610
  %1613 = vst.msk [vmem:[#allocation3 + $0x38] sm:$0xff] %vm484, %v1612
  %1614 = vst.msk [vmem:[#allocation3] sm:$0xff] %vm486, %v1612
  %v1615 = vld [vmem:[#allocation3] sm:$0xff]
  %v1616 = vld [vmem:[#allocation3 + $0x8] sm:$0xff]
  %v1617 = vld [vmem:[#allocation3 + $0x10] sm:$0xff]
  %v1618 = vld [vmem:[#allocation3 + $0x18] sm:$0xff]
  %v1619 = vld [vmem:[#allocation3 + $0x20] sm:$0xff]
  %v1620 = vld [vmem:[#allocation3 + $0x28] sm:$0xff]
  %v1621 = vld [vmem:[#allocation3 + $0x30] sm:$0xff]
  %v1622 = vld [vmem:[#allocation3 + $0x38] sm:$0xff]
  %v1623 = vld [vmem:[%s4] sm:$0xf]
  %v1624 = vld [vmem:[%s4 + $0x4] sm:$0xf]
  %v1625 = vld [vmem:[%s4 + $0x8] sm:$0xf]
  %v1626 = vld [vmem:[%s4 + $0xc] sm:$0xf]
  %v1627 = vld [vmem:[%s4 + $0x10] sm:$0xf]
  %v1628 = vld [vmem:[%s4 + $0x14] sm:$0xf]
  %v1629 = vld [vmem:[%s4 + $0x18] sm:$0xf]
  %v1630 = vld [vmem:[%s4 + $0x1c] sm:$0xf]
  %v1631 = vld [vmem:[%s5] sm:$0x1]
  %v1633 = vlaneseq
  %v1634 = vshrl.u32 %v1633, 7
  %v1635 = vsub.s32 0, %v1634
  %v1636 = vrot.slane %v1631, %v1635
  %v1646 = vunpack.c.l.b16 %v1623
  %v1647 = vunpack.c.l.b16 %v1624
  %v1648 = vunpack.c.l.b16 %v1625
  %v1649 = vunpack.c.l.b16 %v1626
  %v1650 = vunpack.c.l.b16 %v1627
  %v1651 = vunpack.c.l.b16 %v1628
  %v1652 = vunpack.c.l.b16 %v1629
  %v1653 = vunpack.c.l.b16 %v1630
  %v1654 = vpack.c.b16 %v1647, %v1646
  %v1655 = vpack.c.b16 %v1649, %v1648
  %v1656 = vpack.c.b16 %v1651, %v1650
  %v1657 = vpack.c.b16 %v1653, %v1652
  %v1663 = vsel %vm155, %v1615, 0
  %v1666 = vsel %vm155, %v1616, 0
  %v1669 = vsel %vm155, %v1617, 0
  %v1672 = vsel %vm155, %v1618, 0
  %v1675 = vsel %vm155, %v1619, 0
  %v1678 = vsel %vm155, %v1620, 0
  %v1681 = vsel %vm155, %v1621, 0
  %v1684 = vsel %vm155, %v1622, 0
  %1686 = vmatprep.subr.bf16.mxu0 0
  %1687 = vmatpush1.bf16.msra.mxu0 %v1654
  %1688 = vmatprep.subr.bf16.mxu0 0
  %1689 = vmatpush1.bf16.msra.mxu0 %v1655
  %1690 = vmatprep.subr.bf16.mxu0 0
  %1691 = vmatpush1.bf16.msra.mxu0 %v1656
  %1692 = vmatprep.subr.bf16.mxu0 0
  %1693 = vmatpush1.bf16.msra.mxu0 %v1657
  %1694 = vmatprep.subr.bf16.mxu0 0
  %1695 = vmatpush1.bf16.msra.mxu0 0
  %1696 = vmatprep.subr.bf16.mxu0 0
  %1697 = vmatpush1.bf16.msra.mxu0 0
  %1698 = vmatprep.subr.bf16.mxu0 0
  %1699 = vmatpush1.bf16.msra.mxu0 0
  %1700 = vmatprep.subr.bf16.mxu0 0
  %1701 = vmatpush1.bf16.msra.mxu0 0
  %1702 = vmatprep.subr.bf16.mxu0 0
  %1703 = vmatpush1.bf16.msra.mxu0 0
  %1704 = vmatprep.subr.bf16.mxu0 0
  %1705 = vmatpush1.bf16.msra.mxu0 0
  %1706 = vmatprep.subr.bf16.mxu0 0
  %1707 = vmatpush1.bf16.msra.mxu0 0
  %1708 = vmatprep.subr.bf16.mxu0 0
  %1709 = vmatpush1.bf16.msra.mxu0 0
  %1710 = vmatprep.subr.bf16.mxu0 0
  %1711 = vmatpush1.bf16.msra.mxu0 0
  %1712 = vmatprep.subr.bf16.mxu0 0
  %1713 = vmatpush1.bf16.msra.mxu0 0
  %1714 = vmatprep.subr.bf16.mxu0 0
  %1715 = vmatpush1.bf16.msra.mxu0 0
  %1716 = vmatprep.subr.bf16.mxu0 0
  %1717 = vmatpush1.bf16.msra.mxu0 0
  %1718 = vmatprep.mubr.bf16.mxu0 0
  %1719 = vmatmul.mubr.bf16.gmra.mrb[0].mxu0 %v1663
  %v1720 = vpop.f32.mrb[0].mxu0
  %v1721 = vadd.f32 %v1636, %v1720
  %v1722 = vpop.f32.mrb[0].mxu0
  %v1723 = vpop.f32.mrb[0].mxu0
  %v1724 = vadd.f32 %v1636, %v1723
  %v1725 = vpop.f32.mrb[0].mxu0
  %1726 = vmatprep.mubr.bf16.mxu0 0
  %1727 = vmatmul.mubr.bf16.gmra.mrb[0].mxu0 %v1666
  %v1728 = vpop.f32.mrb[0].mxu0
  %v1729 = vadd.f32 %v1636, %v1728
  %v1730 = vpop.f32.mrb[0].mxu0
  %v1731 = vpop.f32.mrb[0].mxu0
  %v1732 = vadd.f32 %v1636, %v1731
  %v1733 = vpop.f32.mrb[0].mxu0
  %1734 = vmatprep.mubr.bf16.mxu0 0
  %1735 = vmatmul.mubr.bf16.gmra.mrb[0].mxu0 %v1669
  %v1736 = vpop.f32.mrb[0].mxu0
  %v1737 = vadd.f32 %v1636, %v1736
  %v1738 = vpop.f32.mrb[0].mxu0
  %v1739 = vpop.f32.mrb[0].mxu0
  %v1740 = vadd.f32 %v1636, %v1739
  %v1741 = vpop.f32.mrb[0].mxu0
  %1742 = vmatprep.mubr.bf16.mxu0 0
  %1743 = vmatmul.mubr.bf16.gmra.mrb[0].mxu0 %v1672
  %v1744 = vpop.f32.mrb[0].mxu0
  %v1745 = vadd.f32 %v1636, %v1744
  %v1746 = vpop.f32.mrb[0].mxu0
  %v1747 = vpop.f32.mrb[0].mxu0
  %v1748 = vadd.f32 %v1636, %v1747
  %v1749 = vpop.f32.mrb[0].mxu0
  %1750 = vmatprep.mubr.bf16.mxu0 0
  %1751 = vmatmul.mubr.bf16.gmra.mrb[0].mxu0 %v1675
  %v1752 = vpop.f32.mrb[0].mxu0
  %v1753 = vadd.f32 %v1636, %v1752
  %v1754 = vpop.f32.mrb[0].mxu0
  %v1755 = vpop.f32.mrb[0].mxu0
  %v1756 = vadd.f32 %v1636, %v1755
  %v1757 = vpop.f32.mrb[0].mxu0
  %1758 = vmatprep.mubr.bf16.mxu0 0
  %1759 = vmatmul.mubr.bf16.gmra.mrb[0].mxu0 %v1678
  %v1760 = vpop.f32.mrb[0].mxu0
  %v1761 = vadd.f32 %v1636, %v1760
  %v1762 = vpop.f32.mrb[0].mxu0
  %v1763 = vpop.f32.mrb[0].mxu0
  %v1764 = vadd.f32 %v1636, %v1763
  %v1765 = vpop.f32.mrb[0].mxu0
  %1766 = vmatprep.mubr.bf16.mxu0 0
  %1767 = vmatmul.mubr.bf16.gmra.mrb[0].mxu0 %v1681
  %v1768 = vpop.f32.mrb[0].mxu0
  %v1769 = vadd.f32 %v1636, %v1768
  %v1770 = vpop.f32.mrb[0].mxu0
  %v1771 = vpop.f32.mrb[0].mxu0
  %v1772 = vadd.f32 %v1636, %v1771
  %v1773 = vpop.f32.mrb[0].mxu0
  %1774 = vmatprep.mubr.bf16.mxu0 0
  %1775 = vmatmul.mubr.bf16.gmra.mrb[0].mxu0 %v1684
  %v1776 = vpop.f32.mrb[0].mxu0
  %v1777 = vadd.f32 %v1636, %v1776
  %v1778 = vpop.f32.mrb[0].mxu0
  %v1779 = vpop.f32.mrb[0].mxu0
  %v1780 = vadd.f32 %v1636, %v1779
  %v1781 = vpop.f32.mrb[0].mxu0
  %1782 = vdwg.mxu0
  %1783 = vst [vmem:[#allocation4] sm:$0xff] %v1721
  %1784 = vst [vmem:[#allocation4 + $0x8] sm:$0xff] %v1724
  %1785 = vst [vmem:[#allocation4 + $0x10] sm:$0xff] %v1729
  %1786 = vst [vmem:[#allocation4 + $0x18] sm:$0xff] %v1732
  %1787 = vst [vmem:[#allocation4 + $0x20] sm:$0xff] %v1737
  %1788 = vst [vmem:[#allocation4 + $0x28] sm:$0xff] %v1740
  %1789 = vst [vmem:[#allocation4 + $0x30] sm:$0xff] %v1745
  %1790 = vst [vmem:[#allocation4 + $0x38] sm:$0xff] %v1748
  %1791 = vst [vmem:[#allocation4 + $0x40] sm:$0xff] %v1753
  %1792 = vst [vmem:[#allocation4 + $0x48] sm:$0xff] %v1756
  %1793 = vst [vmem:[#allocation4 + $0x50] sm:$0xff] %v1761
  %1794 = vst [vmem:[#allocation4 + $0x58] sm:$0xff] %v1764
  %1795 = vst [vmem:[#allocation4 + $0x60] sm:$0xff] %v1769
  %1796 = vst [vmem:[#allocation4 + $0x68] sm:$0xff] %v1772
  %1797 = vst [vmem:[#allocation4 + $0x70] sm:$0xff] %v1777
  %1798 = vst [vmem:[#allocation4 + $0x78] sm:$0xff] %v1780
  %v1799 = vld [vmem:[%s6] sm:$0xf]
  %v1800 = vld [vmem:[%s6 + $0x4] sm:$0xf]
  %v1801 = vld [vmem:[%s6 + $0x8] sm:$0xf]
  %v1802 = vld [vmem:[%s6 + $0xc] sm:$0xf]
  %v1803 = vld [vmem:[#allocation4] sm:$0xff]
  %v1804 = vld [vmem:[#allocation4 + $0x8] sm:$0xff]
  %v1809 = vunpack.c.l.b16 %v1799
  %v1810 = vunpack.c.l.b16 %v1800
  %v1811 = vunpack.c.l.b16 %v1801
  %v1812 = vunpack.c.l.b16 %v1802
  %v1813 = vpack.c.b16 %v1810, %v1809
  %v1814 = vpack.c.b16 %v1812, %v1811
  %v1817 = vsel %vm484, 0, 0
  %1819 = vmatprep.subr.bf16.mxu0 0
  %1820 = vmatpush1.bf16.msra.mxu0 %v1813
  %1821 = vmatprep.subr.bf16.mxu0 0
  %1822 = vmatpush1.bf16.msra.mxu0 %v1814
  %1823 = vmatprep.subr.bf16.mxu0 0
  %1824 = vmatpush1.bf16.msra.mxu0 0
  %1825 = vmatprep.subr.bf16.mxu0 0
  %1826 = vmatpush1.bf16.msra.mxu0 0
  %1827 = vmatprep.subr.bf16.mxu0 0
  %1828 = vmatpush1.bf16.msra.mxu0 0
  %1829 = vmatprep.subr.bf16.mxu0 0
  %1830 = vmatpush1.bf16.msra.mxu0 0
  %1831 = vmatprep.subr.bf16.mxu0 0
  %1832 = vmatpush1.bf16.msra.mxu0 0
  %1833 = vmatprep.subr.bf16.mxu0 0
  %1834 = vmatpush1.bf16.msra.mxu0 0
  %1835 = vmatprep.subr.bf16.mxu0 0
  %1836 = vmatpush1.bf16.msra.mxu0 0
  %1837 = vmatprep.subr.bf16.mxu0 0
  %1838 = vmatpush1.bf16.msra.mxu0 0
  %1839 = vmatprep.subr.bf16.mxu0 0
  %1840 = vmatpush1.bf16.msra.mxu0 0
  %1841 = vmatprep.subr.bf16.mxu0 0
  %1842 = vmatpush1.bf16.msra.mxu0 0
  %1843 = vmatprep.subr.bf16.mxu0 0
  %1844 = vmatpush1.bf16.msra.mxu0 0
  %1845 = vmatprep.subr.bf16.mxu0 0
  %1846 = vmatpush1.bf16.msra.mxu0 0
  %1847 = vmatprep.subr.bf16.mxu0 0
  %1848 = vmatpush1.bf16.msra.mxu0 0
  %1849 = vmatprep.subr.bf16.mxu0 0
  %1850 = vmatpush1.bf16.msra.mxu0 0
  %1851 = vmatprep.mubr.bf16.mxu0 0
  %1852 = vmatmul.mubr.bf16.gmra.mrb[0].mxu0 %v1817
  %v1853 = vpop.f32.mrb[0].mxu0
  %v1854 = vadd.f32 %v1803, %v1853
  %v1855 = vpop.f32.mrb[0].mxu0
  %v1856 = vpop.f32.mrb[0].mxu0
  %v1857 = vadd.f32 %v1804, %v1856
  %v1858 = vpop.f32.mrb[0].mxu0
  %1859 = vdwg.mxu0
  %v1860 = vxor.u32 %v1854, 2147483648
  %v1861 = vxor.u32 %v1857, 2147483648
  %v1862 = vmul.f32 %v1860, 1.442695
  %v1863 = vpow.pop %v1862
  %v1864 = vmul.f32 %v1861, 1.442695
  %v1865 = vpow.pop %v1864
  %v1866 = vadd.f32 %v1863, 1.0
  %v1867 = vadd.f32 %v1865, 1.0
  %v1868 = vrcp.pop %v1866
  %v1869 = vmul.f32 1.0, %v1868
  %v1870 = vrcp.pop %v1867
  %v1871 = vmul.f32 1.0, %v1870
  %v1872 = vtanh.pop %v1854
  %v1873 = vtanh.pop %v1857
  %v1874 = vmul.f32 %v1869, 0.0
  %v1875 = vmul.f32 %v1871, 0.0
  %1878 = vrot.lane.b32.xlu0 %v1872, 32
  %v1879 = vpop.permute.xlu0 %1878
  %1880 = vrot.lane.b32.xlu0 %v1873, 32
  %v1881 = vpop.permute.xlu0 %1880
  %v1884 = vmul.f32 %v1869, %v1879
  %v1885 = vmul.f32 %v1871, %v1881
  %1888 = vrot.lane.b32.xlu0 %v1884, 32
  %v1889 = vpop.permute.xlu0 %1888
  %1890 = vrot.lane.b32.xlu0 %v1885, 32
  %v1891 = vpop.permute.xlu0 %1890
  %v1894 = vadd.f32 %v1874, %v1889
  %v1895 = vadd.f32 %v1875, %v1891
  %v1896 = vtanh.pop %v1894
  %v1897 = vtanh.pop %v1895
  %1900 = vrot.lane.b32.xlu0 %v1896, 32
  %v1901 = vpop.permute.xlu0 %1900
  %1902 = vrot.lane.b32.xlu0 %v1897, 32
  %v1903 = vpop.permute.xlu0 %1902
  %v1906 = vmul.f32 %v1869, %v1901
  %v1907 = vmul.f32 %v1871, %v1903
  %v1908 = vpack.c.bf16 %v1907, %v1906
  %v1909 = vld [vmem:[#allocation4 + $0x10] sm:$0xff]
  %v1910 = vld [vmem:[#allocation4 + $0x18] sm:$0xff]
  %1912 = vrot.lane.b32.xlu0 %v1908, 64
  %v1913 = vpop.permute.xlu0 %1912
  %v1915 = vsel %vm484, %v1913, 0
  %1917 = vmatprep.subr.bf16.mxu0 0
  %1918 = vmatpush1.bf16.msra.mxu0 %v1813
  %1919 = vmatprep.subr.bf16.mxu0 0
  %1920 = vmatpush1.bf16.msra.mxu0 %v1814
  %1921 = vmatprep.subr.bf16.mxu0 0
  %1922 = vmatpush1.bf16.msra.mxu0 0
  %1923 = vmatprep.subr.bf16.mxu0 0
  %1924 = vmatpush1.bf16.msra.mxu0 0
  %1925 = vmatprep.subr.bf16.mxu0 0
  %1926 = vmatpush1.bf16.msra.mxu0 0
  %1927 = vmatprep.subr.bf16.mxu0 0
  %1928 = vmatpush1.bf16.msra.mxu0 0
  %1929 = vmatprep.subr.bf16.mxu0 0
  %1930 = vmatpush1.bf16.msra.mxu0 0
  %1931 = vmatprep.subr.bf16.mxu0 0
  %1932 = vmatpush1.bf16.msra.mxu0 0
  %1933 = vmatprep.subr.bf16.mxu0 0
  %1934 = vmatpush1.bf16.msra.mxu0 0
  %1935 = vmatprep.subr.bf16.mxu0 0
  %1936 = vmatpush1.bf16.msra.mxu0 0
  %1937 = vmatprep.subr.bf16.mxu0 0
  %1938 = vmatpush1.bf16.msra.mxu0 0
  %1939 = vmatprep.subr.bf16.mxu0 0
  %1940 = vmatpush1.bf16.msra.mxu0 0
  %1941 = vmatprep.subr.bf16.mxu0 0
  %1942 = vmatpush1.bf16.msra.mxu0 0
  %1943 = vmatprep.subr.bf16.mxu0 0
  %1944 = vmatpush1.bf16.msra.mxu0 0
  %1945 = vmatprep.subr.bf16.mxu0 0
  %1946 = vmatpush1.bf16.msra.mxu0 0
  %1947 = vmatprep.subr.bf16.mxu0 0
  %1948 = vmatpush1.bf16.msra.mxu0 0
  %1949 = vmatprep.mubr.bf16.mxu0 0
  %1950 = vmatmul.mubr.bf16.gmra.mrb[0].mxu0 %v1915
  %v1951 = vpop.f32.mrb[0].mxu0
  %v1952 = vadd.f32 %v1909, %v1951
  %v1953 = vpop.f32.mrb[0].mxu0
  %v1954 = vpop.f32.mrb[0].mxu0
  %v1955 = vadd.f32 %v1910, %v1954
  %v1956 = vpop.f32.mrb[0].mxu0
  %1957 = vdwg.mxu0
  %v1958 = vxor.u32 %v1952, 2147483648
  %v1959 = vxor.u32 %v1955, 2147483648
  %v1960 = vmul.f32 %v1958, 1.442695
  %v1961 = vpow.pop %v1960
  %v1962 = vmul.f32 %v1959, 1.442695
  %v1963 = vpow.pop %v1962
  %v1964 = vadd.f32 %v1961, 1.0
  %v1965 = vadd.f32 %v1963, 1.0
  %v1966 = vrcp.pop %v1964
  %v1967 = vmul.f32 1.0, %v1966
  %v1968 = vrcp.pop %v1965
  %v1969 = vmul.f32 1.0, %v1968
  %v1970 = vtanh.pop %v1952
  %v1971 = vtanh.pop %v1955
  %v1972 = vmul.f32 %v1967, %v1894
  %v1973 = vmul.f32 %v1969, %v1895
  %1976 = vrot.lane.b32.xlu0 %v1970, 32
  %v1977 = vpop.permute.xlu0 %1976
  %1978 = vrot.lane.b32.xlu0 %v1971, 32
  %v1979 = vpop.permute.xlu0 %1978
  %v1982 = vmul.f32 %v1967, %v1977
  %v1983 = vmul.f32 %v1969, %v1979
  %1986 = vrot.lane.b32.xlu0 %v1982, 32
  %v1987 = vpop.permute.xlu0 %1986
  %1988 = vrot.lane.b32.xlu0 %v1983, 32
  %v1989 = vpop.permute.xlu0 %1988
  %v1992 = vadd.f32 %v1972, %v1987
  %v1993 = vadd.f32 %v1973, %v1989
  %v1994 = vtanh.pop %v1992
  %v1995 = vtanh.pop %v1993
  %1998 = vrot.lane.b32.xlu0 %v1994, 32
  %v1999 = vpop.permute.xlu0 %1998
  %2000 = vrot.lane.b32.xlu0 %v1995, 32
  %v2001 = vpop.permute.xlu0 %2000
  %v2004 = vmul.f32 %v1967, %v1999
  %v2005 = vmul.f32 %v1969, %v2001
  %v2006 = vpack.c.bf16 %v2005, %v2004
  %v2007 = vld [vmem:[#allocation4 + $0x20] sm:$0xff]
  %v2008 = vld [vmem:[#allocation4 + $0x28] sm:$0xff]
  %2010 = vrot.lane.b32.xlu0 %v2006, 64
  %v2011 = vpop.permute.xlu0 %2010
  %v2013 = vsel %vm484, %v2011, 0
  %2015 = vmatprep.subr.bf16.mxu0 0
  %2016 = vmatpush1.bf16.msra.mxu0 %v1813
  %2017 = vmatprep.subr.bf16.mxu0 0
  %2018 = vmatpush1.bf16.msra.mxu0 %v1814
  %2019 = vmatprep.subr.bf16.mxu0 0
  %2020 = vmatpush1.bf16.msra.mxu0 0
  %2021 = vmatprep.subr.bf16.mxu0 0
  %2022 = vmatpush1.bf16.msra.mxu0 0
  %2023 = vmatprep.subr.bf16.mxu0 0
  %2024 = vmatpush1.bf16.msra.mxu0 0
  %2025 = vmatprep.subr.bf16.mxu0 0
  %2026 = vmatpush1.bf16.msra.mxu0 0
  %2027 = vmatprep.subr.bf16.mxu0 0
  %2028 = vmatpush1.bf16.msra.mxu0 0
  %2029 = vmatprep.subr.bf16.mxu0 0
  %2030 = vmatpush1.bf16.msra.mxu0 0
  %2031 = vmatprep.subr.bf16.mxu0 0
  %2032 = vmatpush1.bf16.msra.mxu0 0
  %2033 = vmatprep.subr.bf16.mxu0 0
  %2034 = vmatpush1.bf16.msra.mxu0 0
  %2035 = vmatprep.subr.bf16.mxu0 0
  %2036 = vmatpush1.bf16.msra.mxu0 0
  %2037 = vmatprep.subr.bf16.mxu0 0
  %2038 = vmatpush1.bf16.msra.mxu0 0
  %2039 = vmatprep.subr.bf16.mxu0 0
  %2040 = vmatpush1.bf16.msra.mxu0 0
  %2041 = vmatprep.subr.bf16.mxu0 0
  %2042 = vmatpush1.bf16.msra.mxu0 0
  %2043 = vmatprep.subr.bf16.mxu0 0
  %2044 = vmatpush1.bf16.msra.mxu0 0
  %2045 = vmatprep.subr.bf16.mxu0 0
  %2046 = vmatpush1.bf16.msra.mxu0 0
  %2047 = vmatprep.mubr.bf16.mxu0 0
  %2048 = vmatmul.mubr.bf16.gmra.mrb[0].mxu0 %v2013
  %v2049 = vpop.f32.mrb[0].mxu0
  %v2050 = vadd.f32 %v2007, %v2049
  %v2051 = vpop.f32.mrb[0].mxu0
  %v2052 = vpop.f32.mrb[0].mxu0
  %v2053 = vadd.f32 %v2008, %v2052
  %v2054 = vpop.f32.mrb[0].mxu0
  %2055 = vdwg.mxu0
  %v2056 = vxor.u32 %v2050, 2147483648
  %v2057 = vxor.u32 %v2053, 2147483648
  %v2058 = vmul.f32 %v2056, 1.442695
  %v2059 = vpow.pop %v2058
  %v2060 = vmul.f32 %v2057, 1.442695
  %v2061 = vpow.pop %v2060
  %v2062 = vadd.f32 %v2059, 1.0
  %v2063 = vadd.f32 %v2061, 1.0
  %v2064 = vrcp.pop %v2062
  %v2065 = vmul.f32 1.0, %v2064
  %v2066 = vrcp.pop %v2063
  %v2067 = vmul.f32 1.0, %v2066
  %v2068 = vtanh.pop %v2050
  %v2069 = vtanh.pop %v2053
  %v2070 = vmul.f32 %v2065, %v1992
  %v2071 = vmul.f32 %v2067, %v1993
  %2074 = vrot.lane.b32.xlu0 %v2068, 32
  %v2075 = vpop.permute.xlu0 %2074
  %2076 = vrot.lane.b32.xlu0 %v2069, 32
  %v2077 = vpop.permute.xlu0 %2076
  %v2080 = vmul.f32 %v2065, %v2075
  %v2081 = vmul.f32 %v2067, %v2077
  %2084 = vrot.lane.b32.xlu0 %v2080, 32
  %v2085 = vpop.permute.xlu0 %2084
  %2086 = vrot.lane.b32.xlu0 %v2081, 32
  %v2087 = vpop.permute.xlu0 %2086
  %v2090 = vadd.f32 %v2070, %v2085
  %v2091 = vadd.f32 %v2071, %v2087
  %v2092 = vtanh.pop %v2090
  %v2093 = vtanh.pop %v2091
  %2096 = vrot.lane.b32.xlu0 %v2092, 32
  %v2097 = vpop.permute.xlu0 %2096
  %2098 = vrot.lane.b32.xlu0 %v2093, 32
  %v2099 = vpop.permute.xlu0 %2098
  %v2102 = vmul.f32 %v2065, %v2097
  %v2103 = vmul.f32 %v2067, %v2099
  %v2104 = vpack.c.bf16 %v2103, %v2102
  %v2105 = vld [vmem:[#allocation4 + $0x30] sm:$0xff]
  %v2106 = vld [vmem:[#allocation4 + $0x38] sm:$0xff]
  %2108 = vrot.lane.b32.xlu0 %v2104, 64
  %v2109 = vpop.permute.xlu0 %2108
  %v2111 = vsel %vm484, %v2109, 0
  %2113 = vmatprep.subr.bf16.mxu0 0
  %2114 = vmatpush1.bf16.msra.mxu0 %v1813
  %2115 = vmatprep.subr.bf16.mxu0 0
  %2116 = vmatpush1.bf16.msra.mxu0 %v1814
  %2117 = vmatprep.subr.bf16.mxu0 0
  %2118 = vmatpush1.bf16.msra.mxu0 0
  %2119 = vmatprep.subr.bf16.mxu0 0
  %2120 = vmatpush1.bf16.msra.mxu0 0
  %2121 = vmatprep.subr.bf16.mxu0 0
  %2122 = vmatpush1.bf16.msra.mxu0 0
  %2123 = vmatprep.subr.bf16.mxu0 0
  %2124 = vmatpush1.bf16.msra.mxu0 0
  %2125 = vmatprep.subr.bf16.mxu0 0
  %2126 = vmatpush1.bf16.msra.mxu0 0
  %2127 = vmatprep.subr.bf16.mxu0 0
  %2128 = vmatpush1.bf16.msra.mxu0 0
  %2129 = vmatprep.subr.bf16.mxu0 0
  %2130 = vmatpush1.bf16.msra.mxu0 0
  %2131 = vmatprep.subr.bf16.mxu0 0
  %2132 = vmatpush1.bf16.msra.mxu0 0
  %2133 = vmatprep.subr.bf16.mxu0 0
  %2134 = vmatpush1.bf16.msra.mxu0 0
  %2135 = vmatprep.subr.bf16.mxu0 0
  %2136 = vmatpush1.bf16.msra.mxu0 0
  %2137 = vmatprep.subr.bf16.mxu0 0
  %2138 = vmatpush1.bf16.msra.mxu0 0
  %2139 = vmatprep.subr.bf16.mxu0 0
  %2140 = vmatpush1.bf16.msra.mxu0 0
  %2141 = vmatprep.subr.bf16.mxu0 0
  %2142 = vmatpush1.bf16.msra.mxu0 0
  %2143 = vmatprep.subr.bf16.mxu0 0
  %2144 = vmatpush1.bf16.msra.mxu0 0
  %2145 = vmatprep.mubr.bf16.mxu0 0
  %2146 = vmatmul.mubr.bf16.gmra.mrb[0].mxu0 %v2111
  %v2147 = vpop.f32.mrb[0].mxu0
  %v2148 = vadd.f32 %v2105, %v2147
  %v2149 = vpop.f32.mrb[0].mxu0
  %v2150 = vpop.f32.mrb[0].mxu0
  %v2151 = vadd.f32 %v2106, %v2150
  %v2152 = vpop.f32.mrb[0].mxu0
  %2153 = vdwg.mxu0
  %v2154 = vxor.u32 %v2148, 2147483648
  %v2155 = vxor.u32 %v2151, 2147483648
  %v2156 = vmul.f32 %v2154, 1.442695
  %v2157 = vpow.pop %v2156
  %v2158 = vmul.f32 %v2155, 1.442695
  %v2159 = vpow.pop %v2158
  %v2160 = vadd.f32 %v2157, 1.0
  %v2161 = vadd.f32 %v2159, 1.0
  %v2162 = vrcp.pop %v2160
  %v2163 = vmul.f32 1.0, %v2162
  %v2164 = vrcp.pop %v2161
  %v2165 = vmul.f32 1.0, %v2164
  %v2166 = vtanh.pop %v2148
  %v2167 = vtanh.pop %v2151
  %v2168 = vmul.f32 %v2163, %v2090
  %v2169 = vmul.f32 %v2165, %v2091
  %2172 = vrot.lane.b32.xlu0 %v2166, 32
  %v2173 = vpop.permute.xlu0 %2172
  %2174 = vrot.lane.b32.xlu0 %v2167, 32
  %v2175 = vpop.permute.xlu0 %2174
  %v2178 = vmul.f32 %v2163, %v2173
  %v2179 = vmul.f32 %v2165, %v2175
  %2182 = vrot.lane.b32.xlu0 %v2178, 32
  %v2183 = vpop.permute.xlu0 %2182
  %2184 = vrot.lane.b32.xlu0 %v2179, 32
  %v2185 = vpop.permute.xlu0 %2184
  %v2188 = vadd.f32 %v2168, %v2183
  %v2189 = vadd.f32 %v2169, %v2185
  %v2190 = vtanh.pop %v2188
  %v2191 = vtanh.pop %v2189
  %2194 = vrot.lane.b32.xlu0 %v2190, 32
  %v2195 = vpop.permute.xlu0 %2194
  %2196 = vrot.lane.b32.xlu0 %v2191, 32
  %v2197 = vpop.permute.xlu0 %2196
  %v2200 = vmul.f32 %v2163, %v2195
  %v2201 = vmul.f32 %v2165, %v2197
  %v2202 = vpack.c.bf16 %v2201, %v2200
  %v2203 = vld [vmem:[#allocation4 + $0x40] sm:$0xff]
  %v2204 = vld [vmem:[#allocation4 + $0x48] sm:$0xff]
  %2206 = vrot.lane.b32.xlu0 %v2202, 64
  %v2207 = vpop.permute.xlu0 %2206
  %v2209 = vsel %vm484, %v2207, 0
  %2211 = vmatprep.subr.bf16.mxu0 0
  %2212 = vmatpush1.bf16.msra.mxu0 %v1813
  %2213 = vmatprep.subr.bf16.mxu0 0
  %2214 = vmatpush1.bf16.msra.mxu0 %v1814
  %2215 = vmatprep.subr.bf16.mxu0 0
  %2216 = vmatpush1.bf16.msra.mxu0 0
  %2217 = vmatprep.subr.bf16.mxu0 0
  %2218 = vmatpush1.bf16.msra.mxu0 0
  %2219 = vmatprep.subr.bf16.mxu0 0
  %2220 = vmatpush1.bf16.msra.mxu0 0
  %2221 = vmatprep.subr.bf16.mxu0 0
  %2222 = vmatpush1.bf16.msra.mxu0 0
  %2223 = vmatprep.subr.bf16.mxu0 0
  %2224 = vmatpush1.bf16.msra.mxu0 0
  %2225 = vmatprep.subr.bf16.mxu0 0
  %2226 = vmatpush1.bf16.msra.mxu0 0
  %2227 = vmatprep.subr.bf16.mxu0 0
  %2228 = vmatpush1.bf16.msra.mxu0 0
  %2229 = vmatprep.subr.bf16.mxu0 0
  %2230 = vmatpush1.bf16.msra.mxu0 0
  %2231 = vmatprep.subr.bf16.mxu0 0
  %2232 = vmatpush1.bf16.msra.mxu0 0
  %2233 = vmatprep.subr.bf16.mxu0 0
  %2234 = vmatpush1.bf16.msra.mxu0 0
  %2235 = vmatprep.subr.bf16.mxu0 0
  %2236 = vmatpush1.bf16.msra.mxu0 0
  %2237 = vmatprep.subr.bf16.mxu0 0
  %2238 = vmatpush1.bf16.msra.mxu0 0
  %2239 = vmatprep.subr.bf16.mxu0 0
  %2240 = vmatpush1.bf16.msra.mxu0 0
  %2241 = vmatprep.subr.bf16.mxu0 0
  %2242 = vmatpush1.bf16.msra.mxu0 0
  %2243 = vmatprep.mubr.bf16.mxu0 0
  %2244 = vmatmul.mubr.bf16.gmra.mrb[0].mxu0 %v2209
  %v2245 = vpop.f32.mrb[0].mxu0
  %v2246 = vadd.f32 %v2203, %v2245
  %v2247 = vpop.f32.mrb[0].mxu0
  %v2248 = vpop.f32.mrb[0].mxu0
  %v2249 = vadd.f32 %v2204, %v2248
  %v2250 = vpop.f32.mrb[0].mxu0
  %2251 = vdwg.mxu0
  %v2252 = vxor.u32 %v2246, 2147483648
  %v2253 = vxor.u32 %v2249, 2147483648
  %v2254 = vmul.f32 %v2252, 1.442695
  %v2255 = vpow.pop %v2254
  %v2256 = vmul.f32 %v2253, 1.442695
  %v2257 = vpow.pop %v2256
  %v2258 = vadd.f32 %v2255, 1.0
  %v2259 = vadd.f32 %v2257, 1.0
  %v2260 = vrcp.pop %v2258
  %v2261 = vmul.f32 1.0, %v2260
  %v2262 = vrcp.pop %v2259
  %v2263 = vmul.f32 1.0, %v2262
  %v2264 = vtanh.pop %v2246
  %v2265 = vtanh.pop %v2249
  %v2266 = vmul.f32 %v2261, %v2188
  %v2267 = vmul.f32 %v2263, %v2189
  %2270 = vrot.lane.b32.xlu0 %v2264, 32
  %v2271 = vpop.permute.xlu0 %2270
  %2272 = vrot.lane.b32.xlu0 %v2265, 32
  %v2273 = vpop.permute.xlu0 %2272
  %v2276 = vmul.f32 %v2261, %v2271
  %v2277 = vmul.f32 %v2263, %v2273
  %2280 = vrot.lane.b32.xlu0 %v2276, 32
  %v2281 = vpop.permute.xlu0 %2280
  %2282 = vrot.lane.b32.xlu0 %v2277, 32
  %v2283 = vpop.permute.xlu0 %2282
  %v2286 = vadd.f32 %v2266, %v2281
  %v2287 = vadd.f32 %v2267, %v2283
  %v2288 = vtanh.pop %v2286
  %v2289 = vtanh.pop %v2287
  %2292 = vrot.lane.b32.xlu0 %v2288, 32
  %v2293 = vpop.permute.xlu0 %2292
  %2294 = vrot.lane.b32.xlu0 %v2289, 32
  %v2295 = vpop.permute.xlu0 %2294
  %v2298 = vmul.f32 %v2261, %v2293
  %v2299 = vmul.f32 %v2263, %v2295
  %v2300 = vpack.c.bf16 %v2299, %v2298
  %v2301 = vld [vmem:[#allocation4 + $0x50] sm:$0xff]
  %v2302 = vld [vmem:[#allocation4 + $0x58] sm:$0xff]
  %2304 = vrot.lane.b32.xlu0 %v2300, 64
  %v2305 = vpop.permute.xlu0 %2304
  %v2307 = vsel %vm484, %v2305, 0
  %2309 = vmatprep.subr.bf16.mxu0 0
  %2310 = vmatpush1.bf16.msra.mxu0 %v1813
  %2311 = vmatprep.subr.bf16.mxu0 0
  %2312 = vmatpush1.bf16.msra.mxu0 %v1814
  %2313 = vmatprep.subr.bf16.mxu0 0
  %2314 = vmatpush1.bf16.msra.mxu0 0
  %2315 = vmatprep.subr.bf16.mxu0 0
  %2316 = vmatpush1.bf16.msra.mxu0 0
  %2317 = vmatprep.subr.bf16.mxu0 0
  %2318 = vmatpush1.bf16.msra.mxu0 0
  %2319 = vmatprep.subr.bf16.mxu0 0
  %2320 = vmatpush1.bf16.msra.mxu0 0
  %2321 = vmatprep.subr.bf16.mxu0 0
  %2322 = vmatpush1.bf16.msra.mxu0 0
  %2323 = vmatprep.subr.bf16.mxu0 0
  %2324 = vmatpush1.bf16.msra.mxu0 0
  %2325 = vmatprep.subr.bf16.mxu0 0
  %2326 = vmatpush1.bf16.msra.mxu0 0
  %2327 = vmatprep.subr.bf16.mxu0 0
  %2328 = vmatpush1.bf16.msra.mxu0 0
  %2329 = vmatprep.subr.bf16.mxu0 0
  %2330 = vmatpush1.bf16.msra.mxu0 0
  %2331 = vmatprep.subr.bf16.mxu0 0
  %2332 = vmatpush1.bf16.msra.mxu0 0
  %2333 = vmatprep.subr.bf16.mxu0 0
  %2334 = vmatpush1.bf16.msra.mxu0 0
  %2335 = vmatprep.subr.bf16.mxu0 0
  %2336 = vmatpush1.bf16.msra.mxu0 0
  %2337 = vmatprep.subr.bf16.mxu0 0
  %2338 = vmatpush1.bf16.msra.mxu0 0
  %2339 = vmatprep.subr.bf16.mxu0 0
  %2340 = vmatpush1.bf16.msra.mxu0 0
  %2341 = vmatprep.mubr.bf16.mxu0 0
  %2342 = vmatmul.mubr.bf16.gmra.mrb[0].mxu0 %v2307
  %v2343 = vpop.f32.mrb[0].mxu0
  %v2344 = vadd.f32 %v2301, %v2343
  %v2345 = vpop.f32.mrb[0].mxu0
  %v2346 = vpop.f32.mrb[0].mxu0
  %v2347 = vadd.f32 %v2302, %v2346
  %v2348 = vpop.f32.mrb[0].mxu0
  %2349 = vdwg.mxu0
  %v2350 = vxor.u32 %v2344, 2147483648
  %v2351 = vxor.u32 %v2347, 2147483648
  %v2352 = vmul.f32 %v2350, 1.442695
  %v2353 = vpow.pop %v2352
  %v2354 = vmul.f32 %v2351, 1.442695
  %v2355 = vpow.pop %v2354
  %v2356 = vadd.f32 %v2353, 1.0
  %v2357 = vadd.f32 %v2355, 1.0
  %v2358 = vrcp.pop %v2356
  %v2359 = vmul.f32 1.0, %v2358
  %v2360 = vrcp.pop %v2357
  %v2361 = vmul.f32 1.0, %v2360
  %v2362 = vtanh.pop %v2344
  %v2363 = vtanh.pop %v2347
  %v2364 = vmul.f32 %v2359, %v2286
  %v2365 = vmul.f32 %v2361, %v2287
  %2368 = vrot.lane.b32.xlu0 %v2362, 32
  %v2369 = vpop.permute.xlu0 %2368
  %2370 = vrot.lane.b32.xlu0 %v2363, 32
  %v2371 = vpop.permute.xlu0 %2370
  %v2374 = vmul.f32 %v2359, %v2369
  %v2375 = vmul.f32 %v2361, %v2371
  %2378 = vrot.lane.b32.xlu0 %v2374, 32
  %v2379 = vpop.permute.xlu0 %2378
  %2380 = vrot.lane.b32.xlu0 %v2375, 32
  %v2381 = vpop.permute.xlu0 %2380
  %v2384 = vadd.f32 %v2364, %v2379
  %v2385 = vadd.f32 %v2365, %v2381
  %v2386 = vtanh.pop %v2384
  %v2387 = vtanh.pop %v2385
  %2390 = vrot.lane.b32.xlu0 %v2386, 32
  %v2391 = vpop.permute.xlu0 %2390
  %2392 = vrot.lane.b32.xlu0 %v2387, 32
  %v2393 = vpop.permute.xlu0 %2392
  %v2396 = vmul.f32 %v2359, %v2391
  %v2397 = vmul.f32 %v2361, %v2393
  %v2398 = vpack.c.bf16 %v2397, %v2396
  %v2399 = vld [vmem:[#allocation4 + $0x60] sm:$0xff]
  %v2400 = vld [vmem:[#allocation4 + $0x68] sm:$0xff]
  %2402 = vrot.lane.b32.xlu0 %v2398, 64
  %v2403 = vpop.permute.xlu0 %2402
  %v2405 = vsel %vm484, %v2403, 0
  %2407 = vmatprep.subr.bf16.mxu0 0
  %2408 = vmatpush1.bf16.msra.mxu0 %v1813
  %2409 = vmatprep.subr.bf16.mxu0 0
  %2410 = vmatpush1.bf16.msra.mxu0 %v1814
  %2411 = vmatprep.subr.bf16.mxu0 0
  %2412 = vmatpush1.bf16.msra.mxu0 0
  %2413 = vmatprep.subr.bf16.mxu0 0
  %2414 = vmatpush1.bf16.msra.mxu0 0
  %2415 = vmatprep.subr.bf16.mxu0 0
  %2416 = vmatpush1.bf16.msra.mxu0 0
  %2417 = vmatprep.subr.bf16.mxu0 0
  %2418 = vmatpush1.bf16.msra.mxu0 0
  %2419 = vmatprep.subr.bf16.mxu0 0
  %2420 = vmatpush1.bf16.msra.mxu0 0
  %2421 = vmatprep.subr.bf16.mxu0 0
  %2422 = vmatpush1.bf16.msra.mxu0 0
  %2423 = vmatprep.subr.bf16.mxu0 0
  %2424 = vmatpush1.bf16.msra.mxu0 0
  %2425 = vmatprep.subr.bf16.mxu0 0
  %2426 = vmatpush1.bf16.msra.mxu0 0
  %2427 = vmatprep.subr.bf16.mxu0 0
  %2428 = vmatpush1.bf16.msra.mxu0 0
  %2429 = vmatprep.subr.bf16.mxu0 0
  %2430 = vmatpush1.bf16.msra.mxu0 0
  %2431 = vmatprep.subr.bf16.mxu0 0
  %2432 = vmatpush1.bf16.msra.mxu0 0
  %2433 = vmatprep.subr.bf16.mxu0 0
  %2434 = vmatpush1.bf16.msra.mxu0 0
  %2435 = vmatprep.subr.bf16.mxu0 0
  %2436 = vmatpush1.bf16.msra.mxu0 0
  %2437 = vmatprep.subr.bf16.mxu0 0
  %2438 = vmatpush1.bf16.msra.mxu0 0
  %2439 = vmatprep.mubr.bf16.mxu0 0
  %2440 = vmatmul.mubr.bf16.gmra.mrb[0].mxu0 %v2405
  %v2441 = vpop.f32.mrb[0].mxu0
  %v2442 = vadd.f32 %v2399, %v2441
  %v2443 = vpop.f32.mrb[0].mxu0
  %v2444 = vpop.f32.mrb[0].mxu0
  %v2445 = vadd.f32 %v2400, %v2444
  %v2446 = vpop.f32.mrb[0].mxu0
  %2447 = vdwg.mxu0
  %v2448 = vxor.u32 %v2442, 2147483648
  %v2449 = vxor.u32 %v2445, 2147483648
  %v2450 = vmul.f32 %v2448, 1.442695
  %v2451 = vpow.pop %v2450
  %v2452 = vmul.f32 %v2449, 1.442695
  %v2453 = vpow.pop %v2452
  %v2454 = vadd.f32 %v2451, 1.0
  %v2455 = vadd.f32 %v2453, 1.0
  %v2456 = vrcp.pop %v2454
  %v2457 = vmul.f32 1.0, %v2456
  %v2458 = vrcp.pop %v2455
  %v2459 = vmul.f32 1.0, %v2458
  %v2460 = vtanh.pop %v2442
  %v2461 = vtanh.pop %v2445
  %v2462 = vmul.f32 %v2457, %v2384
  %v2463 = vmul.f32 %v2459, %v2385
  %2466 = vrot.lane.b32.xlu0 %v2460, 32
  %v2467 = vpop.permute.xlu0 %2466
  %2468 = vrot.lane.b32.xlu0 %v2461, 32
  %v2469 = vpop.permute.xlu0 %2468
  %v2472 = vmul.f32 %v2457, %v2467
  %v2473 = vmul.f32 %v2459, %v2469
  %2476 = vrot.lane.b32.xlu0 %v2472, 32
  %v2477 = vpop.permute.xlu0 %2476
  %2478 = vrot.lane.b32.xlu0 %v2473, 32
  %v2479 = vpop.permute.xlu0 %2478
  %v2482 = vadd.f32 %v2462, %v2477
  %v2483 = vadd.f32 %v2463, %v2479
  %v2484 = vtanh.pop %v2482
  %v2485 = vtanh.pop %v2483
  %2488 = vrot.lane.b32.xlu0 %v2484, 32
  %v2489 = vpop.permute.xlu0 %2488
  %2490 = vrot.lane.b32.xlu0 %v2485, 32
  %v2491 = vpop.permute.xlu0 %2490
  %v2494 = vmul.f32 %v2457, %v2489
  %v2495 = vmul.f32 %v2459, %v2491
  %v2496 = vpack.c.bf16 %v2495, %v2494
  %v2497 = vld [vmem:[#allocation4 + $0x70] sm:$0xff]
  %v2498 = vld [vmem:[#allocation4 + $0x78] sm:$0xff]
  %2500 = vrot.lane.b32.xlu0 %v2496, 64
  %v2501 = vpop.permute.xlu0 %2500
  %v2503 = vsel %vm484, %v2501, 0
  %2505 = vmatprep.subr.bf16.mxu0 0
  %2506 = vmatpush1.bf16.msra.mxu0 %v1813
  %2507 = vmatprep.subr.bf16.mxu0 0
  %2508 = vmatpush1.bf16.msra.mxu0 %v1814
  %2509 = vmatprep.subr.bf16.mxu0 0
  %2510 = vmatpush1.bf16.msra.mxu0 0
  %2511 = vmatprep.subr.bf16.mxu0 0
  %2512 = vmatpush1.bf16.msra.mxu0 0
  %2513 = vmatprep.subr.bf16.mxu0 0
  %2514 = vmatpush1.bf16.msra.mxu0 0
  %2515 = vmatprep.subr.bf16.mxu0 0
  %2516 = vmatpush1.bf16.msra.mxu0 0
  %2517 = vmatprep.subr.bf16.mxu0 0
  %2518 = vmatpush1.bf16.msra.mxu0 0
  %2519 = vmatprep.subr.bf16.mxu0 0
  %2520 = vmatpush1.bf16.msra.mxu0 0
  %2521 = vmatprep.subr.bf16.mxu0 0
  %2522 = vmatpush1.bf16.msra.mxu0 0
  %2523 = vmatprep.subr.bf16.mxu0 0
  %2524 = vmatpush1.bf16.msra.mxu0 0
  %2525 = vmatprep.subr.bf16.mxu0 0
  %2526 = vmatpush1.bf16.msra.mxu0 0
  %2527 = vmatprep.subr.bf16.mxu0 0
  %2528 = vmatpush1.bf16.msra.mxu0 0
  %2529 = vmatprep.subr.bf16.mxu0 0
  %2530 = vmatpush1.bf16.msra.mxu0 0
  %2531 = vmatprep.subr.bf16.mxu0 0
  %2532 = vmatpush1.bf16.msra.mxu0 0
  %2533 = vmatprep.subr.bf16.mxu0 0
  %2534 = vmatpush1.bf16.msra.mxu0 0
  %2535 = vmatprep.subr.bf16.mxu0 0
  %2536 = vmatpush1.bf16.msra.mxu0 0
  %2537 = vmatprep.mubr.bf16.mxu0 0
  %2538 = vmatmul.mubr.bf16.gmra.mrb[0].mxu0 %v2503
  %v2539 = vpop.f32.mrb[0].mxu0
  %v2540 = vadd.f32 %v2497, %v2539
  %v2541 = vpop.f32.mrb[0].mxu0
  %v2542 = vpop.f32.mrb[0].mxu0
  %v2543 = vadd.f32 %v2498, %v2542
  %v2544 = vpop.f32.mrb[0].mxu0
  %2545 = vdwg.mxu0
  %v2546 = vxor.u32 %v2540, 2147483648
  %v2547 = vxor.u32 %v2543, 2147483648
  %v2548 = vmul.f32 %v2546, 1.442695
  %v2549 = vpow.pop %v2548
  %v2550 = vmul.f32 %v2547, 1.442695
  %v2551 = vpow.pop %v2550
  %v2552 = vadd.f32 %v2549, 1.0
  %v2553 = vadd.f32 %v2551, 1.0
  %v2554 = vrcp.pop %v2552
  %v2555 = vmul.f32 1.0, %v2554
  %v2556 = vrcp.pop %v2553
  %v2557 = vmul.f32 1.0, %v2556
  %v2558 = vtanh.pop %v2540
  %v2559 = vtanh.pop %v2543
  %v2560 = vmul.f32 %v2555, %v2482
  %v2561 = vmul.f32 %v2557, %v2483
  %2564 = vrot.lane.b32.xlu0 %v2558, 32
  %v2565 = vpop.permute.xlu0 %2564
  %2566 = vrot.lane.b32.xlu0 %v2559, 32
  %v2567 = vpop.permute.xlu0 %2566
  %v2570 = vmul.f32 %v2555, %v2565
  %v2571 = vmul.f32 %v2557, %v2567
  %2574 = vrot.lane.b32.xlu0 %v2570, 32
  %v2575 = vpop.permute.xlu0 %2574
  %2576 = vrot.lane.b32.xlu0 %v2571, 32
  %v2577 = vpop.permute.xlu0 %2576
  %v2580 = vadd.f32 %v2560, %v2575
  %v2581 = vadd.f32 %v2561, %v2577
  %v2582 = vtanh.pop %v2580
  %v2583 = vtanh.pop %v2581
  %2586 = vrot.lane.b32.xlu0 %v2582, 32
  %v2587 = vpop.permute.xlu0 %2586
  %2588 = vrot.lane.b32.xlu0 %v2583, 32
  %v2589 = vpop.permute.xlu0 %2588
  %v2592 = vmul.f32 %v2555, %v2587
  %v2593 = vmul.f32 %v2557, %v2589
  %v2594 = vpack.c.bf16 %v2593, %v2592
  %v2595 = vld [vmem:[%s7] sm:$0xf]
  %v2596 = vld [vmem:[%s7 + $0x4] sm:$0xf]
  %v2597 = vld [vmem:[%s7 + $0x8] sm:$0xf]
  %v2598 = vld [vmem:[%s7 + $0xc] sm:$0xf]
  %v2599 = vld [vmem:[%s8] sm:$0x1]
  %v2601 = vlaneseq
  %v2602 = vshrl.u32 %v2601, 7
  %v2603 = vsub.s32 0, %v2602
  %v2604 = vrot.slane %v2599, %v2603
  %2607 = vrot.lane.b32.xlu0 %v2594, 64
  %v2608 = vpop.permute.xlu0 %2607
  %v2613 = vunpack.c.l.b16 %v2595
  %v2614 = vunpack.c.l.b16 %v2596
  %v2615 = vunpack.c.l.b16 %v2597
  %v2616 = vunpack.c.l.b16 %v2598
  %v2617 = vpack.c.b16 %v2614, %v2613
  %v2618 = vpack.c.b16 %v2616, %v2615
  %v2622 = vsel %vm484, %v2608, 0
  %2624 = vmatprep.subr.bf16.mxu0 0
  %2625 = vmatpush1.bf16.msra.mxu0 %v2617
  %2626 = vmatprep.subr.bf16.mxu0 0
  %2627 = vmatpush1.bf16.msra.mxu0 %v2618
  %2628 = vmatprep.subr.bf16.mxu0 0
  %2629 = vmatpush1.bf16.msra.mxu0 0
  %2630 = vmatprep.subr.bf16.mxu0 0
  %2631 = vmatpush1.bf16.msra.mxu0 0
  %2632 = vmatprep.subr.bf16.mxu0 0
  %2633 = vmatpush1.bf16.msra.mxu0 0
  %2634 = vmatprep.subr.bf16.mxu0 0
  %2635 = vmatpush1.bf16.msra.mxu0 0
  %2636 = vmatprep.subr.bf16.mxu0 0
  %2637 = vmatpush1.bf16.msra.mxu0 0
  %2638 = vmatprep.subr.bf16.mxu0 0
  %2639 = vmatpush1.bf16.msra.mxu0 0
  %2640 = vmatprep.subr.bf16.mxu0 0
  %2641 = vmatpush1.bf16.msra.mxu0 0
  %2642 = vmatprep.subr.bf16.mxu0 0
  %2643 = vmatpush1.bf16.msra.mxu0 0
  %2644 = vmatprep.subr.bf16.mxu0 0
  %2645 = vmatpush1.bf16.msra.mxu0 0
  %2646 = vmatprep.subr.bf16.mxu0 0
  %2647 = vmatpush1.bf16.msra.mxu0 0
  %2648 = vmatprep.subr.bf16.mxu0 0
  %2649 = vmatpush1.bf16.msra.mxu0 0
  %2650 = vmatprep.subr.bf16.mxu0 0
  %2651 = vmatpush1.bf16.msra.mxu0 0
  %2652 = vmatprep.subr.bf16.mxu0 0
  %2653 = vmatpush1.bf16.msra.mxu0 0
  %2654 = vmatprep.subr.bf16.mxu0 0
  %2655 = vmatpush1.bf16.msra.mxu0 0
  %2656 = vmatprep.mubr.bf16.mxu0 0
  %2657 = vmatmul.mubr.bf16.gmra.mrb[0].mxu0 %v2622
  %v2658 = vpop.f32.mrb[0].mxu0
  %v2659 = vadd.f32 %v2604, %v2658
  %v2660 = vpop.f32.mrb[0].mxu0
  %v2661 = vpop.f32.mrb[0].mxu0
  %v2662 = vadd.f32 %v2604, %v2661
  %v2663 = vpop.f32.mrb[0].mxu0
  %2664 = vdwg.mxu0
  %v2665 = vmax.f32 %v2659, 0.0
  %v2666 = vmax.f32 %v2662, 0.0
  %v2667 = vpack.c.bf16 %v2666, %v2665
  %v2668 = vld [vmem:[%s9] sm:$0xf]
  %v2669 = vld [vmem:[%s9 + $0x4] sm:$0xf]
  %v2670 = vld [vmem:[%s9 + $0x8] sm:$0xf]
  %v2671 = vld [vmem:[%s9 + $0xc] sm:$0xf]
  %v2672 = vld [vmem:[%s10] sm:$0x1]
  %v2674 = vlaneseq
  %v2675 = vshrl.u32 %v2674, 7
  %v2676 = vsub.s32 0, %v2675
  %v2677 = vrot.slane %v2672, %v2676
  %v2683 = vunpack.c.l.b16 %v2668
  %v2684 = vunpack.c.l.b16 %v2669
  %v2685 = vunpack.c.l.b16 %v2670
  %v2686 = vunpack.c.l.b16 %v2671
  %v2687 = vpack.c.b16 %v2684, %v2683
  %v2688 = vpack.c.b16 %v2686, %v2685
  %v2692 = vsel %vm484, %v2667, 0
  %2694 = vmatprep.subr.bf16.mxu0 0
  %2695 = vmatpush1.bf16.msra.mxu0 %v2687
  %2696 = vmatprep.subr.bf16.mxu0 0
  %2697 = vmatpush1.bf16.msra.mxu0 %v2688
  %2698 = vmatprep.subr.bf16.mxu0 0
  %2699 = vmatpush1.bf16.msra.mxu0 0
  %2700 = vmatprep.subr.bf16.mxu0 0
  %2701 = vmatpush1.bf16.msra.mxu0 0
  %2702 = vmatprep.subr.bf16.mxu0 0
  %2703 = vmatpush1.bf16.msra.mxu0 0
  %2704 = vmatprep.subr.bf16.mxu0 0
  %2705 = vmatpush1.bf16.msra.mxu0 0
  %2706 = vmatprep.subr.bf16.mxu0 0
  %2707 = vmatpush1.bf16.msra.mxu0 0
  %2708 = vmatprep.subr.bf16.mxu0 0
  %2709 = vmatpush1.bf16.msra.mxu0 0
  %2710 = vmatprep.subr.bf16.mxu0 0
  %2711 = vmatpush1.bf16.msra.mxu0 0
  %2712 = vmatprep.subr.bf16.mxu0 0
  %2713 = vmatpush1.bf16.msra.mxu0 0
  %2714 = vmatprep.subr.bf16.mxu0 0
  %2715 = vmatpush1.bf16.msra.mxu0 0
  %2716 = vmatprep.subr.bf16.mxu0 0
  %2717 = vmatpush1.bf16.msra.mxu0 0
  %2718 = vmatprep.subr.bf16.mxu0 0
  %2719 = vmatpush1.bf16.msra.mxu0 0
  %2720 = vmatprep.subr.bf16.mxu0 0
  %2721 = vmatpush1.bf16.msra.mxu0 0
  %2722 = vmatprep.subr.bf16.mxu0 0
  %2723 = vmatpush1.bf16.msra.mxu0 0
  %2724 = vmatprep.subr.bf16.mxu0 0
  %2725 = vmatpush1.bf16.msra.mxu0 0
  %2726 = vmatprep.mubr.bf16.mxu0 0
  %2727 = vmatmul.mubr.bf16.gmra.mrb[0].mxu0 %v2692
  %v2728 = vpop.f32.mrb[0].mxu0
  %v2729 = vadd.f32 %v2677, %v2728
  %v2730 = vpop.f32.mrb[0].mxu0
  %v2731 = vpop.f32.mrb[0].mxu0
  %v2732 = vadd.f32 %v2677, %v2731
  %v2733 = vpop.f32.mrb[0].mxu0
  %2734 = vdwg.mxu0
  %2735 = vst [vmem:[%s11] sm:$0xff] %v2729
  %2736 = vst [vmem:[%s11 + $0x8] sm:$0xff] %v2732
  // Predicated region
  $region46: #{local_text_bilstm.1} parent=0 // pred_check
    _
  $region47: #{local_text_bilstm.1} parent=0 // pred_check_branch
    %2738 = sbr.rel (0) target = $region49
  $region48: #{local_text_bilstm.1} parent=0 // pred_region
    _
  $region49: #{local_text_bilstm.1} parent=0 // pred_fallthru
    _
  // Predicated region
  $region50: #{local_text_bilstm.1} parent=0 // pred_check
    _
  $region51: #{local_text_bilstm.1} parent=0 // pred_check_branch
    %2740 = sbr.rel (0) target = $region53
  $region52: #{local_text_bilstm.1} parent=0 // pred_region
    _
  $region53: #{local_text_bilstm.1} parent=0 // pred_fallthru
    _

</llo_original>
